<compile_context>
chip_gen: v7x
topology: tpu7x:2x2x1
jax: 0.10.0
libtpu: 0.0.40
codegen_flags: <defaults>
</compile_context>

<pallas_src>
import functools

import jax
import jax.numpy as jnp
from jax.experimental import pallas as pl
from jax.experimental.pallas import tpu as pltpu

# Small, self-consistent dims (scaled-down MNIST-style VAE).
D_IN = 64        # flattened image: 1 x 8 x 8
H1 = 64          # fc1 width
H2 = 32          # fc2 width
LAT = 4          # latent_dim (number of categorical groups)
CAT = 8          # categorical_dim (classes per group)
LATCAT = LAT * CAT
OUT_W = D_IN + 2 * LATCAT       # 64 + 32 + 32 = 128  -> lane-dense output slab
EPS = 1e-20      # same eps as reference sample_gumbel
TEMP = 1.0


def _srl(v, n):
    """Logical right shift for int32 (arithmetic shift + mask). Portable jnp ops only."""
    return (v >> n) & jnp.int32((1 << (32 - n)) - 1)


def _vae_gumbel_kernel(temp, seed,
                       x_ref,
                       w1_ref, b1_ref, w2_ref, b2_ref, w3_ref, b3_ref,
                       w4_ref, b4_ref, w5_ref, b5_ref, w6_ref, b6_ref,
                       out_ref):
    tb = x_ref.shape[0]
    inv_temp = 1.0 / temp

    def linear(h, w_ref, b_ref):
        # bf16 operands on the MXU, f32 accumulation, f32 bias add.
        return jnp.dot(h.astype(jnp.bfloat16), w_ref[...],
                       preferred_element_type=jnp.float32) + b_ref[...]

    def group_softmax(v):
        # Softmax over each contiguous group of CAT lanes with a per-group max
        # (robust: no 0/0 when one group's logits are far below the row max).
        # Exact divide keeps each group an exact simplex.
        parts = []
        for l in range(LAT):
            blk = v[:, l * CAT:(l + 1) * CAT]                 # (tb, CAT) static lane slice
            m = jnp.max(blk, axis=-1, keepdims=True)
            e = jnp.exp(blk - m)
            s = jnp.sum(e, axis=-1, keepdims=True)
            parts.append(e / s)
        return jnp.concatenate(parts, axis=-1)                # (tb, LATCAT)

    # ---- encoder (x stays f32 in HBM; bf16 cast happens on the VPU inside linear) ----
    x = x_ref[...]
    h1 = jnp.maximum(linear(x, w1_ref, b1_ref), 0.0)
    h2 = jnp.maximum(linear(h1, w2_ref, b2_ref), 0.0)
    q = jnp.maximum(linear(h2, w3_ref, b3_ref), 0.0)          # (tb, LATCAT) f32

    # softmax(q_y, dim=-1) over each categorical group.
    qy = group_softmax(q)

    # ---- soft Gumbel-Softmax sample (hard=False) ----
    # Portable counter-based hash PRNG (SplitMix32-style finalizer).  Noise is a pure
    # function of (seed, global row, column), so it is tile-size invariant and needs
    # no pltpu.prng_* primitives and no HBM noise traffic.
    row = jax.lax.broadcasted_iota(jnp.int32, (tb, LATCAT), 0) + pl.program_id(0) * tb
    col = jax.lax.broadcasted_iota(jnp.int32, (tb, LATCAT), 1)
    h = row * LATCAT + col + jnp.int32(seed)
    h = h ^ _srl(h, 16)
    h = h * jnp.int32(0x7FEB352D)
    h = h ^ _srl(h, 15)
    h = h * jnp.int32(-2073299317)                            # 0x846CA68B wrapped to int32
    h = h ^ _srl(h, 16)
    # U[0,1) via the mantissa bit-trick (no int->float convert).
    mant = (h & jnp.int32((1 << 23) - 1)) | jnp.int32(0x3F800000)
    u = jax.lax.bitcast_convert_type(mant, jnp.float32) - 1.0
    gumbel = -jnp.log(-jnp.log(u + EPS) + EPS)
    z = group_softmax((q + gumbel) * inv_temp)
    # TODO(synk): hard=True straight-through one-hot variant not implemented; the
    # forward path here uses the soft sample (hard=False).

    # ---- decoder ----
    h3 = jnp.maximum(linear(z, w4_ref, b4_ref), 0.0)
    h4 = jnp.maximum(linear(h3, w5_ref, b5_ref), 0.0)
    logits = linear(h4, w6_ref, b6_ref)
    recon = 0.5 * (jnp.tanh(0.5 * logits) + 1.0)              # sigmoid via one EUP tanh

    # Single lane-dense (tb, 128) bf16 store: [recon | qy | z] -> one unmasked full-lane
    # writeback instead of three masked sub-128-lane stores.
    out_ref[...] = jnp.concatenate([recon, qy, z], axis=-1).astype(out_ref.dtype)


def _round_up(n, m):
    return ((n + m - 1) // m) * m


def _choose_tile(nbatch, tb):
    """Pick a batch tile: big (default 1024), multiple of 16 (bf16 sublane packing),
    and — when multi-tile — an even tile count so the 'parallel' batch axis lands
    work on both v7x TensorCores."""
    if nbatch <= tb:
        return _round_up(nbatch, 16)
    n = pl.cdiv(nbatch, tb)
    if n % 2:
        n += 1
    return _round_up(pl.cdiv(nbatch, n), 16)


def vae_gumbel_forward(x_img, params, *, temp=TEMP, seed=0, tb=1024):
    """Fused Pallas forward.

    x_img : (B, 1, 8, 8) f32 NCHW image batch (kept f32; kernel casts to bf16 on-chip).
    params: 6x (weight bf16 (in,out), bias f32 (1,out)) — pre-converted once (init_params).
    Returns (recon, qy, z) as bf16; the PyTorch module's forward returns (recon, qy),
    z (the soft Gumbel-Softmax sample) is exposed for validation.
    """
    x = x_img.reshape(x_img.shape[0], -1)                     # glue: view(-1, D_IN), no cast/pad
    nbatch = x.shape[0]
    tb_eff = _choose_tile(nbatch, tb)
    ntiles = pl.cdiv(nbatch, tb_eff)
    seed32 = ((int(seed) + 2**31) % 2**32) - 2**31            # wrap into int32 range

    def row_spec(n):
        return pl.BlockSpec((tb_eff, n), lambda i: (i, 0))

    def full_spec(shape):
        return pl.BlockSpec(shape, lambda i: (0,) * len(shape))

    in_specs = [row_spec(D_IN)]
    flat_args = [x]
    for k in range(6):
        w, b = params[2 * k], params[2 * k + 1]
        in_specs += [full_spec(w.shape), full_spec(b.shape)]
        flat_args += [w, b]

    kernel = functools.partial(_vae_gumbel_kernel, float(temp), seed32)
    out = pl.pallas_call(
        kernel,
        out_shape=jax.ShapeDtypeStruct((nbatch, OUT_W), jnp.bfloat16),
        grid=(ntiles,),
        in_specs=in_specs,
        out_specs=pl.BlockSpec((tb_eff, OUT_W), lambda i: (i, 0)),
        compiler_params=pltpu.CompilerParams(
            dimension_semantics=("parallel",),                # shard batch tiles across TCs
            vmem_limit_bytes=32 * 1024 * 1024,                # headroom; v7x has 64 MiB/TC
        ),
    )(*flat_args)

    recon = out[:, :D_IN]
    qy = out[:, D_IN:D_IN + LATCAT]
    z = out[:, D_IN + LATCAT:]
    return recon, qy, z


# ------------------------- pure-JAX reference (validation) -------------------------

def _ref_linear(h, w, b):
    # Same precision recipe as the kernel: bf16 operands, f32 accumulation.
    return jnp.dot(h.astype(jnp.bfloat16), w.astype(jnp.bfloat16),
                   preferred_element_type=jnp.float32) + b.astype(jnp.float32)


def encode_qy_ref(x_img, params):
    x = x_img.reshape(x_img.shape[0], -1).astype(jnp.float32)
    w1, b1, w2, b2, w3, b3 = params[:6]
    h1 = jax.nn.relu(_ref_linear(x, w1, b1))
    h2 = jax.nn.relu(_ref_linear(h1, w2, b2))
    q = jax.nn.relu(_ref_linear(h2, w3, b3))
    return jax.nn.softmax(q.reshape(-1, LAT, CAT), axis=-1).reshape(-1, LATCAT)


def decode_ref(z, params):
    w4, b4, w5, b5, w6, b6 = params[6:]
    h3 = jax.nn.relu(_ref_linear(z, w4, b4))
    h4 = jax.nn.relu(_ref_linear(h3, w5, b5))
    return jax.nn.sigmoid(_ref_linear(h4, w6, b6))


def init_params(key):
    """PyTorch-Linear-style init U(-1/sqrt(fan_in), 1/sqrt(fan_in)).
    Weights stored pre-transposed as (in, out) and pre-cast to bf16 ONCE (outside the
    per-call hot path); biases as f32 (1, out)."""
    dims = [(D_IN, H1), (H1, H2), (H2, LATCAT), (LATCAT, H2), (H2, H1), (H1, D_IN)]
    params = []
    for fan_in, fan_out in dims:
        key, kw, kb = jax.random.split(key, 3)
        bound = 1.0 / jnp.sqrt(float(fan_in))
        w = jax.random.uniform(kw, (fan_in, fan_out), jnp.float32, -bound, bound)
        b = jax.random.uniform(kb, (1, fan_out), jnp.float32, -bound, bound)
        params += [w.astype(jnp.bfloat16), b]
    return tuple(params)


if __name__ == "__main__":
    key = jax.random.PRNGKey(0)
    k_params, k_x = jax.random.split(key, 2)

    B = 200                                                    # not a tile multiple: exercises masked tail
    params = init_params(k_params)
    x_img = jax.random.uniform(k_x, (B, 1, 8, 8), jnp.float32)  # NCHW input

    # Default path: tb=1024 -> single 208-row tile (rounded up), partial block masked.
    recon, qy, z = vae_gumbel_forward(x_img, params, temp=TEMP, seed=1234)
    recon, qy, z = (jax.block_until_ready(a) for a in (recon, qy, z))

    # Multi-tile path: tb=64 -> 4 tiles (even count), last tile partial.
    recon2, qy2, z2 = vae_gumbel_forward(x_img, params, temp=TEMP, seed=1234, tb=64)
    recon2, qy2, z2 = (jax.block_until_ready(a) for a in (recon2, qy2, z2))

    assert recon.shape == (B, D_IN) and qy.shape == (B, LATCAT) and z.shape == (B, LATCAT)
    for a in (recon, qy, z, recon2, qy2, z2):
        assert bool(jnp.isfinite(a.astype(jnp.float32)).all())

    qy_ref = encode_qy_ref(x_img, params)                      # noise-independent
    recon_ref = decode_ref(z.astype(jnp.float32), params)      # decode kernel's own soft sample

    TOL = 2e-2  # bf16 output rounding dominates (~4e-3 abs near 1.0)
    err_q = float(jnp.max(jnp.abs(qy.astype(jnp.float32) - qy_ref)))
    err_q2 = float(jnp.max(jnp.abs(qy2.astype(jnp.float32) - qy_ref)))
    err_r = float(jnp.max(jnp.abs(recon.astype(jnp.float32) - recon_ref)))
    assert err_q < TOL, ("qy mismatch", err_q)
    assert err_q2 < TOL, ("qy (multi-tile) mismatch", err_q2)
    assert err_r < TOL, ("recon mismatch", err_r)

    # Noise is a pure function of (seed, global row, col) -> tile-size invariant.
    err_z = float(jnp.max(jnp.abs(z.astype(jnp.float32) - z2.astype(jnp.float32))))
    assert err_z < TOL, ("z tile-invariance mismatch", err_z)

    # z must be a valid soft one-hot per categorical group (bf16 rounding tolerance).
    gsum = z.astype(jnp.float32).reshape(-1, LAT, CAT).sum(axis=-1)
    assert float(jnp.max(jnp.abs(gsum - 1.0))) < 3e-2, "group softmax does not sum to 1"
    assert float(z.astype(jnp.float32).min()) >= -1e-6
    assert float(z.astype(jnp.float32).max()) <= 1.0 + 3e-2

    print("KERNEL_OK")
</pallas_src>

<mosaic_0001>
module attributes {stable_mosaic.version = 11 : i64} {
  func.func @_vae_gumbel_kernel(%arg0: i32, %arg1: memref<208x64xf32, #tpu.memory_space<vmem>>, %arg2: memref<64x64xbf16, #tpu.memory_space<vmem>>, %arg3: memref<1x64xf32, #tpu.memory_space<vmem>>, %arg4: memref<64x32xbf16, #tpu.memory_space<vmem>>, %arg5: memref<1x32xf32, #tpu.memory_space<vmem>>, %arg6: memref<32x32xbf16, #tpu.memory_space<vmem>>, %arg7: memref<1x32xf32, #tpu.memory_space<vmem>>, %arg8: memref<32x32xbf16, #tpu.memory_space<vmem>>, %arg9: memref<1x32xf32, #tpu.memory_space<vmem>>, %arg10: memref<32x64xbf16, #tpu.memory_space<vmem>>, %arg11: memref<1x64xf32, #tpu.memory_space<vmem>>, %arg12: memref<64x64xbf16, #tpu.memory_space<vmem>>, %arg13: memref<1x64xf32, #tpu.memory_space<vmem>>, %arg14: memref<208x128xbf16, #tpu.memory_space<vmem>>) attributes {dimension_semantics = [#tpu.dimension_semantics<parallel>], iteration_bounds = array<i64: 1>, scalar_prefetch = 0 : i64, scratch_operands = 0 : i64, tpu.core_type = #tpu.core_type<tc>, window_params = [{transform_indices = @transform_0, window_bounds = array<i64: 208, 64>}, {pipeline_mode = #tpu.pipeline_mode<synchronous>, transform_indices = @transform_1, window_bounds = array<i64: 64, 64>}, {pipeline_mode = #tpu.pipeline_mode<synchronous>, transform_indices = @transform_2, window_bounds = array<i64: 1, 64>}, {pipeline_mode = #tpu.pipeline_mode<synchronous>, transform_indices = @transform_3, window_bounds = array<i64: 64, 32>}, {pipeline_mode = #tpu.pipeline_mode<synchronous>, transform_indices = @transform_4, window_bounds = array<i64: 1, 32>}, {pipeline_mode = #tpu.pipeline_mode<synchronous>, transform_indices = @transform_5, window_bounds = array<i64: 32, 32>}, {pipeline_mode = #tpu.pipeline_mode<synchronous>, transform_indices = @transform_6, window_bounds = array<i64: 1, 32>}, {pipeline_mode = #tpu.pipeline_mode<synchronous>, transform_indices = @transform_7, window_bounds = array<i64: 32, 32>}, {pipeline_mode = #tpu.pipeline_mode<synchronous>, transform_indices = @transform_8, window_bounds = array<i64: 1, 32>}, {pipeline_mode = #tpu.pipeline_mode<synchronous>, transform_indices = @transform_9, window_bounds = array<i64: 32, 64>}, {pipeline_mode = #tpu.pipeline_mode<synchronous>, transform_indices = @transform_10, window_bounds = array<i64: 1, 64>}, {pipeline_mode = #tpu.pipeline_mode<synchronous>, transform_indices = @transform_11, window_bounds = array<i64: 64, 64>}, {pipeline_mode = #tpu.pipeline_mode<synchronous>, transform_indices = @transform_12, window_bounds = array<i64: 1, 64>}, {transform_indices = @transform_13, window_bounds = array<i64: 208, 128>}]} {
    %c0 = arith.constant 0 : index
    %c0_0 = arith.constant 0 : index
    %0 = vector.load %arg1[%c0, %c0_0] : memref<208x64xf32, #tpu.memory_space<vmem>>, vector<208x64xf32>
    %1 = arith.truncf %0 : vector<208x64xf32> to vector<208x64xbf16>
    %c0_1 = arith.constant 0 : index
    %c0_2 = arith.constant 0 : index
    %2 = vector.load %arg2[%c0_1, %c0_2] : memref<64x64xbf16, #tpu.memory_space<vmem>>, vector<64x64xbf16>
    %cst = arith.constant dense<0.000000e+00> : vector<208x64xf32>
    %3 = tpu.matmul %1, %2, %cst {dimension_numbers = #tpu.dot_dimension_numbers<[1], [0], [0], [1], [0, 0, 1, 1], [], []>} : vector<208x64xbf16>, vector<64x64xbf16>, vector<208x64xf32> -> vector<208x64xf32>
    %c0_3 = arith.constant 0 : index
    %c0_4 = arith.constant 0 : index
    %4 = vector.load %arg3[%c0_3, %c0_4] : memref<1x64xf32, #tpu.memory_space<vmem>>, vector<1x64xf32>
    %5 = vector.broadcast %4 : vector<1x64xf32> to vector<208x64xf32>
    %6 = arith.addf %3, %5 : vector<208x64xf32>
    %cst_5 = arith.constant 0.000000e+00 : f32
    %7 = vector.broadcast %cst_5 : f32 to vector<208x64xf32>
    %8 = arith.maximumf %6, %7 : vector<208x64xf32>
    %9 = arith.truncf %8 : vector<208x64xf32> to vector<208x64xbf16>
    %c0_6 = arith.constant 0 : index
    %c0_7 = arith.constant 0 : index
    %10 = vector.load %arg4[%c0_6, %c0_7] : memref<64x32xbf16, #tpu.memory_space<vmem>>, vector<64x32xbf16>
    %cst_8 = arith.constant dense<0.000000e+00> : vector<208x32xf32>
    %11 = tpu.matmul %9, %10, %cst_8 {dimension_numbers = #tpu.dot_dimension_numbers<[1], [0], [0], [1], [0, 0, 1, 1], [], []>} : vector<208x64xbf16>, vector<64x32xbf16>, vector<208x32xf32> -> vector<208x32xf32>
    %c0_9 = arith.constant 0 : index
    %c0_10 = arith.constant 0 : index
    %12 = vector.load %arg5[%c0_9, %c0_10] : memref<1x32xf32, #tpu.memory_space<vmem>>, vector<1x32xf32>
    %13 = vector.broadcast %12 : vector<1x32xf32> to vector<208x32xf32>
    %14 = arith.addf %11, %13 : vector<208x32xf32>
    %cst_11 = arith.constant 0.000000e+00 : f32
    %15 = vector.broadcast %cst_11 : f32 to vector<208x32xf32>
    %16 = arith.maximumf %14, %15 : vector<208x32xf32>
    %17 = arith.truncf %16 : vector<208x32xf32> to vector<208x32xbf16>
    %c0_12 = arith.constant 0 : index
    %c0_13 = arith.constant 0 : index
    %18 = vector.load %arg6[%c0_12, %c0_13] : memref<32x32xbf16, #tpu.memory_space<vmem>>, vector<32x32xbf16>
    %cst_14 = arith.constant dense<0.000000e+00> : vector<208x32xf32>
    %19 = tpu.matmul %17, %18, %cst_14 {dimension_numbers = #tpu.dot_dimension_numbers<[1], [0], [0], [1], [0, 0, 1, 1], [], []>} : vector<208x32xbf16>, vector<32x32xbf16>, vector<208x32xf32> -> vector<208x32xf32>
    %c0_15 = arith.constant 0 : index
    %c0_16 = arith.constant 0 : index
    %20 = vector.load %arg7[%c0_15, %c0_16] : memref<1x32xf32, #tpu.memory_space<vmem>>, vector<1x32xf32>
    %21 = vector.broadcast %20 : vector<1x32xf32> to vector<208x32xf32>
    %22 = arith.addf %19, %21 : vector<208x32xf32>
    %cst_17 = arith.constant 0.000000e+00 : f32
    %23 = vector.broadcast %cst_17 : f32 to vector<208x32xf32>
    %24 = arith.maximumf %22, %23 : vector<208x32xf32>
    %25 = vector.extract_strided_slice %24 {offsets = [0, 0], sizes = [208, 8], strides = [1, 1]} : vector<208x32xf32> to vector<208x8xf32>
    %cst_18 = arith.constant dense<0xFF800000> : vector<208xf32>
    %26 = vector.multi_reduction <maximumf>, %25, %cst_18 [1] : vector<208x8xf32> to vector<208xf32>
    %27 = vector.shape_cast %26 : vector<208xf32> to vector<208x1xf32>
    %28 = vector.broadcast %27 : vector<208x1xf32> to vector<208x8xf32>
    %29 = arith.subf %25, %28 : vector<208x8xf32>
    %30 = math.exp %29 : vector<208x8xf32>
    %cst_19 = arith.constant dense<0.000000e+00> : vector<208xf32>
    %31 = vector.multi_reduction <add>, %30, %cst_19 [1] : vector<208x8xf32> to vector<208xf32>
    %32 = vector.shape_cast %31 : vector<208xf32> to vector<208x1xf32>
    %33 = vector.broadcast %32 : vector<208x1xf32> to vector<208x8xf32>
    %34 = arith.divf %30, %33 : vector<208x8xf32>
    %35 = vector.extract_strided_slice %24 {offsets = [0, 8], sizes = [208, 8], strides = [1, 1]} : vector<208x32xf32> to vector<208x8xf32>
    %cst_20 = arith.constant dense<0xFF800000> : vector<208xf32>
    %36 = vector.multi_reduction <maximumf>, %35, %cst_20 [1] : vector<208x8xf32> to vector<208xf32>
    %37 = vector.shape_cast %36 : vector<208xf32> to vector<208x1xf32>
    %38 = vector.broadcast %37 : vector<208x1xf32> to vector<208x8xf32>
    %39 = arith.subf %35, %38 : vector<208x8xf32>
    %40 = math.exp %39 : vector<208x8xf32>
    %cst_21 = arith.constant dense<0.000000e+00> : vector<208xf32>
    %41 = vector.multi_reduction <add>, %40, %cst_21 [1] : vector<208x8xf32> to vector<208xf32>
    %42 = vector.shape_cast %41 : vector<208xf32> to vector<208x1xf32>
    %43 = vector.broadcast %42 : vector<208x1xf32> to vector<208x8xf32>
    %44 = arith.divf %40, %43 : vector<208x8xf32>
    %45 = vector.extract_strided_slice %24 {offsets = [0, 16], sizes = [208, 8], strides = [1, 1]} : vector<208x32xf32> to vector<208x8xf32>
    %cst_22 = arith.constant dense<0xFF800000> : vector<208xf32>
    %46 = vector.multi_reduction <maximumf>, %45, %cst_22 [1] : vector<208x8xf32> to vector<208xf32>
    %47 = vector.shape_cast %46 : vector<208xf32> to vector<208x1xf32>
    %48 = vector.broadcast %47 : vector<208x1xf32> to vector<208x8xf32>
    %49 = arith.subf %45, %48 : vector<208x8xf32>
    %50 = math.exp %49 : vector<208x8xf32>
    %cst_23 = arith.constant dense<0.000000e+00> : vector<208xf32>
    %51 = vector.multi_reduction <add>, %50, %cst_23 [1] : vector<208x8xf32> to vector<208xf32>
    %52 = vector.shape_cast %51 : vector<208xf32> to vector<208x1xf32>
    %53 = vector.broadcast %52 : vector<208x1xf32> to vector<208x8xf32>
    %54 = arith.divf %50, %53 : vector<208x8xf32>
    %55 = vector.extract_strided_slice %24 {offsets = [0, 24], sizes = [208, 8], strides = [1, 1]} : vector<208x32xf32> to vector<208x8xf32>
    %cst_24 = arith.constant dense<0xFF800000> : vector<208xf32>
    %56 = vector.multi_reduction <maximumf>, %55, %cst_24 [1] : vector<208x8xf32> to vector<208xf32>
    %57 = vector.shape_cast %56 : vector<208xf32> to vector<208x1xf32>
    %58 = vector.broadcast %57 : vector<208x1xf32> to vector<208x8xf32>
    %59 = arith.subf %55, %58 : vector<208x8xf32>
    %60 = math.exp %59 : vector<208x8xf32>
    %cst_25 = arith.constant dense<0.000000e+00> : vector<208xf32>
    %61 = vector.multi_reduction <add>, %60, %cst_25 [1] : vector<208x8xf32> to vector<208xf32>
    %62 = vector.shape_cast %61 : vector<208xf32> to vector<208x1xf32>
    %63 = vector.broadcast %62 : vector<208x1xf32> to vector<208x8xf32>
    %64 = arith.divf %60, %63 : vector<208x8xf32>
    %65 = tpu.concatenate %34, %44, %54, %64 in 1 : vector<208x8xf32>, vector<208x8xf32>, vector<208x8xf32>, vector<208x8xf32> -> vector<208x32xf32>
    %66 = tpu.iota {dimensions = array<i32: 0>} : vector<208x32xi32>
    %c208_i32 = arith.constant 208 : i32
    %67 = arith.muli %arg0, %c208_i32 : i32
    %68 = vector.broadcast %67 : i32 to vector<208x32xi32>
    %69 = arith.addi %66, %68 : vector<208x32xi32>
    %70 = tpu.iota {dimensions = array<i32: 1>} : vector<208x32xi32>
    %c32_i32 = arith.constant 32 : i32
    %71 = vector.broadcast %c32_i32 : i32 to vector<208x32xi32>
    %72 = arith.muli %69, %71 : vector<208x32xi32>
    %73 = arith.addi %72, %70 : vector<208x32xi32>
    %c1234_i32 = arith.constant 1234 : i32
    %74 = vector.broadcast %c1234_i32 : i32 to vector<208x32xi32>
    %75 = arith.addi %73, %74 : vector<208x32xi32>
    %c16_i32 = arith.constant 16 : i32
    %76 = vector.broadcast %c16_i32 : i32 to vector<208x32xi32>
    %77 = arith.shrsi %75, %76 : vector<208x32xi32>
    %c65535_i32 = arith.constant 65535 : i32
    %78 = vector.broadcast %c65535_i32 : i32 to vector<208x32xi32>
    %79 = arith.andi %77, %78 : vector<208x32xi32>
    %80 = arith.xori %75, %79 : vector<208x32xi32>
    %c2146121005_i32 = arith.constant 2146121005 : i32
    %81 = vector.broadcast %c2146121005_i32 : i32 to vector<208x32xi32>
    %82 = arith.muli %80, %81 : vector<208x32xi32>
    %c15_i32 = arith.constant 15 : i32
    %83 = vector.broadcast %c15_i32 : i32 to vector<208x32xi32>
    %84 = arith.shrsi %82, %83 : vector<208x32xi32>
    %c131071_i32 = arith.constant 131071 : i32
    %85 = vector.broadcast %c131071_i32 : i32 to vector<208x32xi32>
    %86 = arith.andi %84, %85 : vector<208x32xi32>
    %87 = arith.xori %82, %86 : vector<208x32xi32>
    %c-2073299317_i32 = arith.constant -2073299317 : i32
    %88 = vector.broadcast %c-2073299317_i32 : i32 to vector<208x32xi32>
    %89 = arith.muli %87, %88 : vector<208x32xi32>
    %c16_i32_26 = arith.constant 16 : i32
    %90 = vector.broadcast %c16_i32_26 : i32 to vector<208x32xi32>
    %91 = arith.shrsi %89, %90 : vector<208x32xi32>
    %c65535_i32_27 = arith.constant 65535 : i32
    %92 = vector.broadcast %c65535_i32_27 : i32 to vector<208x32xi32>
    %93 = arith.andi %91, %92 : vector<208x32xi32>
    %94 = arith.xori %89, %93 : vector<208x32xi32>
    %c8388607_i32 = arith.constant 8388607 : i32
    %95 = vector.broadcast %c8388607_i32 : i32 to vector<208x32xi32>
    %96 = arith.andi %94, %95 : vector<208x32xi32>
    %c1065353216_i32 = arith.constant 1065353216 : i32
    %97 = vector.broadcast %c1065353216_i32 : i32 to vector<208x32xi32>
    %98 = arith.ori %96, %97 : vector<208x32xi32>
    %99 = tpu.bitcast %98 : vector<208x32xi32> -> vector<208x32xf32>
    %cst_28 = arith.constant 1.000000e+00 : f32
    %100 = vector.broadcast %cst_28 : f32 to vector<208x32xf32>
    %101 = arith.subf %99, %100 : vector<208x32xf32>
    %cst_29 = arith.constant 9.99999968E-21 : f32
    %102 = vector.broadcast %cst_29 : f32 to vector<208x32xf32>
    %103 = arith.addf %101, %102 : vector<208x32xf32>
    %104 = math.log %103 : vector<208x32xf32>
    %cst_30 = arith.constant 0.000000e+00 : f32
    %105 = vector.broadcast %cst_30 : f32 to vector<208x32xf32>
    %106 = arith.subf %105, %104 : vector<208x32xf32>
    %cst_31 = arith.constant 9.99999968E-21 : f32
    %107 = vector.broadcast %cst_31 : f32 to vector<208x32xf32>
    %108 = arith.addf %106, %107 : vector<208x32xf32>
    %109 = math.log %108 : vector<208x32xf32>
    %cst_32 = arith.constant 0.000000e+00 : f32
    %110 = vector.broadcast %cst_32 : f32 to vector<208x32xf32>
    %111 = arith.subf %110, %109 : vector<208x32xf32>
    %112 = arith.addf %24, %111 : vector<208x32xf32>
    %cst_33 = arith.constant 1.000000e+00 : f32
    %113 = vector.broadcast %cst_33 : f32 to vector<208x32xf32>
    %114 = arith.mulf %112, %113 : vector<208x32xf32>
    %115 = vector.extract_strided_slice %114 {offsets = [0, 0], sizes = [208, 8], strides = [1, 1]} : vector<208x32xf32> to vector<208x8xf32>
    %cst_34 = arith.constant dense<0xFF800000> : vector<208xf32>
    %116 = vector.multi_reduction <maximumf>, %115, %cst_34 [1] : vector<208x8xf32> to vector<208xf32>
    %117 = vector.shape_cast %116 : vector<208xf32> to vector<208x1xf32>
    %118 = vector.broadcast %117 : vector<208x1xf32> to vector<208x8xf32>
    %119 = arith.subf %115, %118 : vector<208x8xf32>
    %120 = math.exp %119 : vector<208x8xf32>
    %cst_35 = arith.constant dense<0.000000e+00> : vector<208xf32>
    %121 = vector.multi_reduction <add>, %120, %cst_35 [1] : vector<208x8xf32> to vector<208xf32>
    %122 = vector.shape_cast %121 : vector<208xf32> to vector<208x1xf32>
    %123 = vector.broadcast %122 : vector<208x1xf32> to vector<208x8xf32>
    %124 = arith.divf %120, %123 : vector<208x8xf32>
    %125 = vector.extract_strided_slice %114 {offsets = [0, 8], sizes = [208, 8], strides = [1, 1]} : vector<208x32xf32> to vector<208x8xf32>
    %cst_36 = arith.constant dense<0xFF800000> : vector<208xf32>
    %126 = vector.multi_reduction <maximumf>, %125, %cst_36 [1] : vector<208x8xf32> to vector<208xf32>
    %127 = vector.shape_cast %126 : vector<208xf32> to vector<208x1xf32>
    %128 = vector.broadcast %127 : vector<208x1xf32> to vector<208x8xf32>
    %129 = arith.subf %125, %128 : vector<208x8xf32>
    %130 = math.exp %129 : vector<208x8xf32>
    %cst_37 = arith.constant dense<0.000000e+00> : vector<208xf32>
    %131 = vector.multi_reduction <add>, %130, %cst_37 [1] : vector<208x8xf32> to vector<208xf32>
    %132 = vector.shape_cast %131 : vector<208xf32> to vector<208x1xf32>
    %133 = vector.broadcast %132 : vector<208x1xf32> to vector<208x8xf32>
    %134 = arith.divf %130, %133 : vector<208x8xf32>
    %135 = vector.extract_strided_slice %114 {offsets = [0, 16], sizes = [208, 8], strides = [1, 1]} : vector<208x32xf32> to vector<208x8xf32>
    %cst_38 = arith.constant dense<0xFF800000> : vector<208xf32>
    %136 = vector.multi_reduction <maximumf>, %135, %cst_38 [1] : vector<208x8xf32> to vector<208xf32>
    %137 = vector.shape_cast %136 : vector<208xf32> to vector<208x1xf32>
    %138 = vector.broadcast %137 : vector<208x1xf32> to vector<208x8xf32>
    %139 = arith.subf %135, %138 : vector<208x8xf32>
    %140 = math.exp %139 : vector<208x8xf32>
    %cst_39 = arith.constant dense<0.000000e+00> : vector<208xf32>
    %141 = vector.multi_reduction <add>, %140, %cst_39 [1] : vector<208x8xf32> to vector<208xf32>
    %142 = vector.shape_cast %141 : vector<208xf32> to vector<208x1xf32>
    %143 = vector.broadcast %142 : vector<208x1xf32> to vector<208x8xf32>
    %144 = arith.divf %140, %143 : vector<208x8xf32>
    %145 = vector.extract_strided_slice %114 {offsets = [0, 24], sizes = [208, 8], strides = [1, 1]} : vector<208x32xf32> to vector<208x8xf32>
    %cst_40 = arith.constant dense<0xFF800000> : vector<208xf32>
    %146 = vector.multi_reduction <maximumf>, %145, %cst_40 [1] : vector<208x8xf32> to vector<208xf32>
    %147 = vector.shape_cast %146 : vector<208xf32> to vector<208x1xf32>
    %148 = vector.broadcast %147 : vector<208x1xf32> to vector<208x8xf32>
    %149 = arith.subf %145, %148 : vector<208x8xf32>
    %150 = math.exp %149 : vector<208x8xf32>
    %cst_41 = arith.constant dense<0.000000e+00> : vector<208xf32>
    %151 = vector.multi_reduction <add>, %150, %cst_41 [1] : vector<208x8xf32> to vector<208xf32>
    %152 = vector.shape_cast %151 : vector<208xf32> to vector<208x1xf32>
    %153 = vector.broadcast %152 : vector<208x1xf32> to vector<208x8xf32>
    %154 = arith.divf %150, %153 : vector<208x8xf32>
    %155 = tpu.concatenate %124, %134, %144, %154 in 1 : vector<208x8xf32>, vector<208x8xf32>, vector<208x8xf32>, vector<208x8xf32> -> vector<208x32xf32>
    %156 = arith.truncf %155 : vector<208x32xf32> to vector<208x32xbf16>
    %c0_42 = arith.constant 0 : index
    %c0_43 = arith.constant 0 : index
    %157 = vector.load %arg8[%c0_42, %c0_43] : memref<32x32xbf16, #tpu.memory_space<vmem>>, vector<32x32xbf16>
    %cst_44 = arith.constant dense<0.000000e+00> : vector<208x32xf32>
    %158 = tpu.matmul %156, %157, %cst_44 {dimension_numbers = #tpu.dot_dimension_numbers<[1], [0], [0], [1], [0, 0, 1, 1], [], []>} : vector<208x32xbf16>, vector<32x32xbf16>, vector<208x32xf32> -> vector<208x32xf32>
    %c0_45 = arith.constant 0 : index
    %c0_46 = arith.constant 0 : index
    %159 = vector.load %arg9[%c0_45, %c0_46] : memref<1x32xf32, #tpu.memory_space<vmem>>, vector<1x32xf32>
    %160 = vector.broadcast %159 : vector<1x32xf32> to vector<208x32xf32>
    %161 = arith.addf %158, %160 : vector<208x32xf32>
    %cst_47 = arith.constant 0.000000e+00 : f32
    %162 = vector.broadcast %cst_47 : f32 to vector<208x32xf32>
    %163 = arith.maximumf %161, %162 : vector<208x32xf32>
    %164 = arith.truncf %163 : vector<208x32xf32> to vector<208x32xbf16>
    %c0_48 = arith.constant 0 : index
    %c0_49 = arith.constant 0 : index
    %165 = vector.load %arg10[%c0_48, %c0_49] : memref<32x64xbf16, #tpu.memory_space<vmem>>, vector<32x64xbf16>
    %cst_50 = arith.constant dense<0.000000e+00> : vector<208x64xf32>
    %166 = tpu.matmul %164, %165, %cst_50 {dimension_numbers = #tpu.dot_dimension_numbers<[1], [0], [0], [1], [0, 0, 1, 1], [], []>} : vector<208x32xbf16>, vector<32x64xbf16>, vector<208x64xf32> -> vector<208x64xf32>
    %c0_51 = arith.constant 0 : index
    %c0_52 = arith.constant 0 : index
    %167 = vector.load %arg11[%c0_51, %c0_52] : memref<1x64xf32, #tpu.memory_space<vmem>>, vector<1x64xf32>
    %168 = vector.broadcast %167 : vector<1x64xf32> to vector<208x64xf32>
    %169 = arith.addf %166, %168 : vector<208x64xf32>
    %cst_53 = arith.constant 0.000000e+00 : f32
    %170 = vector.broadcast %cst_53 : f32 to vector<208x64xf32>
    %171 = arith.maximumf %169, %170 : vector<208x64xf32>
    %172 = arith.truncf %171 : vector<208x64xf32> to vector<208x64xbf16>
    %c0_54 = arith.constant 0 : index
    %c0_55 = arith.constant 0 : index
    %173 = vector.load %arg12[%c0_54, %c0_55] : memref<64x64xbf16, #tpu.memory_space<vmem>>, vector<64x64xbf16>
    %cst_56 = arith.constant dense<0.000000e+00> : vector<208x64xf32>
    %174 = tpu.matmul %172, %173, %cst_56 {dimension_numbers = #tpu.dot_dimension_numbers<[1], [0], [0], [1], [0, 0, 1, 1], [], []>} : vector<208x64xbf16>, vector<64x64xbf16>, vector<208x64xf32> -> vector<208x64xf32>
    %c0_57 = arith.constant 0 : index
    %c0_58 = arith.constant 0 : index
    %175 = vector.load %arg13[%c0_57, %c0_58] : memref<1x64xf32, #tpu.memory_space<vmem>>, vector<1x64xf32>
    %176 = vector.broadcast %175 : vector<1x64xf32> to vector<208x64xf32>
    %177 = arith.addf %174, %176 : vector<208x64xf32>
    %cst_59 = arith.constant 5.000000e-01 : f32
    %178 = vector.broadcast %cst_59 : f32 to vector<208x64xf32>
    %179 = arith.mulf %178, %177 : vector<208x64xf32>
    %180 = math.tanh %179 : vector<208x64xf32>
    %cst_60 = arith.constant 1.000000e+00 : f32
    %181 = vector.broadcast %cst_60 : f32 to vector<208x64xf32>
    %182 = arith.addf %180, %181 : vector<208x64xf32>
    %cst_61 = arith.constant 5.000000e-01 : f32
    %183 = vector.broadcast %cst_61 : f32 to vector<208x64xf32>
    %184 = arith.mulf %183, %182 : vector<208x64xf32>
    %185 = tpu.concatenate %184, %65, %155 in 1 : vector<208x64xf32>, vector<208x32xf32>, vector<208x32xf32> -> vector<208x128xf32>
    %186 = arith.truncf %185 : vector<208x128xf32> to vector<208x128xbf16>
    %c0_62 = arith.constant 0 : index
    %c0_63 = arith.constant 0 : index
    %187 = vector.load %arg14[%c0_62, %c0_63] : memref<208x128xbf16, #tpu.memory_space<vmem>>, vector<208x128xbf16>
    tpu.vector_store %arg14[%c0_62, %c0_63], %186 {strides = array<i32>} : memref<208x128xbf16, #tpu.memory_space<vmem>>, vector<208x128xbf16>,
    return
  }
  func.func @transform_0(%arg0: i32) -> (i32, i32) {
    %c0_i32 = arith.constant 0 : i32
    %c0_i32_0 = arith.constant 0 : i32
    return %arg0, %c0_i32 : i32, i32
  }
  func.func @transform_1(%arg0: i32) -> (i32, i32) {
    %c0_i32 = arith.constant 0 : i32
    %c0_i32_0 = arith.constant 0 : i32
    %c0_i32_1 = arith.constant 0 : i32
    return %c0_i32, %c0_i32_0 : i32, i32
  }
  func.func @transform_2(%arg0: i32) -> (i32, i32) {
    %c0_i32 = arith.constant 0 : i32
    %c0_i32_0 = arith.constant 0 : i32
    %c0_i32_1 = arith.constant 0 : i32
    return %c0_i32, %c0_i32_0 : i32, i32
  }
  func.func @transform_3(%arg0: i32) -> (i32, i32) {
    %c0_i32 = arith.constant 0 : i32
    %c0_i32_0 = arith.constant 0 : i32
    %c0_i32_1 = arith.constant 0 : i32
    return %c0_i32, %c0_i32_0 : i32, i32
  }
  func.func @transform_4(%arg0: i32) -> (i32, i32) {
    %c0_i32 = arith.constant 0 : i32
    %c0_i32_0 = arith.constant 0 : i32
    %c0_i32_1 = arith.constant 0 : i32
    return %c0_i32, %c0_i32_0 : i32, i32
  }
  func.func @transform_5(%arg0: i32) -> (i32, i32) {
    %c0_i32 = arith.constant 0 : i32
    %c0_i32_0 = arith.constant 0 : i32
    %c0_i32_1 = arith.constant 0 : i32
    return %c0_i32, %c0_i32_0 : i32, i32
  }
  func.func @transform_6(%arg0: i32) -> (i32, i32) {
    %c0_i32 = arith.constant 0 : i32
    %c0_i32_0 = arith.constant 0 : i32
    %c0_i32_1 = arith.constant 0 : i32
    return %c0_i32, %c0_i32_0 : i32, i32
  }
  func.func @transform_7(%arg0: i32) -> (i32, i32) {
    %c0_i32 = arith.constant 0 : i32
    %c0_i32_0 = arith.constant 0 : i32
    %c0_i32_1 = arith.constant 0 : i32
    return %c0_i32, %c0_i32_0 : i32, i32
  }
  func.func @transform_8(%arg0: i32) -> (i32, i32) {
    %c0_i32 = arith.constant 0 : i32
    %c0_i32_0 = arith.constant 0 : i32
    %c0_i32_1 = arith.constant 0 : i32
    return %c0_i32, %c0_i32_0 : i32, i32
  }
  func.func @transform_9(%arg0: i32) -> (i32, i32) {
    %c0_i32 = arith.constant 0 : i32
    %c0_i32_0 = arith.constant 0 : i32
    %c0_i32_1 = arith.constant 0 : i32
    return %c0_i32, %c0_i32_0 : i32, i32
  }
  func.func @transform_10(%arg0: i32) -> (i32, i32) {
    %c0_i32 = arith.constant 0 : i32
    %c0_i32_0 = arith.constant 0 : i32
    %c0_i32_1 = arith.constant 0 : i32
    return %c0_i32, %c0_i32_0 : i32, i32
  }
  func.func @transform_11(%arg0: i32) -> (i32, i32) {
    %c0_i32 = arith.constant 0 : i32
    %c0_i32_0 = arith.constant 0 : i32
    %c0_i32_1 = arith.constant 0 : i32
    return %c0_i32, %c0_i32_0 : i32, i32
  }
  func.func @transform_12(%arg0: i32) -> (i32, i32) {
    %c0_i32 = arith.constant 0 : i32
    %c0_i32_0 = arith.constant 0 : i32
    %c0_i32_1 = arith.constant 0 : i32
    return %c0_i32, %c0_i32_0 : i32, i32
  }
  func.func @transform_13(%arg0: i32) -> (i32, i32) {
    %c0_i32 = arith.constant 0 : i32
    %c0_i32_0 = arith.constant 0 : i32
    return %arg0, %c0_i32 : i32, i32
  }
}

</mosaic_0001>

<llo_original>
// kernel: tpu_custom_call.1
$region0: #{tpu_custom_call.1}
  #allocation0 [shape = 'u32[]', space=smem, size = 0x4, offset = 0x4, fixed_abs, tag = 'smem constant byte address 0x4 - core index']
  #allocation1 [shape = 'u32[144,128]{1,0:T(1,128)}', space=vmem, size = 0x12000, scoped, tag = 'internal scratch']
  %s0 = inlined_call_operand.vmem [shape: f32[200,64], index: 0, kind: input, shape index: {}]
  %s1 = inlined_call_operand.vmem [shape: bf16[64,64], index: 1, kind: input, shape index: {}]
  %s2 = inlined_call_operand.vmem [shape: f32[1,64], index: 2, kind: input, shape index: {}]
  %s3 = inlined_call_operand.vmem [shape: bf16[64,32], index: 3, kind: input, shape index: {}]
  %s4 = inlined_call_operand.vmem [shape: f32[1,32], index: 4, kind: input, shape index: {}]
  %s5 = inlined_call_operand.vmem [shape: bf16[32,32], index: 5, kind: input, shape index: {}]
  %s6 = inlined_call_operand.vmem [shape: f32[1,32], index: 6, kind: input, shape index: {}]
  %s7 = inlined_call_operand.vmem [shape: bf16[32,32], index: 7, kind: input, shape index: {}]
  %s8 = inlined_call_operand.vmem [shape: f32[1,32], index: 8, kind: input, shape index: {}]
  %s9 = inlined_call_operand.vmem [shape: bf16[32,64], index: 9, kind: input, shape index: {}]
  %s10 = inlined_call_operand.vmem [shape: f32[1,64], index: 10, kind: input, shape index: {}]
  %s11 = inlined_call_operand.vmem [shape: bf16[64,64], index: 11, kind: input, shape index: {}]
  %s12 = inlined_call_operand.vmem [shape: f32[1,64], index: 12, kind: input, shape index: {}]
  %s13 = inlined_call_operand.hbm [shape: bf16[200,128], index: 13, kind: output, shape index: {}]
  %s14 = sld [smem:[#allocation0]]
  $region62: #{tpu_custom_call.1} parent=0
    _
  %s16 = ssub.s32 1, %s14
  %s17 = scalar_select 0, %s16, %s14
  $region1: #{tpu_custom_call.1} parent=0
    #allocation2 [shape = 'u8[53248]{0}', space=vmem, size = 0xd000, scoped, tag = 'output window, operand 0, single buffered']
    #allocation3 [shape = 's32[1]{0}', space=sflag, size = 0x4, scoped, tag = 'scoped memory for tpu_custom_call.1']
    %18 = vsyncpa [#allocation3], 0
    // Predicated region
    $region2: #{tpu_custom_call.1} parent=1 // pred_check
      _
    $region3: #{tpu_custom_call.1} parent=1 // pred_check_branch
      %20 = sbr.rel (0) target = $region5
    $region4: #{tpu_custom_call.1} parent=1 // pred_region
      _
    $region5: #{tpu_custom_call.1} parent=1 // pred_fallthru
      _
    // Predicated region
    $region6: #{tpu_custom_call.1} parent=1 // pred_check
      _
    $region7: #{tpu_custom_call.1} parent=1 // pred_check_branch
      %22 = sbr.rel (0) target = $region9
    $region8: #{tpu_custom_call.1} parent=1 // pred_region
      _
    $region9: #{tpu_custom_call.1} parent=1 // pred_fallthru
      _
    // Predicated region
    $region10: #{tpu_custom_call.1} parent=1 // pred_check
      _
    $region11: #{tpu_custom_call.1} parent=1 // pred_check_branch
      %24 = sbr.rel (0) target = $region13
    $region12: #{tpu_custom_call.1} parent=1 // pred_region
      _
    $region13: #{tpu_custom_call.1} parent=1 // pred_fallthru
      _
    // Predicated region
    $region14: #{tpu_custom_call.1} parent=1 // pred_check
      _
    $region15: #{tpu_custom_call.1} parent=1 // pred_check_branch
      %26 = sbr.rel (0) target = $region17
    $region16: #{tpu_custom_call.1} parent=1 // pred_region
      _
    $region17: #{tpu_custom_call.1} parent=1 // pred_fallthru
      _
    // Predicated region
    $region18: #{tpu_custom_call.1} parent=1 // pred_check
      _
    $region19: #{tpu_custom_call.1} parent=1 // pred_check_branch
      %28 = sbr.rel (0) target = $region21
    $region20: #{tpu_custom_call.1} parent=1 // pred_region
      _
    $region21: #{tpu_custom_call.1} parent=1 // pred_fallthru
      _
    // Predicated region
    $region22: #{tpu_custom_call.1} parent=1 // pred_check
      _
    $region23: #{tpu_custom_call.1} parent=1 // pred_check_branch
      %30 = sbr.rel (0) target = $region25
    $region24: #{tpu_custom_call.1} parent=1 // pred_region
      _
    $region25: #{tpu_custom_call.1} parent=1 // pred_fallthru
      _
    // Predicated region
    $region26: #{tpu_custom_call.1} parent=1 // pred_check
      _
    $region27: #{tpu_custom_call.1} parent=1 // pred_check_branch
      %32 = sbr.rel (0) target = $region29
    $region28: #{tpu_custom_call.1} parent=1 // pred_region
      _
    $region29: #{tpu_custom_call.1} parent=1 // pred_fallthru
      _
    // Predicated region
    $region30: #{tpu_custom_call.1} parent=1 // pred_check
      _
    $region31: #{tpu_custom_call.1} parent=1 // pred_check_branch
      %34 = sbr.rel (0) target = $region33
    $region32: #{tpu_custom_call.1} parent=1 // pred_region
      _
    $region33: #{tpu_custom_call.1} parent=1 // pred_fallthru
      _
    // Predicated region
    $region34: #{tpu_custom_call.1} parent=1 // pred_check
      _
    $region35: #{tpu_custom_call.1} parent=1 // pred_check_branch
      %36 = sbr.rel (0) target = $region37
    $region36: #{tpu_custom_call.1} parent=1 // pred_region
      _
    $region37: #{tpu_custom_call.1} parent=1 // pred_fallthru
      _
    // Predicated region
    $region38: #{tpu_custom_call.1} parent=1 // pred_check
      _
    $region39: #{tpu_custom_call.1} parent=1 // pred_check_branch
      %38 = sbr.rel (0) target = $region41
    $region40: #{tpu_custom_call.1} parent=1 // pred_region
      _
    $region41: #{tpu_custom_call.1} parent=1 // pred_fallthru
      _
    // Predicated region
    $region42: #{tpu_custom_call.1} parent=1 // pred_check
      _
    $region43: #{tpu_custom_call.1} parent=1 // pred_check_branch
      %40 = sbr.rel (0) target = $region45
    $region44: #{tpu_custom_call.1} parent=1 // pred_region
      _
    $region45: #{tpu_custom_call.1} parent=1 // pred_fallthru
      _
    // Predicated region
    $region46: #{tpu_custom_call.1} parent=1 // pred_check
      _
    $region47: #{tpu_custom_call.1} parent=1 // pred_check_branch
      %42 = sbr.rel (0) target = $region49
    $region48: #{tpu_custom_call.1} parent=1 // pred_region
      _
    $region49: #{tpu_custom_call.1} parent=1 // pred_fallthru
      _
    // Predicated region
    $region50: #{tpu_custom_call.1} parent=1 // pred_check
      _
    $region51: #{tpu_custom_call.1} parent=1 // pred_check_branch
      %44 = sbr.rel (0) target = $region53
    $region52: #{tpu_custom_call.1} parent=1 // pred_region
      _
    $region53: #{tpu_custom_call.1} parent=1 // pred_fallthru
      _
    %v46 = vld [vmem:[%s0] sm:$0xff]
    %v47 = vld [vmem:[%s0 + $0x8] sm:$0xff]
    %v48 = vld [vmem:[%s0 + $0x10] sm:$0xff]
    %v49 = vld [vmem:[%s0 + $0x18] sm:$0xff]
    %v50 = vld [vmem:[%s0 + $0x20] sm:$0xff]
    %v51 = vld [vmem:[%s0 + $0x28] sm:$0xff]
    %v52 = vld [vmem:[%s0 + $0x30] sm:$0xff]
    %v53 = vld [vmem:[%s0 + $0x38] sm:$0xff]
    %v54 = vld [vmem:[%s0 + $0x40] sm:$0xff]
    %v55 = vld [vmem:[%s0 + $0x48] sm:$0xff]
    %v56 = vld [vmem:[%s0 + $0x50] sm:$0xff]
    %v57 = vld [vmem:[%s0 + $0x58] sm:$0xff]
    %v58 = vld [vmem:[%s0 + $0x60] sm:$0xff]
    %v59 = vld [vmem:[%s0 + $0x68] sm:$0xff]
    %v60 = vld [vmem:[%s0 + $0x70] sm:$0xff]
    %v61 = vld [vmem:[%s0 + $0x78] sm:$0xff]
    %v62 = vld [vmem:[%s0 + $0x80] sm:$0xff]
    %v63 = vld [vmem:[%s0 + $0x88] sm:$0xff]
    %v64 = vld [vmem:[%s0 + $0x90] sm:$0xff]
    %v65 = vld [vmem:[%s0 + $0x98] sm:$0xff]
    %v66 = vld [vmem:[%s0 + $0xa0] sm:$0xff]
    %v67 = vld [vmem:[%s0 + $0xa8] sm:$0xff]
    %v68 = vld [vmem:[%s0 + $0xb0] sm:$0xff]
    %v69 = vld [vmem:[%s0 + $0xb8] sm:$0xff]
    %v70 = vld [vmem:[%s0 + $0xc0] sm:$0xff]
    %v71 = vld [vmem:[%s0 + $0xc8] sm:$0xff]
    %v72 = vpack.c.bf16 %v47, %v46
    %v73 = vpack.c.bf16 %v49, %v48
    %v74 = vpack.c.bf16 %v51, %v50
    %v75 = vpack.c.bf16 %v53, %v52
    %v76 = vpack.c.bf16 %v55, %v54
    %v77 = vpack.c.bf16 %v57, %v56
    %v78 = vpack.c.bf16 %v59, %v58
    %v79 = vpack.c.bf16 %v61, %v60
    %v80 = vpack.c.bf16 %v63, %v62
    %v81 = vpack.c.bf16 %v65, %v64
    %v82 = vpack.c.bf16 %v67, %v66
    %v83 = vpack.c.bf16 %v69, %v68
    %v84 = vpack.c.bf16 %v71, %v70
    %v85 = vld [vmem:[%s1] sm:$0xf]
    %v86 = vld [vmem:[%s1 + $0x4] sm:$0xf]
    %v87 = vld [vmem:[%s1 + $0x8] sm:$0xf]
    %v88 = vld [vmem:[%s1 + $0xc] sm:$0xf]
    %v89 = vld [vmem:[%s1 + $0x10] sm:$0xf]
    %v90 = vld [vmem:[%s1 + $0x14] sm:$0xf]
    %v91 = vld [vmem:[%s1 + $0x18] sm:$0xf]
    %v92 = vld [vmem:[%s1 + $0x1c] sm:$0xf]
    %v93 = vld [vmem:[%s2] sm:$0x1]
    %v95 = vlaneseq
    %v96 = vshrl.u32 %v95, 7
    %v97 = vsub.s32 0, %v96
    %v98 = vrot.slane %v93, %v97
    %v108 = vunpack.c.l.b16 %v85
    %v109 = vunpack.c.l.b16 %v86
    %v110 = vunpack.c.l.b16 %v87
    %v111 = vunpack.c.l.b16 %v88
    %v112 = vunpack.c.l.b16 %v89
    %v113 = vunpack.c.l.b16 %v90
    %v114 = vunpack.c.l.b16 %v91
    %v115 = vunpack.c.l.b16 %v92
    %v116 = vpack.c.b16 %v109, %v108
    %v117 = vpack.c.b16 %v111, %v110
    %v118 = vpack.c.b16 %v113, %v112
    %v119 = vpack.c.b16 %v115, %v114
    %vm124 = vcmask 523264
    %v126 = vsel %vm124, %v72, 0
    %v129 = vsel %vm124, %v73, 0
    %v132 = vsel %vm124, %v74, 0
    %v135 = vsel %vm124, %v75, 0
    %v138 = vsel %vm124, %v76, 0
    %v141 = vsel %vm124, %v77, 0
    %v144 = vsel %vm124, %v78, 0
    %v147 = vsel %vm124, %v79, 0
    %v150 = vsel %vm124, %v80, 0
    %v153 = vsel %vm124, %v81, 0
    %v156 = vsel %vm124, %v82, 0
    %v159 = vsel %vm124, %v83, 0
    %v162 = vsel %vm124, %v84, 0
    %164 = vmatprep.subr.bf16.mxu0 0
    %165 = vmatpush1.bf16.msra.mxu0 %v116
    %166 = vmatprep.subr.bf16.mxu0 0
    %167 = vmatpush1.bf16.msra.mxu0 %v117
    %168 = vmatprep.subr.bf16.mxu0 0
    %169 = vmatpush1.bf16.msra.mxu0 %v118
    %170 = vmatprep.subr.bf16.mxu0 0
    %171 = vmatpush1.bf16.msra.mxu0 %v119
    %172 = vmatprep.subr.bf16.mxu0 0
    %173 = vmatpush1.bf16.msra.mxu0 0
    %174 = vmatprep.subr.bf16.mxu0 0
    %175 = vmatpush1.bf16.msra.mxu0 0
    %176 = vmatprep.subr.bf16.mxu0 0
    %177 = vmatpush1.bf16.msra.mxu0 0
    %178 = vmatprep.subr.bf16.mxu0 0
    %179 = vmatpush1.bf16.msra.mxu0 0
    %180 = vmatprep.subr.bf16.mxu0 0
    %181 = vmatpush1.bf16.msra.mxu0 0
    %182 = vmatprep.subr.bf16.mxu0 0
    %183 = vmatpush1.bf16.msra.mxu0 0
    %184 = vmatprep.subr.bf16.mxu0 0
    %185 = vmatpush1.bf16.msra.mxu0 0
    %186 = vmatprep.subr.bf16.mxu0 0
    %187 = vmatpush1.bf16.msra.mxu0 0
    %188 = vmatprep.subr.bf16.mxu0 0
    %189 = vmatpush1.bf16.msra.mxu0 0
    %190 = vmatprep.subr.bf16.mxu0 0
    %191 = vmatpush1.bf16.msra.mxu0 0
    %192 = vmatprep.subr.bf16.mxu0 0
    %193 = vmatpush1.bf16.msra.mxu0 0
    %194 = vmatprep.subr.bf16.mxu0 0
    %195 = vmatpush1.bf16.msra.mxu0 0
    %196 = vmatprep.mubr.bf16.mxu0 0
    %197 = vmatmul.mubr.bf16.gmra.mrb[0].mxu0 %v126
    %v198 = vpop.f32.mrb[0].mxu0
    %v199 = vadd.f32 %v98, %v198
    %v200 = vpop.f32.mrb[0].mxu0
    %v201 = vpop.f32.mrb[0].mxu0
    %v202 = vadd.f32 %v98, %v201
    %v203 = vpop.f32.mrb[0].mxu0
    %204 = vmatprep.mubr.bf16.mxu0 0
    %205 = vmatmul.mubr.bf16.gmra.mrb[0].mxu0 %v129
    %v206 = vpop.f32.mrb[0].mxu0
    %v207 = vadd.f32 %v98, %v206
    %v208 = vpop.f32.mrb[0].mxu0
    %v209 = vpop.f32.mrb[0].mxu0
    %v210 = vadd.f32 %v98, %v209
    %v211 = vpop.f32.mrb[0].mxu0
    %212 = vmatprep.mubr.bf16.mxu0 0
    %213 = vmatmul.mubr.bf16.gmra.mrb[0].mxu0 %v132
    %v214 = vpop.f32.mrb[0].mxu0
    %v215 = vadd.f32 %v98, %v214
    %v216 = vpop.f32.mrb[0].mxu0
    %v217 = vpop.f32.mrb[0].mxu0
    %v218 = vadd.f32 %v98, %v217
    %v219 = vpop.f32.mrb[0].mxu0
    %220 = vmatprep.mubr.bf16.mxu0 0
    %221 = vmatmul.mubr.bf16.gmra.mrb[0].mxu0 %v135
    %v222 = vpop.f32.mrb[0].mxu0
    %v223 = vadd.f32 %v98, %v222
    %v224 = vpop.f32.mrb[0].mxu0
    %v225 = vpop.f32.mrb[0].mxu0
    %v226 = vadd.f32 %v98, %v225
    %v227 = vpop.f32.mrb[0].mxu0
    %228 = vmatprep.mubr.bf16.mxu0 0
    %229 = vmatmul.mubr.bf16.gmra.mrb[0].mxu0 %v138
    %v230 = vpop.f32.mrb[0].mxu0
    %v231 = vadd.f32 %v98, %v230
    %v232 = vpop.f32.mrb[0].mxu0
    %v233 = vpop.f32.mrb[0].mxu0
    %v234 = vadd.f32 %v98, %v233
    %v235 = vpop.f32.mrb[0].mxu0
    %236 = vmatprep.mubr.bf16.mxu0 0
    %237 = vmatmul.mubr.bf16.gmra.mrb[0].mxu0 %v141
    %v238 = vpop.f32.mrb[0].mxu0
    %v239 = vadd.f32 %v98, %v238
    %v240 = vpop.f32.mrb[0].mxu0
    %v241 = vpop.f32.mrb[0].mxu0
    %v242 = vadd.f32 %v98, %v241
    %v243 = vpop.f32.mrb[0].mxu0
    %244 = vmatprep.mubr.bf16.mxu0 0
    %245 = vmatmul.mubr.bf16.gmra.mrb[0].mxu0 %v144
    %v246 = vpop.f32.mrb[0].mxu0
    %v247 = vadd.f32 %v98, %v246
    %v248 = vpop.f32.mrb[0].mxu0
    %v249 = vpop.f32.mrb[0].mxu0
    %v250 = vadd.f32 %v98, %v249
    %v251 = vpop.f32.mrb[0].mxu0
    %252 = vmatprep.mubr.bf16.mxu0 0
    %253 = vmatmul.mubr.bf16.gmra.mrb[0].mxu0 %v147
    %v254 = vpop.f32.mrb[0].mxu0
    %v255 = vadd.f32 %v98, %v254
    %v256 = vpop.f32.mrb[0].mxu0
    %v257 = vpop.f32.mrb[0].mxu0
    %v258 = vadd.f32 %v98, %v257
    %v259 = vpop.f32.mrb[0].mxu0
    %260 = vmatprep.mubr.bf16.mxu0 0
    %261 = vmatmul.mubr.bf16.gmra.mrb[0].mxu0 %v150
    %v262 = vpop.f32.mrb[0].mxu0
    %v263 = vadd.f32 %v98, %v262
    %v264 = vpop.f32.mrb[0].mxu0
    %v265 = vpop.f32.mrb[0].mxu0
    %v266 = vadd.f32 %v98, %v265
    %v267 = vpop.f32.mrb[0].mxu0
    %268 = vmatprep.mubr.bf16.mxu0 0
    %269 = vmatmul.mubr.bf16.gmra.mrb[0].mxu0 %v153
    %v270 = vpop.f32.mrb[0].mxu0
    %v271 = vadd.f32 %v98, %v270
    %v272 = vpop.f32.mrb[0].mxu0
    %v273 = vpop.f32.mrb[0].mxu0
    %v274 = vadd.f32 %v98, %v273
    %v275 = vpop.f32.mrb[0].mxu0
    %276 = vmatprep.mubr.bf16.mxu0 0
    %277 = vmatmul.mubr.bf16.gmra.mrb[0].mxu0 %v156
    %v278 = vpop.f32.mrb[0].mxu0
    %v279 = vadd.f32 %v98, %v278
    %v280 = vpop.f32.mrb[0].mxu0
    %v281 = vpop.f32.mrb[0].mxu0
    %v282 = vadd.f32 %v98, %v281
    %v283 = vpop.f32.mrb[0].mxu0
    %284 = vmatprep.mubr.bf16.mxu0 0
    %285 = vmatmul.mubr.bf16.gmra.mrb[0].mxu0 %v159
    %v286 = vpop.f32.mrb[0].mxu0
    %v287 = vadd.f32 %v98, %v286
    %v288 = vpop.f32.mrb[0].mxu0
    %v289 = vpop.f32.mrb[0].mxu0
    %v290 = vadd.f32 %v98, %v289
    %v291 = vpop.f32.mrb[0].mxu0
    %292 = vmatprep.mubr.bf16.mxu0 0
    %293 = vmatmul.mubr.bf16.gmra.mrb[0].mxu0 %v162
    %v294 = vpop.f32.mrb[0].mxu0
    %v295 = vadd.f32 %v98, %v294
    %v296 = vpop.f32.mrb[0].mxu0
    %v297 = vpop.f32.mrb[0].mxu0
    %v298 = vadd.f32 %v98, %v297
    %v299 = vpop.f32.mrb[0].mxu0
    %300 = vdwg.mxu0
    %v301 = vmax.f32 %v199, 0.0
    %v302 = vmax.f32 %v202, 0.0
    %v303 = vmax.f32 %v207, 0.0
    %v304 = vmax.f32 %v210, 0.0
    %v305 = vmax.f32 %v215, 0.0
    %v306 = vmax.f32 %v218, 0.0
    %v307 = vmax.f32 %v223, 0.0
    %v308 = vmax.f32 %v226, 0.0
    %v309 = vmax.f32 %v231, 0.0
    %v310 = vmax.f32 %v234, 0.0
    %v311 = vmax.f32 %v239, 0.0
    %v312 = vmax.f32 %v242, 0.0
    %v313 = vmax.f32 %v247, 0.0
    %v314 = vmax.f32 %v250, 0.0
    %v315 = vmax.f32 %v255, 0.0
    %v316 = vmax.f32 %v258, 0.0
    %v317 = vmax.f32 %v263, 0.0
    %v318 = vmax.f32 %v266, 0.0
    %v319 = vmax.f32 %v271, 0.0
    %v320 = vmax.f32 %v274, 0.0
    %v321 = vmax.f32 %v279, 0.0
    %v322 = vmax.f32 %v282, 0.0
    %v323 = vmax.f32 %v287, 0.0
    %v324 = vmax.f32 %v290, 0.0
    %v325 = vmax.f32 %v295, 0.0
    %v326 = vmax.f32 %v298, 0.0
    %v327 = vpack.c.bf16 %v302, %v301
    %v328 = vpack.c.bf16 %v304, %v303
    %v329 = vpack.c.bf16 %v306, %v305
    %v330 = vpack.c.bf16 %v308, %v307
    %v331 = vpack.c.bf16 %v310, %v309
    %v332 = vpack.c.bf16 %v312, %v311
    %v333 = vpack.c.bf16 %v314, %v313
    %v334 = vpack.c.bf16 %v316, %v315
    %v335 = vpack.c.bf16 %v318, %v317
    %v336 = vpack.c.bf16 %v320, %v319
    %v337 = vpack.c.bf16 %v322, %v321
    %v338 = vpack.c.bf16 %v324, %v323
    %v339 = vpack.c.bf16 %v326, %v325
    %v340 = vld [vmem:[%s3] sm:$0xf]
    %v341 = vld [vmem:[%s3 + $0x4] sm:$0xf]
    %v342 = vld [vmem:[%s3 + $0x8] sm:$0xf]
    %v343 = vld [vmem:[%s3 + $0xc] sm:$0xf]
    %v344 = vld [vmem:[%s3 + $0x10] sm:$0xf]
    %v345 = vld [vmem:[%s3 + $0x14] sm:$0xf]
    %v346 = vld [vmem:[%s3 + $0x18] sm:$0xf]
    %v347 = vld [vmem:[%s3 + $0x1c] sm:$0xf]
    %v348 = vld [vmem:[%s4] sm:$0x1]
    %v350 = vlaneseq
    %v351 = vshrl.u32 %v350, 7
    %v352 = vsub.s32 0, %v351
    %v353 = vrot.slane %v348, %v352
    %v363 = vunpack.c.l.b16 %v340
    %v364 = vunpack.c.l.b16 %v341
    %v365 = vunpack.c.l.b16 %v342
    %v366 = vunpack.c.l.b16 %v343
    %v367 = vunpack.c.l.b16 %v344
    %v368 = vunpack.c.l.b16 %v345
    %v369 = vunpack.c.l.b16 %v346
    %v370 = vunpack.c.l.b16 %v347
    %v371 = vpack.c.b16 %v364, %v363
    %v372 = vpack.c.b16 %v366, %v365
    %v373 = vpack.c.b16 %v368, %v367
    %v374 = vpack.c.b16 %v370, %v369
    %v380 = vsel %vm124, %v327, 0
    %v383 = vsel %vm124, %v328, 0
    %v386 = vsel %vm124, %v329, 0
    %v389 = vsel %vm124, %v330, 0
    %v392 = vsel %vm124, %v331, 0
    %v395 = vsel %vm124, %v332, 0
    %v398 = vsel %vm124, %v333, 0
    %v401 = vsel %vm124, %v334, 0
    %v404 = vsel %vm124, %v335, 0
    %v407 = vsel %vm124, %v336, 0
    %v410 = vsel %vm124, %v337, 0
    %v413 = vsel %vm124, %v338, 0
    %v416 = vsel %vm124, %v339, 0
    %418 = vmatprep.subr.bf16.mxu0 0
    %419 = vmatpush1.bf16.msra.mxu0 %v371
    %420 = vmatprep.subr.bf16.mxu0 0
    %421 = vmatpush1.bf16.msra.mxu0 %v372
    %422 = vmatprep.subr.bf16.mxu0 0
    %423 = vmatpush1.bf16.msra.mxu0 %v373
    %424 = vmatprep.subr.bf16.mxu0 0
    %425 = vmatpush1.bf16.msra.mxu0 %v374
    %426 = vmatprep.subr.bf16.mxu0 0
    %427 = vmatpush1.bf16.msra.mxu0 0
    %428 = vmatprep.subr.bf16.mxu0 0
    %429 = vmatpush1.bf16.msra.mxu0 0
    %430 = vmatprep.subr.bf16.mxu0 0
    %431 = vmatpush1.bf16.msra.mxu0 0
    %432 = vmatprep.subr.bf16.mxu0 0
    %433 = vmatpush1.bf16.msra.mxu0 0
    %434 = vmatprep.subr.bf16.mxu0 0
    %435 = vmatpush1.bf16.msra.mxu0 0
    %436 = vmatprep.subr.bf16.mxu0 0
    %437 = vmatpush1.bf16.msra.mxu0 0
    %438 = vmatprep.subr.bf16.mxu0 0
    %439 = vmatpush1.bf16.msra.mxu0 0
    %440 = vmatprep.subr.bf16.mxu0 0
    %441 = vmatpush1.bf16.msra.mxu0 0
    %442 = vmatprep.subr.bf16.mxu0 0
    %443 = vmatpush1.bf16.msra.mxu0 0
    %444 = vmatprep.subr.bf16.mxu0 0
    %445 = vmatpush1.bf16.msra.mxu0 0
    %446 = vmatprep.subr.bf16.mxu0 0
    %447 = vmatpush1.bf16.msra.mxu0 0
    %448 = vmatprep.subr.bf16.mxu0 0
    %449 = vmatpush1.bf16.msra.mxu0 0
    %450 = vmatprep.mubr.bf16.mxu0 0
    %451 = vmatmul.mubr.bf16.gmra.mrb[0].mxu0 %v380
    %v452 = vpop.f32.mrb[0].mxu0
    %v453 = vadd.f32 %v353, %v452
    %v454 = vpop.f32.mrb[0].mxu0
    %v455 = vpop.f32.mrb[0].mxu0
    %v456 = vadd.f32 %v353, %v455
    %v457 = vpop.f32.mrb[0].mxu0
    %458 = vmatprep.mubr.bf16.mxu0 0
    %459 = vmatmul.mubr.bf16.gmra.mrb[0].mxu0 %v383
    %v460 = vpop.f32.mrb[0].mxu0
    %v461 = vadd.f32 %v353, %v460
    %v462 = vpop.f32.mrb[0].mxu0
    %v463 = vpop.f32.mrb[0].mxu0
    %v464 = vadd.f32 %v353, %v463
    %v465 = vpop.f32.mrb[0].mxu0
    %466 = vmatprep.mubr.bf16.mxu0 0
    %467 = vmatmul.mubr.bf16.gmra.mrb[0].mxu0 %v386
    %v468 = vpop.f32.mrb[0].mxu0
    %v469 = vadd.f32 %v353, %v468
    %v470 = vpop.f32.mrb[0].mxu0
    %v471 = vpop.f32.mrb[0].mxu0
    %v472 = vadd.f32 %v353, %v471
    %v473 = vpop.f32.mrb[0].mxu0
    %474 = vmatprep.mubr.bf16.mxu0 0
    %475 = vmatmul.mubr.bf16.gmra.mrb[0].mxu0 %v389
    %v476 = vpop.f32.mrb[0].mxu0
    %v477 = vadd.f32 %v353, %v476
    %v478 = vpop.f32.mrb[0].mxu0
    %v479 = vpop.f32.mrb[0].mxu0
    %v480 = vadd.f32 %v353, %v479
    %v481 = vpop.f32.mrb[0].mxu0
    %482 = vmatprep.mubr.bf16.mxu0 0
    %483 = vmatmul.mubr.bf16.gmra.mrb[0].mxu0 %v392
    %v484 = vpop.f32.mrb[0].mxu0
    %v485 = vadd.f32 %v353, %v484
    %v486 = vpop.f32.mrb[0].mxu0
    %v487 = vpop.f32.mrb[0].mxu0
    %v488 = vadd.f32 %v353, %v487
    %v489 = vpop.f32.mrb[0].mxu0
    %490 = vmatprep.mubr.bf16.mxu0 0
    %491 = vmatmul.mubr.bf16.gmra.mrb[0].mxu0 %v395
    %v492 = vpop.f32.mrb[0].mxu0
    %v493 = vadd.f32 %v353, %v492
    %v494 = vpop.f32.mrb[0].mxu0
    %v495 = vpop.f32.mrb[0].mxu0
    %v496 = vadd.f32 %v353, %v495
    %v497 = vpop.f32.mrb[0].mxu0
    %498 = vmatprep.mubr.bf16.mxu0 0
    %499 = vmatmul.mubr.bf16.gmra.mrb[0].mxu0 %v398
    %v500 = vpop.f32.mrb[0].mxu0
    %v501 = vadd.f32 %v353, %v500
    %v502 = vpop.f32.mrb[0].mxu0
    %v503 = vpop.f32.mrb[0].mxu0
    %v504 = vadd.f32 %v353, %v503
    %v505 = vpop.f32.mrb[0].mxu0
    %506 = vmatprep.mubr.bf16.mxu0 0
    %507 = vmatmul.mubr.bf16.gmra.mrb[0].mxu0 %v401
    %v508 = vpop.f32.mrb[0].mxu0
    %v509 = vadd.f32 %v353, %v508
    %v510 = vpop.f32.mrb[0].mxu0
    %v511 = vpop.f32.mrb[0].mxu0
    %v512 = vadd.f32 %v353, %v511
    %v513 = vpop.f32.mrb[0].mxu0
    %514 = vmatprep.mubr.bf16.mxu0 0
    %515 = vmatmul.mubr.bf16.gmra.mrb[0].mxu0 %v404
    %v516 = vpop.f32.mrb[0].mxu0
    %v517 = vadd.f32 %v353, %v516
    %v518 = vpop.f32.mrb[0].mxu0
    %v519 = vpop.f32.mrb[0].mxu0
    %v520 = vadd.f32 %v353, %v519
    %v521 = vpop.f32.mrb[0].mxu0
    %522 = vmatprep.mubr.bf16.mxu0 0
    %523 = vmatmul.mubr.bf16.gmra.mrb[0].mxu0 %v407
    %v524 = vpop.f32.mrb[0].mxu0
    %v525 = vadd.f32 %v353, %v524
    %v526 = vpop.f32.mrb[0].mxu0
    %v527 = vpop.f32.mrb[0].mxu0
    %v528 = vadd.f32 %v353, %v527
    %v529 = vpop.f32.mrb[0].mxu0
    %530 = vmatprep.mubr.bf16.mxu0 0
    %531 = vmatmul.mubr.bf16.gmra.mrb[0].mxu0 %v410
    %v532 = vpop.f32.mrb[0].mxu0
    %v533 = vadd.f32 %v353, %v532
    %v534 = vpop.f32.mrb[0].mxu0
    %v535 = vpop.f32.mrb[0].mxu0
    %v536 = vadd.f32 %v353, %v535
    %v537 = vpop.f32.mrb[0].mxu0
    %538 = vmatprep.mubr.bf16.mxu0 0
    %539 = vmatmul.mubr.bf16.gmra.mrb[0].mxu0 %v413
    %v540 = vpop.f32.mrb[0].mxu0
    %v541 = vadd.f32 %v353, %v540
    %v542 = vpop.f32.mrb[0].mxu0
    %v543 = vpop.f32.mrb[0].mxu0
    %v544 = vadd.f32 %v353, %v543
    %v545 = vpop.f32.mrb[0].mxu0
    %546 = vmatprep.mubr.bf16.mxu0 0
    %547 = vmatmul.mubr.bf16.gmra.mrb[0].mxu0 %v416
    %v548 = vpop.f32.mrb[0].mxu0
    %v549 = vadd.f32 %v353, %v548
    %v550 = vpop.f32.mrb[0].mxu0
    %v551 = vpop.f32.mrb[0].mxu0
    %v552 = vadd.f32 %v353, %v551
    %v553 = vpop.f32.mrb[0].mxu0
    %554 = vdwg.mxu0
    %v555 = vmax.f32 %v453, 0.0
    %v556 = vmax.f32 %v456, 0.0
    %v557 = vmax.f32 %v461, 0.0
    %v558 = vmax.f32 %v464, 0.0
    %v559 = vmax.f32 %v469, 0.0
    %v560 = vmax.f32 %v472, 0.0
    %v561 = vmax.f32 %v477, 0.0
    %v562 = vmax.f32 %v480, 0.0
    %v563 = vmax.f32 %v485, 0.0
    %v564 = vmax.f32 %v488, 0.0
    %v565 = vmax.f32 %v493, 0.0
    %v566 = vmax.f32 %v496, 0.0
    %v567 = vmax.f32 %v501, 0.0
    %v568 = vmax.f32 %v504, 0.0
    %v569 = vmax.f32 %v509, 0.0
    %v570 = vmax.f32 %v512, 0.0
    %v571 = vmax.f32 %v517, 0.0
    %v572 = vmax.f32 %v520, 0.0
    %v573 = vmax.f32 %v525, 0.0
    %v574 = vmax.f32 %v528, 0.0
    %v575 = vmax.f32 %v533, 0.0
    %v576 = vmax.f32 %v536, 0.0
    %v577 = vmax.f32 %v541, 0.0
    %v578 = vmax.f32 %v544, 0.0
    %v579 = vmax.f32 %v549, 0.0
    %v580 = vmax.f32 %v552, 0.0
    %v581 = vpack.c.bf16 %v556, %v555
    %v582 = vpack.c.bf16 %v558, %v557
    %v583 = vpack.c.bf16 %v560, %v559
    %v584 = vpack.c.bf16 %v562, %v561
    %v585 = vpack.c.bf16 %v564, %v563
    %v586 = vpack.c.bf16 %v566, %v565
    %v587 = vpack.c.bf16 %v568, %v567
    %v588 = vpack.c.bf16 %v570, %v569
    %v589 = vpack.c.bf16 %v572, %v571
    %v590 = vpack.c.bf16 %v574, %v573
    %v591 = vpack.c.bf16 %v576, %v575
    %v592 = vpack.c.bf16 %v578, %v577
    %v593 = vpack.c.bf16 %v580, %v579
    %v594 = vld [vmem:[%s5] sm:$0xf]
    %v595 = vld [vmem:[%s5 + $0x4] sm:$0xf]
    %v596 = vld [vmem:[%s5 + $0x8] sm:$0xf]
    %v597 = vld [vmem:[%s5 + $0xc] sm:$0xf]
    %v598 = vld [vmem:[%s6] sm:$0x1]
    %v600 = vlaneseq
    %v601 = vshrl.u32 %v600, 7
    %v602 = vsub.s32 0, %v601
    %v603 = vrot.slane %v598, %v602
    %v609 = vunpack.c.l.b16 %v594
    %v610 = vunpack.c.l.b16 %v595
    %v611 = vunpack.c.l.b16 %v596
    %v612 = vunpack.c.l.b16 %v597
    %v613 = vpack.c.b16 %v610, %v609
    %v614 = vpack.c.b16 %v612, %v611
    %vm617 = vcmask 261120
    %v619 = vsel %vm617, %v581, 0
    %v622 = vsel %vm617, %v582, 0
    %v625 = vsel %vm617, %v583, 0
    %v628 = vsel %vm617, %v584, 0
    %v631 = vsel %vm617, %v585, 0
    %v634 = vsel %vm617, %v586, 0
    %v637 = vsel %vm617, %v587, 0
    %v640 = vsel %vm617, %v588, 0
    %v643 = vsel %vm617, %v589, 0
    %v646 = vsel %vm617, %v590, 0
    %v649 = vsel %vm617, %v591, 0
    %v652 = vsel %vm617, %v592, 0
    %v655 = vsel %vm617, %v593, 0
    %657 = vmatprep.subr.bf16.mxu0 0
    %658 = vmatpush1.bf16.msra.mxu0 %v613
    %659 = vmatprep.subr.bf16.mxu0 0
    %660 = vmatpush1.bf16.msra.mxu0 %v614
    %661 = vmatprep.subr.bf16.mxu0 0
    %662 = vmatpush1.bf16.msra.mxu0 0
    %663 = vmatprep.subr.bf16.mxu0 0
    %664 = vmatpush1.bf16.msra.mxu0 0
    %665 = vmatprep.subr.bf16.mxu0 0
    %666 = vmatpush1.bf16.msra.mxu0 0
    %667 = vmatprep.subr.bf16.mxu0 0
    %668 = vmatpush1.bf16.msra.mxu0 0
    %669 = vmatprep.subr.bf16.mxu0 0
    %670 = vmatpush1.bf16.msra.mxu0 0
    %671 = vmatprep.subr.bf16.mxu0 0
    %672 = vmatpush1.bf16.msra.mxu0 0
    %673 = vmatprep.subr.bf16.mxu0 0
    %674 = vmatpush1.bf16.msra.mxu0 0
    %675 = vmatprep.subr.bf16.mxu0 0
    %676 = vmatpush1.bf16.msra.mxu0 0
    %677 = vmatprep.subr.bf16.mxu0 0
    %678 = vmatpush1.bf16.msra.mxu0 0
    %679 = vmatprep.subr.bf16.mxu0 0
    %680 = vmatpush1.bf16.msra.mxu0 0
    %681 = vmatprep.subr.bf16.mxu0 0
    %682 = vmatpush1.bf16.msra.mxu0 0
    %683 = vmatprep.subr.bf16.mxu0 0
    %684 = vmatpush1.bf16.msra.mxu0 0
    %685 = vmatprep.subr.bf16.mxu0 0
    %686 = vmatpush1.bf16.msra.mxu0 0
    %687 = vmatprep.subr.bf16.mxu0 0
    %688 = vmatpush1.bf16.msra.mxu0 0
    %689 = vmatprep.mubr.bf16.mxu0 0
    %690 = vmatmul.mubr.bf16.gmra.mrb[0].mxu0 %v619
    %v691 = vpop.f32.mrb[0].mxu0
    %v692 = vadd.f32 %v603, %v691
    %v693 = vpop.f32.mrb[0].mxu0
    %v694 = vpop.f32.mrb[0].mxu0
    %v695 = vadd.f32 %v603, %v694
    %v696 = vpop.f32.mrb[0].mxu0
    %697 = vmatprep.mubr.bf16.mxu0 0
    %698 = vmatmul.mubr.bf16.gmra.mrb[0].mxu0 %v622
    %v699 = vpop.f32.mrb[0].mxu0
    %v700 = vadd.f32 %v603, %v699
    %v701 = vpop.f32.mrb[0].mxu0
    %v702 = vpop.f32.mrb[0].mxu0
    %v703 = vadd.f32 %v603, %v702
    %v704 = vpop.f32.mrb[0].mxu0
    %705 = vmatprep.mubr.bf16.mxu0 0
    %706 = vmatmul.mubr.bf16.gmra.mrb[0].mxu0 %v625
    %v707 = vpop.f32.mrb[0].mxu0
    %v708 = vadd.f32 %v603, %v707
    %v709 = vpop.f32.mrb[0].mxu0
    %v710 = vpop.f32.mrb[0].mxu0
    %v711 = vadd.f32 %v603, %v710
    %v712 = vpop.f32.mrb[0].mxu0
    %713 = vmatprep.mubr.bf16.mxu0 0
    %714 = vmatmul.mubr.bf16.gmra.mrb[0].mxu0 %v628
    %v715 = vpop.f32.mrb[0].mxu0
    %v716 = vadd.f32 %v603, %v715
    %v717 = vpop.f32.mrb[0].mxu0
    %v718 = vpop.f32.mrb[0].mxu0
    %v719 = vadd.f32 %v603, %v718
    %v720 = vpop.f32.mrb[0].mxu0
    %721 = vmatprep.mubr.bf16.mxu0 0
    %722 = vmatmul.mubr.bf16.gmra.mrb[0].mxu0 %v631
    %v723 = vpop.f32.mrb[0].mxu0
    %v724 = vadd.f32 %v603, %v723
    %v725 = vpop.f32.mrb[0].mxu0
    %v726 = vpop.f32.mrb[0].mxu0
    %v727 = vadd.f32 %v603, %v726
    %v728 = vpop.f32.mrb[0].mxu0
    %729 = vmatprep.mubr.bf16.mxu0 0
    %730 = vmatmul.mubr.bf16.gmra.mrb[0].mxu0 %v634
    %v731 = vpop.f32.mrb[0].mxu0
    %v732 = vadd.f32 %v603, %v731
    %v733 = vpop.f32.mrb[0].mxu0
    %v734 = vpop.f32.mrb[0].mxu0
    %v735 = vadd.f32 %v603, %v734
    %v736 = vpop.f32.mrb[0].mxu0
    %737 = vmatprep.mubr.bf16.mxu0 0
    %738 = vmatmul.mubr.bf16.gmra.mrb[0].mxu0 %v637
    %v739 = vpop.f32.mrb[0].mxu0
    %v740 = vadd.f32 %v603, %v739
    %v741 = vpop.f32.mrb[0].mxu0
    %v742 = vpop.f32.mrb[0].mxu0
    %v743 = vadd.f32 %v603, %v742
    %v744 = vpop.f32.mrb[0].mxu0
    %745 = vmatprep.mubr.bf16.mxu0 0
    %746 = vmatmul.mubr.bf16.gmra.mrb[0].mxu0 %v640
    %v747 = vpop.f32.mrb[0].mxu0
    %v748 = vadd.f32 %v603, %v747
    %v749 = vpop.f32.mrb[0].mxu0
    %v750 = vpop.f32.mrb[0].mxu0
    %v751 = vadd.f32 %v603, %v750
    %v752 = vpop.f32.mrb[0].mxu0
    %753 = vmatprep.mubr.bf16.mxu0 0
    %754 = vmatmul.mubr.bf16.gmra.mrb[0].mxu0 %v643
    %v755 = vpop.f32.mrb[0].mxu0
    %v756 = vadd.f32 %v603, %v755
    %v757 = vpop.f32.mrb[0].mxu0
    %v758 = vpop.f32.mrb[0].mxu0
    %v759 = vadd.f32 %v603, %v758
    %v760 = vpop.f32.mrb[0].mxu0
    %761 = vmatprep.mubr.bf16.mxu0 0
    %762 = vmatmul.mubr.bf16.gmra.mrb[0].mxu0 %v646
    %v763 = vpop.f32.mrb[0].mxu0
    %v764 = vadd.f32 %v603, %v763
    %v765 = vpop.f32.mrb[0].mxu0
    %v766 = vpop.f32.mrb[0].mxu0
    %v767 = vadd.f32 %v603, %v766
    %v768 = vpop.f32.mrb[0].mxu0
    %769 = vmatprep.mubr.bf16.mxu0 0
    %770 = vmatmul.mubr.bf16.gmra.mrb[0].mxu0 %v649
    %v771 = vpop.f32.mrb[0].mxu0
    %v772 = vadd.f32 %v603, %v771
    %v773 = vpop.f32.mrb[0].mxu0
    %v774 = vpop.f32.mrb[0].mxu0
    %v775 = vadd.f32 %v603, %v774
    %v776 = vpop.f32.mrb[0].mxu0
    %777 = vmatprep.mubr.bf16.mxu0 0
    %778 = vmatmul.mubr.bf16.gmra.mrb[0].mxu0 %v652
    %v779 = vpop.f32.mrb[0].mxu0
    %v780 = vadd.f32 %v603, %v779
    %v781 = vpop.f32.mrb[0].mxu0
    %v782 = vpop.f32.mrb[0].mxu0
    %v783 = vadd.f32 %v603, %v782
    %v784 = vpop.f32.mrb[0].mxu0
    %785 = vmatprep.mubr.bf16.mxu0 0
    %786 = vmatmul.mubr.bf16.gmra.mrb[0].mxu0 %v655
    %v787 = vpop.f32.mrb[0].mxu0
    %v788 = vadd.f32 %v603, %v787
    %v789 = vpop.f32.mrb[0].mxu0
    %v790 = vpop.f32.mrb[0].mxu0
    %v791 = vadd.f32 %v603, %v790
    %v792 = vpop.f32.mrb[0].mxu0
    %793 = vdwg.mxu0
    %v794 = vmax.f32 %v692, 0.0
    %v795 = vmax.f32 %v695, 0.0
    %v796 = vmax.f32 %v700, 0.0
    %v797 = vmax.f32 %v703, 0.0
    %v798 = vmax.f32 %v708, 0.0
    %v799 = vmax.f32 %v711, 0.0
    %v800 = vmax.f32 %v716, 0.0
    %v801 = vmax.f32 %v719, 0.0
    %v802 = vmax.f32 %v724, 0.0
    %v803 = vmax.f32 %v727, 0.0
    %v804 = vmax.f32 %v732, 0.0
    %v805 = vmax.f32 %v735, 0.0
    %v806 = vmax.f32 %v740, 0.0
    %v807 = vmax.f32 %v743, 0.0
    %v808 = vmax.f32 %v748, 0.0
    %v809 = vmax.f32 %v751, 0.0
    %v810 = vmax.f32 %v756, 0.0
    %v811 = vmax.f32 %v759, 0.0
    %v812 = vmax.f32 %v764, 0.0
    %v813 = vmax.f32 %v767, 0.0
    %v814 = vmax.f32 %v772, 0.0
    %v815 = vmax.f32 %v775, 0.0
    %v816 = vmax.f32 %v780, 0.0
    %v817 = vmax.f32 %v783, 0.0
    %v818 = vmax.f32 %v788, 0.0
    %v819 = vmax.f32 %v791, 0.0
    %vm820 = vcmask 64512
    %v821 = vsel %vm820, %v794, -inf
    %822 = vmax.xlane.f32.xlu0 %v821
    %v823 = vpop.xlane.xlu0 %822
    %v824 = vsel %vm820, %v795, -inf
    %825 = vmax.xlane.f32.xlu0 %v824
    %v826 = vpop.xlane.xlu0 %825
    %v827 = vsel %vm820, %v796, -inf
    %828 = vmax.xlane.f32.xlu0 %v827
    %v829 = vpop.xlane.xlu0 %828
    %v830 = vsel %vm820, %v797, -inf
    %831 = vmax.xlane.f32.xlu0 %v830
    %v832 = vpop.xlane.xlu0 %831
    %v833 = vsel %vm820, %v798, -inf
    %834 = vmax.xlane.f32.xlu0 %v833
    %v835 = vpop.xlane.xlu0 %834
    %v836 = vsel %vm820, %v799, -inf
    %837 = vmax.xlane.f32.xlu0 %v836
    %v838 = vpop.xlane.xlu0 %837
    %v839 = vsel %vm820, %v800, -inf
    %840 = vmax.xlane.f32.xlu0 %v839
    %v841 = vpop.xlane.xlu0 %840
    %v842 = vsel %vm820, %v801, -inf
    %843 = vmax.xlane.f32.xlu0 %v842
    %v844 = vpop.xlane.xlu0 %843
    %v845 = vsel %vm820, %v802, -inf
    %846 = vmax.xlane.f32.xlu0 %v845
    %v847 = vpop.xlane.xlu0 %846
    %v848 = vsel %vm820, %v803, -inf
    %849 = vmax.xlane.f32.xlu0 %v848
    %v850 = vpop.xlane.xlu0 %849
    %v851 = vsel %vm820, %v804, -inf
    %852 = vmax.xlane.f32.xlu0 %v851
    %v853 = vpop.xlane.xlu0 %852
    %v854 = vsel %vm820, %v805, -inf
    %855 = vmax.xlane.f32.xlu0 %v854
    %v856 = vpop.xlane.xlu0 %855
    %v857 = vsel %vm820, %v806, -inf
    %858 = vmax.xlane.f32.xlu0 %v857
    %v859 = vpop.xlane.xlu0 %858
    %v860 = vsel %vm820, %v807, -inf
    %861 = vmax.xlane.f32.xlu0 %v860
    %v862 = vpop.xlane.xlu0 %861
    %v863 = vsel %vm820, %v808, -inf
    %864 = vmax.xlane.f32.xlu0 %v863
    %v865 = vpop.xlane.xlu0 %864
    %v866 = vsel %vm820, %v809, -inf
    %867 = vmax.xlane.f32.xlu0 %v866
    %v868 = vpop.xlane.xlu0 %867
    %v869 = vsel %vm820, %v810, -inf
    %870 = vmax.xlane.f32.xlu0 %v869
    %v871 = vpop.xlane.xlu0 %870
    %v872 = vsel %vm820, %v811, -inf
    %873 = vmax.xlane.f32.xlu0 %v872
    %v874 = vpop.xlane.xlu0 %873
    %v875 = vsel %vm820, %v812, -inf
    %876 = vmax.xlane.f32.xlu0 %v875
    %v877 = vpop.xlane.xlu0 %876
    %v878 = vsel %vm820, %v813, -inf
    %879 = vmax.xlane.f32.xlu0 %v878
    %v880 = vpop.xlane.xlu0 %879
    %v881 = vsel %vm820, %v814, -inf
    %882 = vmax.xlane.f32.xlu0 %v881
    %v883 = vpop.xlane.xlu0 %882
    %v884 = vsel %vm820, %v815, -inf
    %885 = vmax.xlane.f32.xlu0 %v884
    %v886 = vpop.xlane.xlu0 %885
    %v887 = vsel %vm820, %v816, -inf
    %888 = vmax.xlane.f32.xlu0 %v887
    %v889 = vpop.xlane.xlu0 %888
    %v890 = vsel %vm820, %v817, -inf
    %891 = vmax.xlane.f32.xlu0 %v890
    %v892 = vpop.xlane.xlu0 %891
    %v893 = vsel %vm820, %v818, -inf
    %894 = vmax.xlane.f32.xlu0 %v893
    %v895 = vpop.xlane.xlu0 %894
    %v896 = vsel %vm820, %v819, -inf
    %897 = vmax.xlane.f32.xlu0 %v896
    %v898 = vpop.xlane.xlu0 %897
    %v899 = vsub.f32 %v794, %v823
    %v900 = vsub.f32 %v795, %v826
    %v901 = vsub.f32 %v796, %v829
    %v902 = vsub.f32 %v797, %v832
    %v903 = vsub.f32 %v798, %v835
    %v904 = vsub.f32 %v799, %v838
    %v905 = vsub.f32 %v800, %v841
    %v906 = vsub.f32 %v801, %v844
    %v907 = vsub.f32 %v802, %v847
    %v908 = vsub.f32 %v803, %v850
    %v909 = vsub.f32 %v804, %v853
    %v910 = vsub.f32 %v805, %v856
    %v911 = vsub.f32 %v806, %v859
    %v912 = vsub.f32 %v807, %v862
    %v913 = vsub.f32 %v808, %v865
    %v914 = vsub.f32 %v809, %v868
    %v915 = vsub.f32 %v810, %v871
    %v916 = vsub.f32 %v811, %v874
    %v917 = vsub.f32 %v812, %v877
    %v918 = vsub.f32 %v813, %v880
    %v919 = vsub.f32 %v814, %v883
    %v920 = vsub.f32 %v815, %v886
    %v921 = vsub.f32 %v816, %v889
    %v922 = vsub.f32 %v817, %v892
    %v923 = vsub.f32 %v818, %v895
    %v924 = vsub.f32 %v819, %v898
    %v925 = vmul.f32 %v899, 1.442695
    %v926 = vpow.pop %v925
    %v927 = vmul.f32 %v900, 1.442695
    %v928 = vpow.pop %v927
    %v929 = vmul.f32 %v901, 1.442695
    %v930 = vpow.pop %v929
    %v931 = vmul.f32 %v902, 1.442695
    %v932 = vpow.pop %v931
    %v933 = vmul.f32 %v903, 1.442695
    %v934 = vpow.pop %v933
    %v935 = vmul.f32 %v904, 1.442695
    %v936 = vpow.pop %v935
    %v937 = vmul.f32 %v905, 1.442695
    %v938 = vpow.pop %v937
    %v939 = vmul.f32 %v906, 1.442695
    %v940 = vpow.pop %v939
    %v941 = vmul.f32 %v907, 1.442695
    %v942 = vpow.pop %v941
    %v943 = vmul.f32 %v908, 1.442695
    %v944 = vpow.pop %v943
    %v945 = vmul.f32 %v909, 1.442695
    %v946 = vpow.pop %v945
    %v947 = vmul.f32 %v910, 1.442695
    %v948 = vpow.pop %v947
    %v949 = vmul.f32 %v911, 1.442695
    %v950 = vpow.pop %v949
    %v951 = vmul.f32 %v912, 1.442695
    %v952 = vpow.pop %v951
    %v953 = vmul.f32 %v913, 1.442695
    %v954 = vpow.pop %v953
    %v955 = vmul.f32 %v914, 1.442695
    %v956 = vpow.pop %v955
    %v957 = vmul.f32 %v915, 1.442695
    %v958 = vpow.pop %v957
    %v959 = vmul.f32 %v916, 1.442695
    %v960 = vpow.pop %v959
    %v961 = vmul.f32 %v917, 1.442695
    %v962 = vpow.pop %v961
    %v963 = vmul.f32 %v918, 1.442695
    %v964 = vpow.pop %v963
    %v965 = vmul.f32 %v919, 1.442695
    %v966 = vpow.pop %v965
    %v967 = vmul.f32 %v920, 1.442695
    %v968 = vpow.pop %v967
    %v969 = vmul.f32 %v921, 1.442695
    %v970 = vpow.pop %v969
    %v971 = vmul.f32 %v922, 1.442695
    %v972 = vpow.pop %v971
    %v973 = vmul.f32 %v923, 1.442695
    %v974 = vpow.pop %v973
    %v975 = vmul.f32 %v924, 1.442695
    %v976 = vpow.pop %v975
    %v977 = vsel %vm820, %v926, 0.0
    %978 = vadd.xlane.f32.xlu0 %v977
    %v979 = vpop.xlane.xlu0 %978
    %v980 = vsel %vm820, %v928, 0.0
    %981 = vadd.xlane.f32.xlu0 %v980
    %v982 = vpop.xlane.xlu0 %981
    %v983 = vsel %vm820, %v930, 0.0
    %984 = vadd.xlane.f32.xlu0 %v983
    %v985 = vpop.xlane.xlu0 %984
    %v986 = vsel %vm820, %v932, 0.0
    %987 = vadd.xlane.f32.xlu0 %v986
    %v988 = vpop.xlane.xlu0 %987
    %v989 = vsel %vm820, %v934, 0.0
    %990 = vadd.xlane.f32.xlu0 %v989
    %v991 = vpop.xlane.xlu0 %990
    %v992 = vsel %vm820, %v936, 0.0
    %993 = vadd.xlane.f32.xlu0 %v992
    %v994 = vpop.xlane.xlu0 %993
    %v995 = vsel %vm820, %v938, 0.0
    %996 = vadd.xlane.f32.xlu0 %v995
    %v997 = vpop.xlane.xlu0 %996
    %v998 = vsel %vm820, %v940, 0.0
    %999 = vadd.xlane.f32.xlu0 %v998
    %v1000 = vpop.xlane.xlu0 %999
    %v1001 = vsel %vm820, %v942, 0.0
    %1002 = vadd.xlane.f32.xlu0 %v1001
    %v1003 = vpop.xlane.xlu0 %1002
    %v1004 = vsel %vm820, %v944, 0.0
    %1005 = vadd.xlane.f32.xlu0 %v1004
    %v1006 = vpop.xlane.xlu0 %1005
    %v1007 = vsel %vm820, %v946, 0.0
    %1008 = vadd.xlane.f32.xlu0 %v1007
    %v1009 = vpop.xlane.xlu0 %1008
    %v1010 = vsel %vm820, %v948, 0.0
    %1011 = vadd.xlane.f32.xlu0 %v1010
    %v1012 = vpop.xlane.xlu0 %1011
    %v1013 = vsel %vm820, %v950, 0.0
    %1014 = vadd.xlane.f32.xlu0 %v1013
    %v1015 = vpop.xlane.xlu0 %1014
    %v1016 = vsel %vm820, %v952, 0.0
    %1017 = vadd.xlane.f32.xlu0 %v1016
    %v1018 = vpop.xlane.xlu0 %1017
    %v1019 = vsel %vm820, %v954, 0.0
    %1020 = vadd.xlane.f32.xlu0 %v1019
    %v1021 = vpop.xlane.xlu0 %1020
    %v1022 = vsel %vm820, %v956, 0.0
    %1023 = vadd.xlane.f32.xlu0 %v1022
    %v1024 = vpop.xlane.xlu0 %1023
    %v1025 = vsel %vm820, %v958, 0.0
    %1026 = vadd.xlane.f32.xlu0 %v1025
    %v1027 = vpop.xlane.xlu0 %1026
    %v1028 = vsel %vm820, %v960, 0.0
    %1029 = vadd.xlane.f32.xlu0 %v1028
    %v1030 = vpop.xlane.xlu0 %1029
    %v1031 = vsel %vm820, %v962, 0.0
    %1032 = vadd.xlane.f32.xlu0 %v1031
    %v1033 = vpop.xlane.xlu0 %1032
    %v1034 = vsel %vm820, %v964, 0.0
    %1035 = vadd.xlane.f32.xlu0 %v1034
    %v1036 = vpop.xlane.xlu0 %1035
    %v1037 = vsel %vm820, %v966, 0.0
    %1038 = vadd.xlane.f32.xlu0 %v1037
    %v1039 = vpop.xlane.xlu0 %1038
    %v1040 = vsel %vm820, %v968, 0.0
    %1041 = vadd.xlane.f32.xlu0 %v1040
    %v1042 = vpop.xlane.xlu0 %1041
    %v1043 = vsel %vm820, %v970, 0.0
    %1044 = vadd.xlane.f32.xlu0 %v1043
    %v1045 = vpop.xlane.xlu0 %1044
    %v1046 = vsel %vm820, %v972, 0.0
    %1047 = vadd.xlane.f32.xlu0 %v1046
    %v1048 = vpop.xlane.xlu0 %1047
    %v1049 = vsel %vm820, %v974, 0.0
    %1050 = vadd.xlane.f32.xlu0 %v1049
    %v1051 = vpop.xlane.xlu0 %1050
    %v1052 = vsel %vm820, %v976, 0.0
    %1053 = vadd.xlane.f32.xlu0 %v1052
    %v1054 = vpop.xlane.xlu0 %1053
    %v1055 = vrcp.pop %v979
    %v1056 = vmul.f32 %v926, %v1055
    %v1057 = vrcp.pop %v982
    %v1058 = vmul.f32 %v928, %v1057
    %v1059 = vrcp.pop %v985
    %v1060 = vmul.f32 %v930, %v1059
    %v1061 = vrcp.pop %v988
    %v1062 = vmul.f32 %v932, %v1061
    %v1063 = vrcp.pop %v991
    %v1064 = vmul.f32 %v934, %v1063
    %v1065 = vrcp.pop %v994
    %v1066 = vmul.f32 %v936, %v1065
    %v1067 = vrcp.pop %v997
    %v1068 = vmul.f32 %v938, %v1067
    %v1069 = vrcp.pop %v1000
    %v1070 = vmul.f32 %v940, %v1069
    %v1071 = vrcp.pop %v1003
    %v1072 = vmul.f32 %v942, %v1071
    %v1073 = vrcp.pop %v1006
    %v1074 = vmul.f32 %v944, %v1073
    %v1075 = vrcp.pop %v1009
    %v1076 = vmul.f32 %v946, %v1075
    %v1077 = vrcp.pop %v1012
    %v1078 = vmul.f32 %v948, %v1077
    %v1079 = vrcp.pop %v1015
    %v1080 = vmul.f32 %v950, %v1079
    %v1081 = vrcp.pop %v1018
    %v1082 = vmul.f32 %v952, %v1081
    %v1083 = vrcp.pop %v1021
    %v1084 = vmul.f32 %v954, %v1083
    %v1085 = vrcp.pop %v1024
    %v1086 = vmul.f32 %v956, %v1085
    %v1087 = vrcp.pop %v1027
    %v1088 = vmul.f32 %v958, %v1087
    %v1089 = vrcp.pop %v1030
    %v1090 = vmul.f32 %v960, %v1089
    %v1091 = vrcp.pop %v1033
    %v1092 = vmul.f32 %v962, %v1091
    %v1093 = vrcp.pop %v1036
    %v1094 = vmul.f32 %v964, %v1093
    %v1095 = vrcp.pop %v1039
    %v1096 = vmul.f32 %v966, %v1095
    %v1097 = vrcp.pop %v1042
    %v1098 = vmul.f32 %v968, %v1097
    %v1099 = vrcp.pop %v1045
    %v1100 = vmul.f32 %v970, %v1099
    %v1101 = vrcp.pop %v1048
    %v1102 = vmul.f32 %v972, %v1101
    %v1103 = vrcp.pop %v1051
    %v1104 = vmul.f32 %v974, %v1103
    %v1105 = vrcp.pop %v1054
    %v1106 = vmul.f32 %v976, %v1105
    %vm1107 = vcmask 130112
    %v1108 = vsel %vm1107, %v794, -inf
    %1109 = vmax.xlane.f32.xlu0 %v1108
    %v1110 = vpop.xlane.xlu0 %1109
    %v1111 = vsel %vm1107, %v795, -inf
    %1112 = vmax.xlane.f32.xlu0 %v1111
    %v1113 = vpop.xlane.xlu0 %1112
    %v1114 = vsel %vm1107, %v796, -inf
    %1115 = vmax.xlane.f32.xlu0 %v1114
    %v1116 = vpop.xlane.xlu0 %1115
    %v1117 = vsel %vm1107, %v797, -inf
    %1118 = vmax.xlane.f32.xlu0 %v1117
    %v1119 = vpop.xlane.xlu0 %1118
    %v1120 = vsel %vm1107, %v798, -inf
    %1121 = vmax.xlane.f32.xlu0 %v1120
    %v1122 = vpop.xlane.xlu0 %1121
    %v1123 = vsel %vm1107, %v799, -inf
    %1124 = vmax.xlane.f32.xlu0 %v1123
    %v1125 = vpop.xlane.xlu0 %1124
    %v1126 = vsel %vm1107, %v800, -inf
    %1127 = vmax.xlane.f32.xlu0 %v1126
    %v1128 = vpop.xlane.xlu0 %1127
    %v1129 = vsel %vm1107, %v801, -inf
    %1130 = vmax.xlane.f32.xlu0 %v1129
    %v1131 = vpop.xlane.xlu0 %1130
    %v1132 = vsel %vm1107, %v802, -inf
    %1133 = vmax.xlane.f32.xlu0 %v1132
    %v1134 = vpop.xlane.xlu0 %1133
    %v1135 = vsel %vm1107, %v803, -inf
    %1136 = vmax.xlane.f32.xlu0 %v1135
    %v1137 = vpop.xlane.xlu0 %1136
    %v1138 = vsel %vm1107, %v804, -inf
    %1139 = vmax.xlane.f32.xlu0 %v1138
    %v1140 = vpop.xlane.xlu0 %1139
    %v1141 = vsel %vm1107, %v805, -inf
    %1142 = vmax.xlane.f32.xlu0 %v1141
    %v1143 = vpop.xlane.xlu0 %1142
    %v1144 = vsel %vm1107, %v806, -inf
    %1145 = vmax.xlane.f32.xlu0 %v1144
    %v1146 = vpop.xlane.xlu0 %1145
    %v1147 = vsel %vm1107, %v807, -inf
    %1148 = vmax.xlane.f32.xlu0 %v1147
    %v1149 = vpop.xlane.xlu0 %1148
    %v1150 = vsel %vm1107, %v808, -inf
    %1151 = vmax.xlane.f32.xlu0 %v1150
    %v1152 = vpop.xlane.xlu0 %1151
    %v1153 = vsel %vm1107, %v809, -inf
    %1154 = vmax.xlane.f32.xlu0 %v1153
    %v1155 = vpop.xlane.xlu0 %1154
    %v1156 = vsel %vm1107, %v810, -inf
    %1157 = vmax.xlane.f32.xlu0 %v1156
    %v1158 = vpop.xlane.xlu0 %1157
    %v1159 = vsel %vm1107, %v811, -inf
    %1160 = vmax.xlane.f32.xlu0 %v1159
    %v1161 = vpop.xlane.xlu0 %1160
    %v1162 = vsel %vm1107, %v812, -inf
    %1163 = vmax.xlane.f32.xlu0 %v1162
    %v1164 = vpop.xlane.xlu0 %1163
    %v1165 = vsel %vm1107, %v813, -inf
    %1166 = vmax.xlane.f32.xlu0 %v1165
    %v1167 = vpop.xlane.xlu0 %1166
    %v1168 = vsel %vm1107, %v814, -inf
    %1169 = vmax.xlane.f32.xlu0 %v1168
    %v1170 = vpop.xlane.xlu0 %1169
    %v1171 = vsel %vm1107, %v815, -inf
    %1172 = vmax.xlane.f32.xlu0 %v1171
    %v1173 = vpop.xlane.xlu0 %1172
    %v1174 = vsel %vm1107, %v816, -inf
    %1175 = vmax.xlane.f32.xlu0 %v1174
    %v1176 = vpop.xlane.xlu0 %1175
    %v1177 = vsel %vm1107, %v817, -inf
    %1178 = vmax.xlane.f32.xlu0 %v1177
    %v1179 = vpop.xlane.xlu0 %1178
    %v1180 = vsel %vm1107, %v818, -inf
    %1181 = vmax.xlane.f32.xlu0 %v1180
    %v1182 = vpop.xlane.xlu0 %1181
    %v1183 = vsel %vm1107, %v819, -inf
    %1184 = vmax.xlane.f32.xlu0 %v1183
    %v1185 = vpop.xlane.xlu0 %1184
    %v1186 = vsub.f32 %v794, %v1110
    %v1187 = vsub.f32 %v795, %v1113
    %v1188 = vsub.f32 %v796, %v1116
    %v1189 = vsub.f32 %v797, %v1119
    %v1190 = vsub.f32 %v798, %v1122
    %v1191 = vsub.f32 %v799, %v1125
    %v1192 = vsub.f32 %v800, %v1128
    %v1193 = vsub.f32 %v801, %v1131
    %v1194 = vsub.f32 %v802, %v1134
    %v1195 = vsub.f32 %v803, %v1137
    %v1196 = vsub.f32 %v804, %v1140
    %v1197 = vsub.f32 %v805, %v1143
    %v1198 = vsub.f32 %v806, %v1146
    %v1199 = vsub.f32 %v807, %v1149
    %v1200 = vsub.f32 %v808, %v1152
    %v1201 = vsub.f32 %v809, %v1155
    %v1202 = vsub.f32 %v810, %v1158
    %v1203 = vsub.f32 %v811, %v1161
    %v1204 = vsub.f32 %v812, %v1164
    %v1205 = vsub.f32 %v813, %v1167
    %v1206 = vsub.f32 %v814, %v1170
    %v1207 = vsub.f32 %v815, %v1173
    %v1208 = vsub.f32 %v816, %v1176
    %v1209 = vsub.f32 %v817, %v1179
    %v1210 = vsub.f32 %v818, %v1182
    %v1211 = vsub.f32 %v819, %v1185
    %v1212 = vmul.f32 %v1186, 1.442695
    %v1213 = vpow.pop %v1212
    %v1214 = vmul.f32 %v1187, 1.442695
    %v1215 = vpow.pop %v1214
    %v1216 = vmul.f32 %v1188, 1.442695
    %v1217 = vpow.pop %v1216
    %v1218 = vmul.f32 %v1189, 1.442695
    %v1219 = vpow.pop %v1218
    %v1220 = vmul.f32 %v1190, 1.442695
    %v1221 = vpow.pop %v1220
    %v1222 = vmul.f32 %v1191, 1.442695
    %v1223 = vpow.pop %v1222
    %v1224 = vmul.f32 %v1192, 1.442695
    %v1225 = vpow.pop %v1224
    %v1226 = vmul.f32 %v1193, 1.442695
    %v1227 = vpow.pop %v1226
    %v1228 = vmul.f32 %v1194, 1.442695
    %v1229 = vpow.pop %v1228
    %v1230 = vmul.f32 %v1195, 1.442695
    %v1231 = vpow.pop %v1230
    %v1232 = vmul.f32 %v1196, 1.442695
    %v1233 = vpow.pop %v1232
    %v1234 = vmul.f32 %v1197, 1.442695
    %v1235 = vpow.pop %v1234
    %v1236 = vmul.f32 %v1198, 1.442695
    %v1237 = vpow.pop %v1236
    %v1238 = vmul.f32 %v1199, 1.442695
    %v1239 = vpow.pop %v1238
    %v1240 = vmul.f32 %v1200, 1.442695
    %v1241 = vpow.pop %v1240
    %v1242 = vmul.f32 %v1201, 1.442695
    %v1243 = vpow.pop %v1242
    %v1244 = vmul.f32 %v1202, 1.442695
    %v1245 = vpow.pop %v1244
    %v1246 = vmul.f32 %v1203, 1.442695
    %v1247 = vpow.pop %v1246
    %v1248 = vmul.f32 %v1204, 1.442695
    %v1249 = vpow.pop %v1248
    %v1250 = vmul.f32 %v1205, 1.442695
    %v1251 = vpow.pop %v1250
    %v1252 = vmul.f32 %v1206, 1.442695
    %v1253 = vpow.pop %v1252
    %v1254 = vmul.f32 %v1207, 1.442695
    %v1255 = vpow.pop %v1254
    %v1256 = vmul.f32 %v1208, 1.442695
    %v1257 = vpow.pop %v1256
    %v1258 = vmul.f32 %v1209, 1.442695
    %v1259 = vpow.pop %v1258
    %v1260 = vmul.f32 %v1210, 1.442695
    %v1261 = vpow.pop %v1260
    %v1262 = vmul.f32 %v1211, 1.442695
    %v1263 = vpow.pop %v1262
    %1290 = vrot.lane.b32.xlu0 %v1213, 120
    %v1291 = vpop.permute.xlu0 %1290
    %1292 = vrot.lane.b32.xlu0 %v1215, 120
    %v1293 = vpop.permute.xlu0 %1292
    %1294 = vrot.lane.b32.xlu0 %v1217, 120
    %v1295 = vpop.permute.xlu0 %1294
    %1296 = vrot.lane.b32.xlu0 %v1219, 120
    %v1297 = vpop.permute.xlu0 %1296
    %1298 = vrot.lane.b32.xlu0 %v1221, 120
    %v1299 = vpop.permute.xlu0 %1298
    %1300 = vrot.lane.b32.xlu0 %v1223, 120
    %v1301 = vpop.permute.xlu0 %1300
    %1302 = vrot.lane.b32.xlu0 %v1225, 120
    %v1303 = vpop.permute.xlu0 %1302
    %1304 = vrot.lane.b32.xlu0 %v1227, 120
    %v1305 = vpop.permute.xlu0 %1304
    %1306 = vrot.lane.b32.xlu0 %v1229, 120
    %v1307 = vpop.permute.xlu0 %1306
    %1308 = vrot.lane.b32.xlu0 %v1231, 120
    %v1309 = vpop.permute.xlu0 %1308
    %1310 = vrot.lane.b32.xlu0 %v1233, 120
    %v1311 = vpop.permute.xlu0 %1310
    %1312 = vrot.lane.b32.xlu0 %v1235, 120
    %v1313 = vpop.permute.xlu0 %1312
    %1314 = vrot.lane.b32.xlu0 %v1237, 120
    %v1315 = vpop.permute.xlu0 %1314
    %1316 = vrot.lane.b32.xlu0 %v1239, 120
    %v1317 = vpop.permute.xlu0 %1316
    %1318 = vrot.lane.b32.xlu0 %v1241, 120
    %v1319 = vpop.permute.xlu0 %1318
    %1320 = vrot.lane.b32.xlu0 %v1243, 120
    %v1321 = vpop.permute.xlu0 %1320
    %1322 = vrot.lane.b32.xlu0 %v1245, 120
    %v1323 = vpop.permute.xlu0 %1322
    %1324 = vrot.lane.b32.xlu0 %v1247, 120
    %v1325 = vpop.permute.xlu0 %1324
    %1326 = vrot.lane.b32.xlu0 %v1249, 120
    %v1327 = vpop.permute.xlu0 %1326
    %1328 = vrot.lane.b32.xlu0 %v1251, 120
    %v1329 = vpop.permute.xlu0 %1328
    %1330 = vrot.lane.b32.xlu0 %v1253, 120
    %v1331 = vpop.permute.xlu0 %1330
    %1332 = vrot.lane.b32.xlu0 %v1255, 120
    %v1333 = vpop.permute.xlu0 %1332
    %1334 = vrot.lane.b32.xlu0 %v1257, 120
    %v1335 = vpop.permute.xlu0 %1334
    %1336 = vrot.lane.b32.xlu0 %v1259, 120
    %v1337 = vpop.permute.xlu0 %1336
    %1338 = vrot.lane.b32.xlu0 %v1261, 120
    %v1339 = vpop.permute.xlu0 %1338
    %1340 = vrot.lane.b32.xlu0 %v1263, 120
    %v1341 = vpop.permute.xlu0 %1340
    %v1368 = vsel %vm820, %v1291, 0.0
    %1369 = vadd.xlane.f32.xlu0 %v1368
    %v1370 = vpop.xlane.xlu0 %1369
    %v1371 = vsel %vm820, %v1293, 0.0
    %1372 = vadd.xlane.f32.xlu0 %v1371
    %v1373 = vpop.xlane.xlu0 %1372
    %v1374 = vsel %vm820, %v1295, 0.0
    %1375 = vadd.xlane.f32.xlu0 %v1374
    %v1376 = vpop.xlane.xlu0 %1375
    %v1377 = vsel %vm820, %v1297, 0.0
    %1378 = vadd.xlane.f32.xlu0 %v1377
    %v1379 = vpop.xlane.xlu0 %1378
    %v1380 = vsel %vm820, %v1299, 0.0
    %1381 = vadd.xlane.f32.xlu0 %v1380
    %v1382 = vpop.xlane.xlu0 %1381
    %v1383 = vsel %vm820, %v1301, 0.0
    %1384 = vadd.xlane.f32.xlu0 %v1383
    %v1385 = vpop.xlane.xlu0 %1384
    %v1386 = vsel %vm820, %v1303, 0.0
    %1387 = vadd.xlane.f32.xlu0 %v1386
    %v1388 = vpop.xlane.xlu0 %1387
    %v1389 = vsel %vm820, %v1305, 0.0
    %1390 = vadd.xlane.f32.xlu0 %v1389
    %v1391 = vpop.xlane.xlu0 %1390
    %v1392 = vsel %vm820, %v1307, 0.0
    %1393 = vadd.xlane.f32.xlu0 %v1392
    %v1394 = vpop.xlane.xlu0 %1393
    %v1395 = vsel %vm820, %v1309, 0.0
    %1396 = vadd.xlane.f32.xlu0 %v1395
    %v1397 = vpop.xlane.xlu0 %1396
    %v1398 = vsel %vm820, %v1311, 0.0
    %1399 = vadd.xlane.f32.xlu0 %v1398
    %v1400 = vpop.xlane.xlu0 %1399
    %v1401 = vsel %vm820, %v1313, 0.0
    %1402 = vadd.xlane.f32.xlu0 %v1401
    %v1403 = vpop.xlane.xlu0 %1402
    %v1404 = vsel %vm820, %v1315, 0.0
    %1405 = vadd.xlane.f32.xlu0 %v1404
    %v1406 = vpop.xlane.xlu0 %1405
    %v1407 = vsel %vm820, %v1317, 0.0
    %1408 = vadd.xlane.f32.xlu0 %v1407
    %v1409 = vpop.xlane.xlu0 %1408
    %v1410 = vsel %vm820, %v1319, 0.0
    %1411 = vadd.xlane.f32.xlu0 %v1410
    %v1412 = vpop.xlane.xlu0 %1411
    %v1413 = vsel %vm820, %v1321, 0.0
    %1414 = vadd.xlane.f32.xlu0 %v1413
    %v1415 = vpop.xlane.xlu0 %1414
    %v1416 = vsel %vm820, %v1323, 0.0
    %1417 = vadd.xlane.f32.xlu0 %v1416
    %v1418 = vpop.xlane.xlu0 %1417
    %v1419 = vsel %vm820, %v1325, 0.0
    %1420 = vadd.xlane.f32.xlu0 %v1419
    %v1421 = vpop.xlane.xlu0 %1420
    %v1422 = vsel %vm820, %v1327, 0.0
    %1423 = vadd.xlane.f32.xlu0 %v1422
    %v1424 = vpop.xlane.xlu0 %1423
    %v1425 = vsel %vm820, %v1329, 0.0
    %1426 = vadd.xlane.f32.xlu0 %v1425
    %v1427 = vpop.xlane.xlu0 %1426
    %v1428 = vsel %vm820, %v1331, 0.0
    %1429 = vadd.xlane.f32.xlu0 %v1428
    %v1430 = vpop.xlane.xlu0 %1429
    %v1431 = vsel %vm820, %v1333, 0.0
    %1432 = vadd.xlane.f32.xlu0 %v1431
    %v1433 = vpop.xlane.xlu0 %1432
    %v1434 = vsel %vm820, %v1335, 0.0
    %1435 = vadd.xlane.f32.xlu0 %v1434
    %v1436 = vpop.xlane.xlu0 %1435
    %v1437 = vsel %vm820, %v1337, 0.0
    %1438 = vadd.xlane.f32.xlu0 %v1437
    %v1439 = vpop.xlane.xlu0 %1438
    %v1440 = vsel %vm820, %v1339, 0.0
    %1441 = vadd.xlane.f32.xlu0 %v1440
    %v1442 = vpop.xlane.xlu0 %1441
    %v1443 = vsel %vm820, %v1341, 0.0
    %1444 = vadd.xlane.f32.xlu0 %v1443
    %v1445 = vpop.xlane.xlu0 %1444
    %v1446 = vrcp.pop %v1370
    %v1447 = vmul.f32 %v1213, %v1446
    %v1448 = vrcp.pop %v1373
    %v1449 = vmul.f32 %v1215, %v1448
    %v1450 = vrcp.pop %v1376
    %v1451 = vmul.f32 %v1217, %v1450
    %v1452 = vrcp.pop %v1379
    %v1453 = vmul.f32 %v1219, %v1452
    %v1454 = vrcp.pop %v1382
    %v1455 = vmul.f32 %v1221, %v1454
    %v1456 = vrcp.pop %v1385
    %v1457 = vmul.f32 %v1223, %v1456
    %v1458 = vrcp.pop %v1388
    %v1459 = vmul.f32 %v1225, %v1458
    %v1460 = vrcp.pop %v1391
    %v1461 = vmul.f32 %v1227, %v1460
    %v1462 = vrcp.pop %v1394
    %v1463 = vmul.f32 %v1229, %v1462
    %v1464 = vrcp.pop %v1397
    %v1465 = vmul.f32 %v1231, %v1464
    %v1466 = vrcp.pop %v1400
    %v1467 = vmul.f32 %v1233, %v1466
    %v1468 = vrcp.pop %v1403
    %v1469 = vmul.f32 %v1235, %v1468
    %v1470 = vrcp.pop %v1406
    %v1471 = vmul.f32 %v1237, %v1470
    %v1472 = vrcp.pop %v1409
    %v1473 = vmul.f32 %v1239, %v1472
    %v1474 = vrcp.pop %v1412
    %v1475 = vmul.f32 %v1241, %v1474
    %v1476 = vrcp.pop %v1415
    %v1477 = vmul.f32 %v1243, %v1476
    %v1478 = vrcp.pop %v1418
    %v1479 = vmul.f32 %v1245, %v1478
    %v1480 = vrcp.pop %v1421
    %v1481 = vmul.f32 %v1247, %v1480
    %v1482 = vrcp.pop %v1424
    %v1483 = vmul.f32 %v1249, %v1482
    %v1484 = vrcp.pop %v1427
    %v1485 = vmul.f32 %v1251, %v1484
    %v1486 = vrcp.pop %v1430
    %v1487 = vmul.f32 %v1253, %v1486
    %v1488 = vrcp.pop %v1433
    %v1489 = vmul.f32 %v1255, %v1488
    %v1490 = vrcp.pop %v1436
    %v1491 = vmul.f32 %v1257, %v1490
    %v1492 = vrcp.pop %v1439
    %v1493 = vmul.f32 %v1259, %v1492
    %v1494 = vrcp.pop %v1442
    %v1495 = vmul.f32 %v1261, %v1494
    %v1496 = vrcp.pop %v1445
    %v1497 = vmul.f32 %v1263, %v1496
    %vm1498 = vcmask 195712
    %v1499 = vsel %vm1498, %v794, -inf
    %1500 = vmax.xlane.f32.xlu0 %v1499
    %v1501 = vpop.xlane.xlu0 %1500
    %v1502 = vsel %vm1498, %v795, -inf
    %1503 = vmax.xlane.f32.xlu0 %v1502
    %v1504 = vpop.xlane.xlu0 %1503
    %v1505 = vsel %vm1498, %v796, -inf
    %1506 = vmax.xlane.f32.xlu0 %v1505
    %v1507 = vpop.xlane.xlu0 %1506
    %v1508 = vsel %vm1498, %v797, -inf
    %1509 = vmax.xlane.f32.xlu0 %v1508
    %v1510 = vpop.xlane.xlu0 %1509
    %v1511 = vsel %vm1498, %v798, -inf
    %1512 = vmax.xlane.f32.xlu0 %v1511
    %v1513 = vpop.xlane.xlu0 %1512
    %v1514 = vsel %vm1498, %v799, -inf
    %1515 = vmax.xlane.f32.xlu0 %v1514
    %v1516 = vpop.xlane.xlu0 %1515
    %v1517 = vsel %vm1498, %v800, -inf
    %1518 = vmax.xlane.f32.xlu0 %v1517
    %v1519 = vpop.xlane.xlu0 %1518
    %v1520 = vsel %vm1498, %v801, -inf
    %1521 = vmax.xlane.f32.xlu0 %v1520
    %v1522 = vpop.xlane.xlu0 %1521
    %v1523 = vsel %vm1498, %v802, -inf
    %1524 = vmax.xlane.f32.xlu0 %v1523
    %v1525 = vpop.xlane.xlu0 %1524
    %v1526 = vsel %vm1498, %v803, -inf
    %1527 = vmax.xlane.f32.xlu0 %v1526
    %v1528 = vpop.xlane.xlu0 %1527
    %v1529 = vsel %vm1498, %v804, -inf
    %1530 = vmax.xlane.f32.xlu0 %v1529
    %v1531 = vpop.xlane.xlu0 %1530
    %v1532 = vsel %vm1498, %v805, -inf
    %1533 = vmax.xlane.f32.xlu0 %v1532
    %v1534 = vpop.xlane.xlu0 %1533
    %v1535 = vsel %vm1498, %v806, -inf
    %1536 = vmax.xlane.f32.xlu0 %v1535
    %v1537 = vpop.xlane.xlu0 %1536
    %v1538 = vsel %vm1498, %v807, -inf
    %1539 = vmax.xlane.f32.xlu0 %v1538
    %v1540 = vpop.xlane.xlu0 %1539
    %v1541 = vsel %vm1498, %v808, -inf
    %1542 = vmax.xlane.f32.xlu0 %v1541
    %v1543 = vpop.xlane.xlu0 %1542
    %v1544 = vsel %vm1498, %v809, -inf
    %1545 = vmax.xlane.f32.xlu0 %v1544
    %v1546 = vpop.xlane.xlu0 %1545
    %v1547 = vsel %vm1498, %v810, -inf
    %1548 = vmax.xlane.f32.xlu0 %v1547
    %v1549 = vpop.xlane.xlu0 %1548
    %v1550 = vsel %vm1498, %v811, -inf
    %1551 = vmax.xlane.f32.xlu0 %v1550
    %v1552 = vpop.xlane.xlu0 %1551
    %v1553 = vsel %vm1498, %v812, -inf
    %1554 = vmax.xlane.f32.xlu0 %v1553
    %v1555 = vpop.xlane.xlu0 %1554
    %v1556 = vsel %vm1498, %v813, -inf
    %1557 = vmax.xlane.f32.xlu0 %v1556
    %v1558 = vpop.xlane.xlu0 %1557
    %v1559 = vsel %vm1498, %v814, -inf
    %1560 = vmax.xlane.f32.xlu0 %v1559
    %v1561 = vpop.xlane.xlu0 %1560
    %v1562 = vsel %vm1498, %v815, -inf
    %1563 = vmax.xlane.f32.xlu0 %v1562
    %v1564 = vpop.xlane.xlu0 %1563
    %v1565 = vsel %vm1498, %v816, -inf
    %1566 = vmax.xlane.f32.xlu0 %v1565
    %v1567 = vpop.xlane.xlu0 %1566
    %v1568 = vsel %vm1498, %v817, -inf
    %1569 = vmax.xlane.f32.xlu0 %v1568
    %v1570 = vpop.xlane.xlu0 %1569
    %v1571 = vsel %vm1498, %v818, -inf
    %1572 = vmax.xlane.f32.xlu0 %v1571
    %v1573 = vpop.xlane.xlu0 %1572
    %v1574 = vsel %vm1498, %v819, -inf
    %1575 = vmax.xlane.f32.xlu0 %v1574
    %v1576 = vpop.xlane.xlu0 %1575
    %v1577 = vsub.f32 %v794, %v1501
    %v1578 = vsub.f32 %v795, %v1504
    %v1579 = vsub.f32 %v796, %v1507
    %v1580 = vsub.f32 %v797, %v1510
    %v1581 = vsub.f32 %v798, %v1513
    %v1582 = vsub.f32 %v799, %v1516
    %v1583 = vsub.f32 %v800, %v1519
    %v1584 = vsub.f32 %v801, %v1522
    %v1585 = vsub.f32 %v802, %v1525
    %v1586 = vsub.f32 %v803, %v1528
    %v1587 = vsub.f32 %v804, %v1531
    %v1588 = vsub.f32 %v805, %v1534
    %v1589 = vsub.f32 %v806, %v1537
    %v1590 = vsub.f32 %v807, %v1540
    %v1591 = vsub.f32 %v808, %v1543
    %v1592 = vsub.f32 %v809, %v1546
    %v1593 = vsub.f32 %v810, %v1549
    %v1594 = vsub.f32 %v811, %v1552
    %v1595 = vsub.f32 %v812, %v1555
    %v1596 = vsub.f32 %v813, %v1558
    %v1597 = vsub.f32 %v814, %v1561
    %v1598 = vsub.f32 %v815, %v1564
    %v1599 = vsub.f32 %v816, %v1567
    %v1600 = vsub.f32 %v817, %v1570
    %v1601 = vsub.f32 %v818, %v1573
    %v1602 = vsub.f32 %v819, %v1576
    %v1603 = vmul.f32 %v1577, 1.442695
    %v1604 = vpow.pop %v1603
    %v1605 = vmul.f32 %v1578, 1.442695
    %v1606 = vpow.pop %v1605
    %v1607 = vmul.f32 %v1579, 1.442695
    %v1608 = vpow.pop %v1607
    %v1609 = vmul.f32 %v1580, 1.442695
    %v1610 = vpow.pop %v1609
    %v1611 = vmul.f32 %v1581, 1.442695
    %v1612 = vpow.pop %v1611
    %v1613 = vmul.f32 %v1582, 1.442695
    %v1614 = vpow.pop %v1613
    %v1615 = vmul.f32 %v1583, 1.442695
    %v1616 = vpow.pop %v1615
    %v1617 = vmul.f32 %v1584, 1.442695
    %v1618 = vpow.pop %v1617
    %v1619 = vmul.f32 %v1585, 1.442695
    %v1620 = vpow.pop %v1619
    %v1621 = vmul.f32 %v1586, 1.442695
    %v1622 = vpow.pop %v1621
    %v1623 = vmul.f32 %v1587, 1.442695
    %v1624 = vpow.pop %v1623
    %v1625 = vmul.f32 %v1588, 1.442695
    %v1626 = vpow.pop %v1625
    %v1627 = vmul.f32 %v1589, 1.442695
    %v1628 = vpow.pop %v1627
    %v1629 = vmul.f32 %v1590, 1.442695
    %v1630 = vpow.pop %v1629
    %v1631 = vmul.f32 %v1591, 1.442695
    %v1632 = vpow.pop %v1631
    %v1633 = vmul.f32 %v1592, 1.442695
    %v1634 = vpow.pop %v1633
    %v1635 = vmul.f32 %v1593, 1.442695
    %v1636 = vpow.pop %v1635
    %v1637 = vmul.f32 %v1594, 1.442695
    %v1638 = vpow.pop %v1637
    %v1639 = vmul.f32 %v1595, 1.442695
    %v1640 = vpow.pop %v1639
    %v1641 = vmul.f32 %v1596, 1.442695
    %v1642 = vpow.pop %v1641
    %v1643 = vmul.f32 %v1597, 1.442695
    %v1644 = vpow.pop %v1643
    %v1645 = vmul.f32 %v1598, 1.442695
    %v1646 = vpow.pop %v1645
    %v1647 = vmul.f32 %v1599, 1.442695
    %v1648 = vpow.pop %v1647
    %v1649 = vmul.f32 %v1600, 1.442695
    %v1650 = vpow.pop %v1649
    %v1651 = vmul.f32 %v1601, 1.442695
    %v1652 = vpow.pop %v1651
    %v1653 = vmul.f32 %v1602, 1.442695
    %v1654 = vpow.pop %v1653
    %1681 = vrot.lane.b32.xlu0 %v1604, 112
    %v1682 = vpop.permute.xlu0 %1681
    %1683 = vrot.lane.b32.xlu0 %v1606, 112
    %v1684 = vpop.permute.xlu0 %1683
    %1685 = vrot.lane.b32.xlu0 %v1608, 112
    %v1686 = vpop.permute.xlu0 %1685
    %1687 = vrot.lane.b32.xlu0 %v1610, 112
    %v1688 = vpop.permute.xlu0 %1687
    %1689 = vrot.lane.b32.xlu0 %v1612, 112
    %v1690 = vpop.permute.xlu0 %1689
    %1691 = vrot.lane.b32.xlu0 %v1614, 112
    %v1692 = vpop.permute.xlu0 %1691
    %1693 = vrot.lane.b32.xlu0 %v1616, 112
    %v1694 = vpop.permute.xlu0 %1693
    %1695 = vrot.lane.b32.xlu0 %v1618, 112
    %v1696 = vpop.permute.xlu0 %1695
    %1697 = vrot.lane.b32.xlu0 %v1620, 112
    %v1698 = vpop.permute.xlu0 %1697
    %1699 = vrot.lane.b32.xlu0 %v1622, 112
    %v1700 = vpop.permute.xlu0 %1699
    %1701 = vrot.lane.b32.xlu0 %v1624, 112
    %v1702 = vpop.permute.xlu0 %1701
    %1703 = vrot.lane.b32.xlu0 %v1626, 112
    %v1704 = vpop.permute.xlu0 %1703
    %1705 = vrot.lane.b32.xlu0 %v1628, 112
    %v1706 = vpop.permute.xlu0 %1705
    %1707 = vrot.lane.b32.xlu0 %v1630, 112
    %v1708 = vpop.permute.xlu0 %1707
    %1709 = vrot.lane.b32.xlu0 %v1632, 112
    %v1710 = vpop.permute.xlu0 %1709
    %1711 = vrot.lane.b32.xlu0 %v1634, 112
    %v1712 = vpop.permute.xlu0 %1711
    %1713 = vrot.lane.b32.xlu0 %v1636, 112
    %v1714 = vpop.permute.xlu0 %1713
    %1715 = vrot.lane.b32.xlu0 %v1638, 112
    %v1716 = vpop.permute.xlu0 %1715
    %1717 = vrot.lane.b32.xlu0 %v1640, 112
    %v1718 = vpop.permute.xlu0 %1717
    %1719 = vrot.lane.b32.xlu0 %v1642, 112
    %v1720 = vpop.permute.xlu0 %1719
    %1721 = vrot.lane.b32.xlu0 %v1644, 112
    %v1722 = vpop.permute.xlu0 %1721
    %1723 = vrot.lane.b32.xlu0 %v1646, 112
    %v1724 = vpop.permute.xlu0 %1723
    %1725 = vrot.lane.b32.xlu0 %v1648, 112
    %v1726 = vpop.permute.xlu0 %1725
    %1727 = vrot.lane.b32.xlu0 %v1650, 112
    %v1728 = vpop.permute.xlu0 %1727
    %1729 = vrot.lane.b32.xlu0 %v1652, 112
    %v1730 = vpop.permute.xlu0 %1729
    %1731 = vrot.lane.b32.xlu0 %v1654, 112
    %v1732 = vpop.permute.xlu0 %1731
    %v1759 = vsel %vm820, %v1682, 0.0
    %1760 = vadd.xlane.f32.xlu0 %v1759
    %v1761 = vpop.xlane.xlu0 %1760
    %v1762 = vsel %vm820, %v1684, 0.0
    %1763 = vadd.xlane.f32.xlu0 %v1762
    %v1764 = vpop.xlane.xlu0 %1763
    %v1765 = vsel %vm820, %v1686, 0.0
    %1766 = vadd.xlane.f32.xlu0 %v1765
    %v1767 = vpop.xlane.xlu0 %1766
    %v1768 = vsel %vm820, %v1688, 0.0
    %1769 = vadd.xlane.f32.xlu0 %v1768
    %v1770 = vpop.xlane.xlu0 %1769
    %v1771 = vsel %vm820, %v1690, 0.0
    %1772 = vadd.xlane.f32.xlu0 %v1771
    %v1773 = vpop.xlane.xlu0 %1772
    %v1774 = vsel %vm820, %v1692, 0.0
    %1775 = vadd.xlane.f32.xlu0 %v1774
    %v1776 = vpop.xlane.xlu0 %1775
    %v1777 = vsel %vm820, %v1694, 0.0
    %1778 = vadd.xlane.f32.xlu0 %v1777
    %v1779 = vpop.xlane.xlu0 %1778
    %v1780 = vsel %vm820, %v1696, 0.0
    %1781 = vadd.xlane.f32.xlu0 %v1780
    %v1782 = vpop.xlane.xlu0 %1781
    %v1783 = vsel %vm820, %v1698, 0.0
    %1784 = vadd.xlane.f32.xlu0 %v1783
    %v1785 = vpop.xlane.xlu0 %1784
    %v1786 = vsel %vm820, %v1700, 0.0
    %1787 = vadd.xlane.f32.xlu0 %v1786
    %v1788 = vpop.xlane.xlu0 %1787
    %v1789 = vsel %vm820, %v1702, 0.0
    %1790 = vadd.xlane.f32.xlu0 %v1789
    %v1791 = vpop.xlane.xlu0 %1790
    %v1792 = vsel %vm820, %v1704, 0.0
    %1793 = vadd.xlane.f32.xlu0 %v1792
    %v1794 = vpop.xlane.xlu0 %1793
    %v1795 = vsel %vm820, %v1706, 0.0
    %1796 = vadd.xlane.f32.xlu0 %v1795
    %v1797 = vpop.xlane.xlu0 %1796
    %v1798 = vsel %vm820, %v1708, 0.0
    %1799 = vadd.xlane.f32.xlu0 %v1798
    %v1800 = vpop.xlane.xlu0 %1799
    %v1801 = vsel %vm820, %v1710, 0.0
    %1802 = vadd.xlane.f32.xlu0 %v1801
    %v1803 = vpop.xlane.xlu0 %1802
    %v1804 = vsel %vm820, %v1712, 0.0
    %1805 = vadd.xlane.f32.xlu0 %v1804
    %v1806 = vpop.xlane.xlu0 %1805
    %v1807 = vsel %vm820, %v1714, 0.0
    %1808 = vadd.xlane.f32.xlu0 %v1807
    %v1809 = vpop.xlane.xlu0 %1808
    %v1810 = vsel %vm820, %v1716, 0.0
    %1811 = vadd.xlane.f32.xlu0 %v1810
    %v1812 = vpop.xlane.xlu0 %1811
    %v1813 = vsel %vm820, %v1718, 0.0
    %1814 = vadd.xlane.f32.xlu0 %v1813
    %v1815 = vpop.xlane.xlu0 %1814
    %v1816 = vsel %vm820, %v1720, 0.0
    %1817 = vadd.xlane.f32.xlu0 %v1816
    %v1818 = vpop.xlane.xlu0 %1817
    %v1819 = vsel %vm820, %v1722, 0.0
    %1820 = vadd.xlane.f32.xlu0 %v1819
    %v1821 = vpop.xlane.xlu0 %1820
    %v1822 = vsel %vm820, %v1724, 0.0
    %1823 = vadd.xlane.f32.xlu0 %v1822
    %v1824 = vpop.xlane.xlu0 %1823
    %v1825 = vsel %vm820, %v1726, 0.0
    %1826 = vadd.xlane.f32.xlu0 %v1825
    %v1827 = vpop.xlane.xlu0 %1826
    %v1828 = vsel %vm820, %v1728, 0.0
    %1829 = vadd.xlane.f32.xlu0 %v1828
    %v1830 = vpop.xlane.xlu0 %1829
    %v1831 = vsel %vm820, %v1730, 0.0
    %1832 = vadd.xlane.f32.xlu0 %v1831
    %v1833 = vpop.xlane.xlu0 %1832
    %v1834 = vsel %vm820, %v1732, 0.0
    %1835 = vadd.xlane.f32.xlu0 %v1834
    %v1836 = vpop.xlane.xlu0 %1835
    %v1837 = vrcp.pop %v1761
    %v1838 = vmul.f32 %v1604, %v1837
    %v1839 = vrcp.pop %v1764
    %v1840 = vmul.f32 %v1606, %v1839
    %v1841 = vrcp.pop %v1767
    %v1842 = vmul.f32 %v1608, %v1841
    %v1843 = vrcp.pop %v1770
    %v1844 = vmul.f32 %v1610, %v1843
    %v1845 = vrcp.pop %v1773
    %v1846 = vmul.f32 %v1612, %v1845
    %v1847 = vrcp.pop %v1776
    %v1848 = vmul.f32 %v1614, %v1847
    %v1849 = vrcp.pop %v1779
    %v1850 = vmul.f32 %v1616, %v1849
    %v1851 = vrcp.pop %v1782
    %v1852 = vmul.f32 %v1618, %v1851
    %v1853 = vrcp.pop %v1785
    %v1854 = vmul.f32 %v1620, %v1853
    %v1855 = vrcp.pop %v1788
    %v1856 = vmul.f32 %v1622, %v1855
    %v1857 = vrcp.pop %v1791
    %v1858 = vmul.f32 %v1624, %v1857
    %v1859 = vrcp.pop %v1794
    %v1860 = vmul.f32 %v1626, %v1859
    %v1861 = vrcp.pop %v1797
    %v1862 = vmul.f32 %v1628, %v1861
    %v1863 = vrcp.pop %v1800
    %v1864 = vmul.f32 %v1630, %v1863
    %v1865 = vrcp.pop %v1803
    %v1866 = vmul.f32 %v1632, %v1865
    %v1867 = vrcp.pop %v1806
    %v1868 = vmul.f32 %v1634, %v1867
    %v1869 = vrcp.pop %v1809
    %v1870 = vmul.f32 %v1636, %v1869
    %v1871 = vrcp.pop %v1812
    %v1872 = vmul.f32 %v1638, %v1871
    %v1873 = vrcp.pop %v1815
    %v1874 = vmul.f32 %v1640, %v1873
    %v1875 = vrcp.pop %v1818
    %v1876 = vmul.f32 %v1642, %v1875
    %v1877 = vrcp.pop %v1821
    %v1878 = vmul.f32 %v1644, %v1877
    %v1879 = vrcp.pop %v1824
    %v1880 = vmul.f32 %v1646, %v1879
    %v1881 = vrcp.pop %v1827
    %v1882 = vmul.f32 %v1648, %v1881
    %v1883 = vrcp.pop %v1830
    %v1884 = vmul.f32 %v1650, %v1883
    %v1885 = vrcp.pop %v1833
    %v1886 = vmul.f32 %v1652, %v1885
    %v1887 = vrcp.pop %v1836
    %v1888 = vmul.f32 %v1654, %v1887
    %vm1889 = vcmask 261312
    %v1890 = vsel %vm1889, %v794, -inf
    %1891 = vmax.xlane.f32.xlu0 %v1890
    %v1892 = vpop.xlane.xlu0 %1891
    %v1893 = vsel %vm1889, %v795, -inf
    %1894 = vmax.xlane.f32.xlu0 %v1893
    %v1895 = vpop.xlane.xlu0 %1894
    %v1896 = vsel %vm1889, %v796, -inf
    %1897 = vmax.xlane.f32.xlu0 %v1896
    %v1898 = vpop.xlane.xlu0 %1897
    %v1899 = vsel %vm1889, %v797, -inf
    %1900 = vmax.xlane.f32.xlu0 %v1899
    %v1901 = vpop.xlane.xlu0 %1900
    %v1902 = vsel %vm1889, %v798, -inf
    %1903 = vmax.xlane.f32.xlu0 %v1902
    %v1904 = vpop.xlane.xlu0 %1903
    %v1905 = vsel %vm1889, %v799, -inf
    %1906 = vmax.xlane.f32.xlu0 %v1905
    %v1907 = vpop.xlane.xlu0 %1906
    %v1908 = vsel %vm1889, %v800, -inf
    %1909 = vmax.xlane.f32.xlu0 %v1908
    %v1910 = vpop.xlane.xlu0 %1909
    %v1911 = vsel %vm1889, %v801, -inf
    %1912 = vmax.xlane.f32.xlu0 %v1911
    %v1913 = vpop.xlane.xlu0 %1912
    %v1914 = vsel %vm1889, %v802, -inf
    %1915 = vmax.xlane.f32.xlu0 %v1914
    %v1916 = vpop.xlane.xlu0 %1915
    %v1917 = vsel %vm1889, %v803, -inf
    %1918 = vmax.xlane.f32.xlu0 %v1917
    %v1919 = vpop.xlane.xlu0 %1918
    %v1920 = vsel %vm1889, %v804, -inf
    %1921 = vmax.xlane.f32.xlu0 %v1920
    %v1922 = vpop.xlane.xlu0 %1921
    %v1923 = vsel %vm1889, %v805, -inf
    %1924 = vmax.xlane.f32.xlu0 %v1923
    %v1925 = vpop.xlane.xlu0 %1924
    %v1926 = vsel %vm1889, %v806, -inf
    %1927 = vmax.xlane.f32.xlu0 %v1926
    %v1928 = vpop.xlane.xlu0 %1927
    %v1929 = vsel %vm1889, %v807, -inf
    %1930 = vmax.xlane.f32.xlu0 %v1929
    %v1931 = vpop.xlane.xlu0 %1930
    %v1932 = vsel %vm1889, %v808, -inf
    %1933 = vmax.xlane.f32.xlu0 %v1932
    %v1934 = vpop.xlane.xlu0 %1933
    %v1935 = vsel %vm1889, %v809, -inf
    %1936 = vmax.xlane.f32.xlu0 %v1935
    %v1937 = vpop.xlane.xlu0 %1936
    %v1938 = vsel %vm1889, %v810, -inf
    %1939 = vmax.xlane.f32.xlu0 %v1938
    %v1940 = vpop.xlane.xlu0 %1939
    %v1941 = vsel %vm1889, %v811, -inf
    %1942 = vmax.xlane.f32.xlu0 %v1941
    %v1943 = vpop.xlane.xlu0 %1942
    %v1944 = vsel %vm1889, %v812, -inf
    %1945 = vmax.xlane.f32.xlu0 %v1944
    %v1946 = vpop.xlane.xlu0 %1945
    %v1947 = vsel %vm1889, %v813, -inf
    %1948 = vmax.xlane.f32.xlu0 %v1947
    %v1949 = vpop.xlane.xlu0 %1948
    %v1950 = vsel %vm1889, %v814, -inf
    %1951 = vmax.xlane.f32.xlu0 %v1950
    %v1952 = vpop.xlane.xlu0 %1951
    %v1953 = vsel %vm1889, %v815, -inf
    %1954 = vmax.xlane.f32.xlu0 %v1953
    %v1955 = vpop.xlane.xlu0 %1954
    %v1956 = vsel %vm1889, %v816, -inf
    %1957 = vmax.xlane.f32.xlu0 %v1956
    %v1958 = vpop.xlane.xlu0 %1957
    %v1959 = vsel %vm1889, %v817, -inf
    %1960 = vmax.xlane.f32.xlu0 %v1959
    %v1961 = vpop.xlane.xlu0 %1960
    %v1962 = vsel %vm1889, %v818, -inf
    %1963 = vmax.xlane.f32.xlu0 %v1962
    %v1964 = vpop.xlane.xlu0 %1963
    %v1965 = vsel %vm1889, %v819, -inf
    %1966 = vmax.xlane.f32.xlu0 %v1965
    %v1967 = vpop.xlane.xlu0 %1966
    %v1968 = vsub.f32 %v794, %v1892
    %v1969 = vsub.f32 %v795, %v1895
    %v1970 = vsub.f32 %v796, %v1898
    %v1971 = vsub.f32 %v797, %v1901
    %v1972 = vsub.f32 %v798, %v1904
    %v1973 = vsub.f32 %v799, %v1907
    %v1974 = vsub.f32 %v800, %v1910
    %v1975 = vsub.f32 %v801, %v1913
    %v1976 = vsub.f32 %v802, %v1916
    %v1977 = vsub.f32 %v803, %v1919
    %v1978 = vsub.f32 %v804, %v1922
    %v1979 = vsub.f32 %v805, %v1925
    %v1980 = vsub.f32 %v806, %v1928
    %v1981 = vsub.f32 %v807, %v1931
    %v1982 = vsub.f32 %v808, %v1934
    %v1983 = vsub.f32 %v809, %v1937
    %v1984 = vsub.f32 %v810, %v1940
    %v1985 = vsub.f32 %v811, %v1943
    %v1986 = vsub.f32 %v812, %v1946
    %v1987 = vsub.f32 %v813, %v1949
    %v1988 = vsub.f32 %v814, %v1952
    %v1989 = vsub.f32 %v815, %v1955
    %v1990 = vsub.f32 %v816, %v1958
    %v1991 = vsub.f32 %v817, %v1961
    %v1992 = vsub.f32 %v818, %v1964
    %v1993 = vsub.f32 %v819, %v1967
    %v1994 = vmul.f32 %v1968, 1.442695
    %v1995 = vpow.pop %v1994
    %v1996 = vmul.f32 %v1969, 1.442695
    %v1997 = vpow.pop %v1996
    %v1998 = vmul.f32 %v1970, 1.442695
    %v1999 = vpow.pop %v1998
    %v2000 = vmul.f32 %v1971, 1.442695
    %v2001 = vpow.pop %v2000
    %v2002 = vmul.f32 %v1972, 1.442695
    %v2003 = vpow.pop %v2002
    %v2004 = vmul.f32 %v1973, 1.442695
    %v2005 = vpow.pop %v2004
    %v2006 = vmul.f32 %v1974, 1.442695
    %v2007 = vpow.pop %v2006
    %v2008 = vmul.f32 %v1975, 1.442695
    %v2009 = vpow.pop %v2008
    %v2010 = vmul.f32 %v1976, 1.442695
    %v2011 = vpow.pop %v2010
    %v2012 = vmul.f32 %v1977, 1.442695
    %v2013 = vpow.pop %v2012
    %v2014 = vmul.f32 %v1978, 1.442695
    %v2015 = vpow.pop %v2014
    %v2016 = vmul.f32 %v1979, 1.442695
    %v2017 = vpow.pop %v2016
    %v2018 = vmul.f32 %v1980, 1.442695
    %v2019 = vpow.pop %v2018
    %v2020 = vmul.f32 %v1981, 1.442695
    %v2021 = vpow.pop %v2020
    %v2022 = vmul.f32 %v1982, 1.442695
    %v2023 = vpow.pop %v2022
    %v2024 = vmul.f32 %v1983, 1.442695
    %v2025 = vpow.pop %v2024
    %v2026 = vmul.f32 %v1984, 1.442695
    %v2027 = vpow.pop %v2026
    %v2028 = vmul.f32 %v1985, 1.442695
    %v2029 = vpow.pop %v2028
    %v2030 = vmul.f32 %v1986, 1.442695
    %v2031 = vpow.pop %v2030
    %v2032 = vmul.f32 %v1987, 1.442695
    %v2033 = vpow.pop %v2032
    %v2034 = vmul.f32 %v1988, 1.442695
    %v2035 = vpow.pop %v2034
    %v2036 = vmul.f32 %v1989, 1.442695
    %v2037 = vpow.pop %v2036
    %v2038 = vmul.f32 %v1990, 1.442695
    %v2039 = vpow.pop %v2038
    %v2040 = vmul.f32 %v1991, 1.442695
    %v2041 = vpow.pop %v2040
    %v2042 = vmul.f32 %v1992, 1.442695
    %v2043 = vpow.pop %v2042
    %v2044 = vmul.f32 %v1993, 1.442695
    %v2045 = vpow.pop %v2044
    %2072 = vrot.lane.b32.xlu0 %v1995, 104
    %v2073 = vpop.permute.xlu0 %2072
    %2074 = vrot.lane.b32.xlu0 %v1997, 104
    %v2075 = vpop.permute.xlu0 %2074
    %2076 = vrot.lane.b32.xlu0 %v1999, 104
    %v2077 = vpop.permute.xlu0 %2076
    %2078 = vrot.lane.b32.xlu0 %v2001, 104
    %v2079 = vpop.permute.xlu0 %2078
    %2080 = vrot.lane.b32.xlu0 %v2003, 104
    %v2081 = vpop.permute.xlu0 %2080
    %2082 = vrot.lane.b32.xlu0 %v2005, 104
    %v2083 = vpop.permute.xlu0 %2082
    %2084 = vrot.lane.b32.xlu0 %v2007, 104
    %v2085 = vpop.permute.xlu0 %2084
    %2086 = vrot.lane.b32.xlu0 %v2009, 104
    %v2087 = vpop.permute.xlu0 %2086
    %2088 = vrot.lane.b32.xlu0 %v2011, 104
    %v2089 = vpop.permute.xlu0 %2088
    %2090 = vrot.lane.b32.xlu0 %v2013, 104
    %v2091 = vpop.permute.xlu0 %2090
    %2092 = vrot.lane.b32.xlu0 %v2015, 104
    %v2093 = vpop.permute.xlu0 %2092
    %2094 = vrot.lane.b32.xlu0 %v2017, 104
    %v2095 = vpop.permute.xlu0 %2094
    %2096 = vrot.lane.b32.xlu0 %v2019, 104
    %v2097 = vpop.permute.xlu0 %2096
    %2098 = vrot.lane.b32.xlu0 %v2021, 104
    %v2099 = vpop.permute.xlu0 %2098
    %2100 = vrot.lane.b32.xlu0 %v2023, 104
    %v2101 = vpop.permute.xlu0 %2100
    %2102 = vrot.lane.b32.xlu0 %v2025, 104
    %v2103 = vpop.permute.xlu0 %2102
    %2104 = vrot.lane.b32.xlu0 %v2027, 104
    %v2105 = vpop.permute.xlu0 %2104
    %2106 = vrot.lane.b32.xlu0 %v2029, 104
    %v2107 = vpop.permute.xlu0 %2106
    %2108 = vrot.lane.b32.xlu0 %v2031, 104
    %v2109 = vpop.permute.xlu0 %2108
    %2110 = vrot.lane.b32.xlu0 %v2033, 104
    %v2111 = vpop.permute.xlu0 %2110
    %2112 = vrot.lane.b32.xlu0 %v2035, 104
    %v2113 = vpop.permute.xlu0 %2112
    %2114 = vrot.lane.b32.xlu0 %v2037, 104
    %v2115 = vpop.permute.xlu0 %2114
    %2116 = vrot.lane.b32.xlu0 %v2039, 104
    %v2117 = vpop.permute.xlu0 %2116
    %2118 = vrot.lane.b32.xlu0 %v2041, 104
    %v2119 = vpop.permute.xlu0 %2118
    %2120 = vrot.lane.b32.xlu0 %v2043, 104
    %v2121 = vpop.permute.xlu0 %2120
    %2122 = vrot.lane.b32.xlu0 %v2045, 104
    %v2123 = vpop.permute.xlu0 %2122
    %v2150 = vsel %vm820, %v2073, 0.0
    %2151 = vadd.xlane.f32.xlu0 %v2150
    %v2152 = vpop.xlane.xlu0 %2151
    %v2153 = vsel %vm820, %v2075, 0.0
    %2154 = vadd.xlane.f32.xlu0 %v2153
    %v2155 = vpop.xlane.xlu0 %2154
    %v2156 = vsel %vm820, %v2077, 0.0
    %2157 = vadd.xlane.f32.xlu0 %v2156
    %v2158 = vpop.xlane.xlu0 %2157
    %v2159 = vsel %vm820, %v2079, 0.0
    %2160 = vadd.xlane.f32.xlu0 %v2159
    %v2161 = vpop.xlane.xlu0 %2160
    %v2162 = vsel %vm820, %v2081, 0.0
    %2163 = vadd.xlane.f32.xlu0 %v2162
    %v2164 = vpop.xlane.xlu0 %2163
    %v2165 = vsel %vm820, %v2083, 0.0
    %2166 = vadd.xlane.f32.xlu0 %v2165
    %v2167 = vpop.xlane.xlu0 %2166
    %v2168 = vsel %vm820, %v2085, 0.0
    %2169 = vadd.xlane.f32.xlu0 %v2168
    %v2170 = vpop.xlane.xlu0 %2169
    %v2171 = vsel %vm820, %v2087, 0.0
    %2172 = vadd.xlane.f32.xlu0 %v2171
    %v2173 = vpop.xlane.xlu0 %2172
    %v2174 = vsel %vm820, %v2089, 0.0
    %2175 = vadd.xlane.f32.xlu0 %v2174
    %v2176 = vpop.xlane.xlu0 %2175
    %v2177 = vsel %vm820, %v2091, 0.0
    %2178 = vadd.xlane.f32.xlu0 %v2177
    %v2179 = vpop.xlane.xlu0 %2178
    %v2180 = vsel %vm820, %v2093, 0.0
    %2181 = vadd.xlane.f32.xlu0 %v2180
    %v2182 = vpop.xlane.xlu0 %2181
    %v2183 = vsel %vm820, %v2095, 0.0
    %2184 = vadd.xlane.f32.xlu0 %v2183
    %v2185 = vpop.xlane.xlu0 %2184
    %v2186 = vsel %vm820, %v2097, 0.0
    %2187 = vadd.xlane.f32.xlu0 %v2186
    %v2188 = vpop.xlane.xlu0 %2187
    %v2189 = vsel %vm820, %v2099, 0.0
    %2190 = vadd.xlane.f32.xlu0 %v2189
    %v2191 = vpop.xlane.xlu0 %2190
    %v2192 = vsel %vm820, %v2101, 0.0
    %2193 = vadd.xlane.f32.xlu0 %v2192
    %v2194 = vpop.xlane.xlu0 %2193
    %v2195 = vsel %vm820, %v2103, 0.0
    %2196 = vadd.xlane.f32.xlu0 %v2195
    %v2197 = vpop.xlane.xlu0 %2196
    %v2198 = vsel %vm820, %v2105, 0.0
    %2199 = vadd.xlane.f32.xlu0 %v2198
    %v2200 = vpop.xlane.xlu0 %2199
    %v2201 = vsel %vm820, %v2107, 0.0
    %2202 = vadd.xlane.f32.xlu0 %v2201
    %v2203 = vpop.xlane.xlu0 %2202
    %v2204 = vsel %vm820, %v2109, 0.0
    %2205 = vadd.xlane.f32.xlu0 %v2204
    %v2206 = vpop.xlane.xlu0 %2205
    %v2207 = vsel %vm820, %v2111, 0.0
    %2208 = vadd.xlane.f32.xlu0 %v2207
    %v2209 = vpop.xlane.xlu0 %2208
    %v2210 = vsel %vm820, %v2113, 0.0
    %2211 = vadd.xlane.f32.xlu0 %v2210
    %v2212 = vpop.xlane.xlu0 %2211
    %v2213 = vsel %vm820, %v2115, 0.0
    %2214 = vadd.xlane.f32.xlu0 %v2213
    %v2215 = vpop.xlane.xlu0 %2214
    %v2216 = vsel %vm820, %v2117, 0.0
    %2217 = vadd.xlane.f32.xlu0 %v2216
    %v2218 = vpop.xlane.xlu0 %2217
    %v2219 = vsel %vm820, %v2119, 0.0
    %2220 = vadd.xlane.f32.xlu0 %v2219
    %v2221 = vpop.xlane.xlu0 %2220
    %v2222 = vsel %vm820, %v2121, 0.0
    %2223 = vadd.xlane.f32.xlu0 %v2222
    %v2224 = vpop.xlane.xlu0 %2223
    %v2225 = vsel %vm820, %v2123, 0.0
    %2226 = vadd.xlane.f32.xlu0 %v2225
    %v2227 = vpop.xlane.xlu0 %2226
    %v2228 = vrcp.pop %v2152
    %v2229 = vmul.f32 %v1995, %v2228
    %v2230 = vrcp.pop %v2155
    %v2231 = vmul.f32 %v1997, %v2230
    %v2232 = vrcp.pop %v2158
    %v2233 = vmul.f32 %v1999, %v2232
    %v2234 = vrcp.pop %v2161
    %v2235 = vmul.f32 %v2001, %v2234
    %v2236 = vrcp.pop %v2164
    %v2237 = vmul.f32 %v2003, %v2236
    %v2238 = vrcp.pop %v2167
    %v2239 = vmul.f32 %v2005, %v2238
    %v2240 = vrcp.pop %v2170
    %v2241 = vmul.f32 %v2007, %v2240
    %v2242 = vrcp.pop %v2173
    %v2243 = vmul.f32 %v2009, %v2242
    %v2244 = vrcp.pop %v2176
    %v2245 = vmul.f32 %v2011, %v2244
    %v2246 = vrcp.pop %v2179
    %v2247 = vmul.f32 %v2013, %v2246
    %v2248 = vrcp.pop %v2182
    %v2249 = vmul.f32 %v2015, %v2248
    %v2250 = vrcp.pop %v2185
    %v2251 = vmul.f32 %v2017, %v2250
    %v2252 = vrcp.pop %v2188
    %v2253 = vmul.f32 %v2019, %v2252
    %v2254 = vrcp.pop %v2191
    %v2255 = vmul.f32 %v2021, %v2254
    %v2256 = vrcp.pop %v2194
    %v2257 = vmul.f32 %v2023, %v2256
    %v2258 = vrcp.pop %v2197
    %v2259 = vmul.f32 %v2025, %v2258
    %v2260 = vrcp.pop %v2200
    %v2261 = vmul.f32 %v2027, %v2260
    %v2262 = vrcp.pop %v2203
    %v2263 = vmul.f32 %v2029, %v2262
    %v2264 = vrcp.pop %v2206
    %v2265 = vmul.f32 %v2031, %v2264
    %v2266 = vrcp.pop %v2209
    %v2267 = vmul.f32 %v2033, %v2266
    %v2268 = vrcp.pop %v2212
    %v2269 = vmul.f32 %v2035, %v2268
    %v2270 = vrcp.pop %v2215
    %v2271 = vmul.f32 %v2037, %v2270
    %v2272 = vrcp.pop %v2218
    %v2273 = vmul.f32 %v2039, %v2272
    %v2274 = vrcp.pop %v2221
    %v2275 = vmul.f32 %v2041, %v2274
    %v2276 = vrcp.pop %v2224
    %v2277 = vmul.f32 %v2043, %v2276
    %v2278 = vrcp.pop %v2227
    %v2279 = vmul.f32 %v2045, %v2278
    %v2280 = vsel %vm820, %v1056, %v1447
    %v2281 = vsel %vm820, %v1058, %v1449
    %v2282 = vsel %vm820, %v1060, %v1451
    %v2283 = vsel %vm820, %v1062, %v1453
    %v2284 = vsel %vm820, %v1064, %v1455
    %v2285 = vsel %vm820, %v1066, %v1457
    %v2286 = vsel %vm820, %v1068, %v1459
    %v2287 = vsel %vm820, %v1070, %v1461
    %v2288 = vsel %vm820, %v1072, %v1463
    %v2289 = vsel %vm820, %v1074, %v1465
    %v2290 = vsel %vm820, %v1076, %v1467
    %v2291 = vsel %vm820, %v1078, %v1469
    %v2292 = vsel %vm820, %v1080, %v1471
    %v2293 = vsel %vm820, %v1082, %v1473
    %v2294 = vsel %vm820, %v1084, %v1475
    %v2295 = vsel %vm820, %v1086, %v1477
    %v2296 = vsel %vm820, %v1088, %v1479
    %v2297 = vsel %vm820, %v1090, %v1481
    %v2298 = vsel %vm820, %v1092, %v1483
    %v2299 = vsel %vm820, %v1094, %v1485
    %v2300 = vsel %vm820, %v1096, %v1487
    %v2301 = vsel %vm820, %v1098, %v1489
    %v2302 = vsel %vm820, %v1100, %v1491
    %v2303 = vsel %vm820, %v1102, %v1493
    %v2304 = vsel %vm820, %v1104, %v1495
    %v2305 = vsel %vm820, %v1106, %v1497
    %vm2306 = vcmask 130048
    %v2307 = vsel %vm2306, %v2280, %v1838
    %v2308 = vsel %vm2306, %v2281, %v1840
    %v2309 = vsel %vm2306, %v2282, %v1842
    %v2310 = vsel %vm2306, %v2283, %v1844
    %v2311 = vsel %vm2306, %v2284, %v1846
    %v2312 = vsel %vm2306, %v2285, %v1848
    %v2313 = vsel %vm2306, %v2286, %v1850
    %v2314 = vsel %vm2306, %v2287, %v1852
    %v2315 = vsel %vm2306, %v2288, %v1854
    %v2316 = vsel %vm2306, %v2289, %v1856
    %v2317 = vsel %vm2306, %v2290, %v1858
    %v2318 = vsel %vm2306, %v2291, %v1860
    %v2319 = vsel %vm2306, %v2292, %v1862
    %v2320 = vsel %vm2306, %v2293, %v1864
    %v2321 = vsel %vm2306, %v2294, %v1866
    %v2322 = vsel %vm2306, %v2295, %v1868
    %v2323 = vsel %vm2306, %v2296, %v1870
    %v2324 = vsel %vm2306, %v2297, %v1872
    %v2325 = vsel %vm2306, %v2298, %v1874
    %v2326 = vsel %vm2306, %v2299, %v1876
    %v2327 = vsel %vm2306, %v2300, %v1878
    %v2328 = vsel %vm2306, %v2301, %v1880
    %v2329 = vsel %vm2306, %v2302, %v1882
    %v2330 = vsel %vm2306, %v2303, %v1884
    %v2331 = vsel %vm2306, %v2304, %v1886
    %v2332 = vsel %vm2306, %v2305, %v1888
    %vm2333 = vcmask 195584
    %v2334 = vsel %vm2333, %v2307, %v2229
    %v2335 = vsel %vm2333, %v2308, %v2231
    %v2336 = vsel %vm2333, %v2309, %v2233
    %v2337 = vsel %vm2333, %v2310, %v2235
    %v2338 = vsel %vm2333, %v2311, %v2237
    %v2339 = vsel %vm2333, %v2312, %v2239
    %v2340 = vsel %vm2333, %v2313, %v2241
    %v2341 = vsel %vm2333, %v2314, %v2243
    %v2342 = vsel %vm2333, %v2315, %v2245
    %v2343 = vsel %vm2333, %v2316, %v2247
    %v2344 = vsel %vm2333, %v2317, %v2249
    %v2345 = vsel %vm2333, %v2318, %v2251
    %v2346 = vsel %vm2333, %v2319, %v2253
    %v2347 = vsel %vm2333, %v2320, %v2255
    %v2348 = vsel %vm2333, %v2321, %v2257
    %v2349 = vsel %vm2333, %v2322, %v2259
    %v2350 = vsel %vm2333, %v2323, %v2261
    %v2351 = vsel %vm2333, %v2324, %v2263
    %v2352 = vsel %vm2333, %v2325, %v2265
    %v2353 = vsel %vm2333, %v2326, %v2267
    %v2354 = vsel %vm2333, %v2327, %v2269
    %v2355 = vsel %vm2333, %v2328, %v2271
    %v2356 = vsel %vm2333, %v2329, %v2273
    %v2357 = vsel %vm2333, %v2330, %v2275
    %v2358 = vsel %vm2333, %v2331, %v2277
    %v2359 = vsel %vm2333, %v2332, %v2279
    %v2360 = vlaneseq
    %v2361 = vshrl.u32 %v2360, 7
    %v2362 = vadd.s32 %v2361, 8
    %v2363 = vadd.s32 %v2361, 16
    %v2364 = vadd.s32 %v2361, 24
    %v2365 = vadd.s32 %v2361, 32
    %v2366 = vadd.s32 %v2361, 40
    %v2367 = vadd.s32 %v2361, 48
    %v2368 = vadd.s32 %v2361, 56
    %v2369 = vadd.s32 %v2361, 64
    %v2370 = vadd.s32 %v2361, 72
    %v2371 = vadd.s32 %v2361, 80
    %v2372 = vadd.s32 %v2361, 88
    %v2373 = vadd.s32 %v2361, 96
    %v2374 = vadd.s32 %v2361, 104
    %v2375 = vadd.s32 %v2361, 112
    %v2376 = vadd.s32 %v2361, 120
    %v2377 = vadd.s32 %v2361, 128
    %v2378 = vadd.s32 %v2361, 136
    %v2379 = vadd.s32 %v2361, 144
    %v2380 = vadd.s32 %v2361, 152
    %v2381 = vadd.s32 %v2361, 160
    %v2382 = vadd.s32 %v2361, 168
    %v2383 = vadd.s32 %v2361, 176
    %v2384 = vadd.s32 %v2361, 184
    %v2385 = vadd.s32 %v2361, 192
    %v2386 = vadd.s32 %v2361, 200
    %s2387 = smul.u32 0, 208
    %v2388 = vstv %s2387
    %v2389 = vadd.s32 %v2361, %v2388
    %v2390 = vadd.s32 %v2362, %v2388
    %v2391 = vadd.s32 %v2363, %v2388
    %v2392 = vadd.s32 %v2364, %v2388
    %v2393 = vadd.s32 %v2365, %v2388
    %v2394 = vadd.s32 %v2366, %v2388
    %v2395 = vadd.s32 %v2367, %v2388
    %v2396 = vadd.s32 %v2368, %v2388
    %v2397 = vadd.s32 %v2369, %v2388
    %v2398 = vadd.s32 %v2370, %v2388
    %v2399 = vadd.s32 %v2371, %v2388
    %v2400 = vadd.s32 %v2372, %v2388
    %v2401 = vadd.s32 %v2373, %v2388
    %v2402 = vadd.s32 %v2374, %v2388
    %v2403 = vadd.s32 %v2375, %v2388
    %v2404 = vadd.s32 %v2376, %v2388
    %v2405 = vadd.s32 %v2377, %v2388
    %v2406 = vadd.s32 %v2378, %v2388
    %v2407 = vadd.s32 %v2379, %v2388
    %v2408 = vadd.s32 %v2380, %v2388
    %v2409 = vadd.s32 %v2381, %v2388
    %v2410 = vadd.s32 %v2382, %v2388
    %v2411 = vadd.s32 %v2383, %v2388
    %v2412 = vadd.s32 %v2384, %v2388
    %v2413 = vadd.s32 %v2385, %v2388
    %v2414 = vadd.s32 %v2386, %v2388
    %v2415 = vlaneseq
    %v2416 = vand.u32 %v2415, 127
    %v2417 = vmul.u32 %v2389, 32
    %v2418 = vmul.u32 %v2390, 32
    %v2419 = vmul.u32 %v2391, 32
    %v2420 = vmul.u32 %v2392, 32
    %v2421 = vmul.u32 %v2393, 32
    %v2422 = vmul.u32 %v2394, 32
    %v2423 = vmul.u32 %v2395, 32
    %v2424 = vmul.u32 %v2396, 32
    %v2425 = vmul.u32 %v2397, 32
    %v2426 = vmul.u32 %v2398, 32
    %v2427 = vmul.u32 %v2399, 32
    %v2428 = vmul.u32 %v2400, 32
    %v2429 = vmul.u32 %v2401, 32
    %v2430 = vmul.u32 %v2402, 32
    %v2431 = vmul.u32 %v2403, 32
    %v2432 = vmul.u32 %v2404, 32
    %v2433 = vmul.u32 %v2405, 32
    %v2434 = vmul.u32 %v2406, 32
    %v2435 = vmul.u32 %v2407, 32
    %v2436 = vmul.u32 %v2408, 32
    %v2437 = vmul.u32 %v2409, 32
    %v2438 = vmul.u32 %v2410, 32
    %v2439 = vmul.u32 %v2411, 32
    %v2440 = vmul.u32 %v2412, 32
    %v2441 = vmul.u32 %v2413, 32
    %v2442 = vmul.u32 %v2414, 32
    %v2443 = vadd.s32 %v2417, %v2416
    %v2444 = vadd.s32 %v2418, %v2416
    %v2445 = vadd.s32 %v2419, %v2416
    %v2446 = vadd.s32 %v2420, %v2416
    %v2447 = vadd.s32 %v2421, %v2416
    %v2448 = vadd.s32 %v2422, %v2416
    %v2449 = vadd.s32 %v2423, %v2416
    %v2450 = vadd.s32 %v2424, %v2416
    %v2451 = vadd.s32 %v2425, %v2416
    %v2452 = vadd.s32 %v2426, %v2416
    %v2453 = vadd.s32 %v2427, %v2416
    %v2454 = vadd.s32 %v2428, %v2416
    %v2455 = vadd.s32 %v2429, %v2416
    %v2456 = vadd.s32 %v2430, %v2416
    %v2457 = vadd.s32 %v2431, %v2416
    %v2458 = vadd.s32 %v2432, %v2416
    %v2459 = vadd.s32 %v2433, %v2416
    %v2460 = vadd.s32 %v2434, %v2416
    %v2461 = vadd.s32 %v2435, %v2416
    %v2462 = vadd.s32 %v2436, %v2416
    %v2463 = vadd.s32 %v2437, %v2416
    %v2464 = vadd.s32 %v2438, %v2416
    %v2465 = vadd.s32 %v2439, %v2416
    %v2466 = vadd.s32 %v2440, %v2416
    %v2467 = vadd.s32 %v2441, %v2416
    %v2468 = vadd.s32 %v2442, %v2416
    %v2469 = vadd.s32 %v2443, 1234
    %v2470 = vadd.s32 %v2444, 1234
    %v2471 = vadd.s32 %v2445, 1234
    %v2472 = vadd.s32 %v2446, 1234
    %v2473 = vadd.s32 %v2447, 1234
    %v2474 = vadd.s32 %v2448, 1234
    %v2475 = vadd.s32 %v2449, 1234
    %v2476 = vadd.s32 %v2450, 1234
    %v2477 = vadd.s32 %v2451, 1234
    %v2478 = vadd.s32 %v2452, 1234
    %v2479 = vadd.s32 %v2453, 1234
    %v2480 = vadd.s32 %v2454, 1234
    %v2481 = vadd.s32 %v2455, 1234
    %v2482 = vadd.s32 %v2456, 1234
    %v2483 = vadd.s32 %v2457, 1234
    %v2484 = vadd.s32 %v2458, 1234
    %v2485 = vadd.s32 %v2459, 1234
    %v2486 = vadd.s32 %v2460, 1234
    %v2487 = vadd.s32 %v2461, 1234
    %v2488 = vadd.s32 %v2462, 1234
    %v2489 = vadd.s32 %v2463, 1234
    %v2490 = vadd.s32 %v2464, 1234
    %v2491 = vadd.s32 %v2465, 1234
    %v2492 = vadd.s32 %v2466, 1234
    %v2493 = vadd.s32 %v2467, 1234
    %v2494 = vadd.s32 %v2468, 1234
    %v2495 = vshra.s32 %v2469, 16
    %v2496 = vshra.s32 %v2470, 16
    %v2497 = vshra.s32 %v2471, 16
    %v2498 = vshra.s32 %v2472, 16
    %v2499 = vshra.s32 %v2473, 16
    %v2500 = vshra.s32 %v2474, 16
    %v2501 = vshra.s32 %v2475, 16
    %v2502 = vshra.s32 %v2476, 16
    %v2503 = vshra.s32 %v2477, 16
    %v2504 = vshra.s32 %v2478, 16
    %v2505 = vshra.s32 %v2479, 16
    %v2506 = vshra.s32 %v2480, 16
    %v2507 = vshra.s32 %v2481, 16
    %v2508 = vshra.s32 %v2482, 16
    %v2509 = vshra.s32 %v2483, 16
    %v2510 = vshra.s32 %v2484, 16
    %v2511 = vshra.s32 %v2485, 16
    %v2512 = vshra.s32 %v2486, 16
    %v2513 = vshra.s32 %v2487, 16
    %v2514 = vshra.s32 %v2488, 16
    %v2515 = vshra.s32 %v2489, 16
    %v2516 = vshra.s32 %v2490, 16
    %v2517 = vshra.s32 %v2491, 16
    %v2518 = vshra.s32 %v2492, 16
    %v2519 = vshra.s32 %v2493, 16
    %v2520 = vshra.s32 %v2494, 16
    %v2521 = vand.u32 %v2495, 65535
    %v2522 = vand.u32 %v2496, 65535
    %v2523 = vand.u32 %v2497, 65535
    %v2524 = vand.u32 %v2498, 65535
    %v2525 = vand.u32 %v2499, 65535
    %v2526 = vand.u32 %v2500, 65535
    %v2527 = vand.u32 %v2501, 65535
    %v2528 = vand.u32 %v2502, 65535
    %v2529 = vand.u32 %v2503, 65535
    %v2530 = vand.u32 %v2504, 65535
    %v2531 = vand.u32 %v2505, 65535
    %v2532 = vand.u32 %v2506, 65535
    %v2533 = vand.u32 %v2507, 65535
    %v2534 = vand.u32 %v2508, 65535
    %v2535 = vand.u32 %v2509, 65535
    %v2536 = vand.u32 %v2510, 65535
    %v2537 = vand.u32 %v2511, 65535
    %v2538 = vand.u32 %v2512, 65535
    %v2539 = vand.u32 %v2513, 65535
    %v2540 = vand.u32 %v2514, 65535
    %v2541 = vand.u32 %v2515, 65535
    %v2542 = vand.u32 %v2516, 65535
    %v2543 = vand.u32 %v2517, 65535
    %v2544 = vand.u32 %v2518, 65535
    %v2545 = vand.u32 %v2519, 65535
    %v2546 = vand.u32 %v2520, 65535
    %v2547 = vxor.u32 %v2469, %v2521
    %v2548 = vxor.u32 %v2470, %v2522
    %v2549 = vxor.u32 %v2471, %v2523
    %v2550 = vxor.u32 %v2472, %v2524
    %v2551 = vxor.u32 %v2473, %v2525
    %v2552 = vxor.u32 %v2474, %v2526
    %v2553 = vxor.u32 %v2475, %v2527
    %v2554 = vxor.u32 %v2476, %v2528
    %v2555 = vxor.u32 %v2477, %v2529
    %v2556 = vxor.u32 %v2478, %v2530
    %v2557 = vxor.u32 %v2479, %v2531
    %v2558 = vxor.u32 %v2480, %v2532
    %v2559 = vxor.u32 %v2481, %v2533
    %v2560 = vxor.u32 %v2482, %v2534
    %v2561 = vxor.u32 %v2483, %v2535
    %v2562 = vxor.u32 %v2484, %v2536
    %v2563 = vxor.u32 %v2485, %v2537
    %v2564 = vxor.u32 %v2486, %v2538
    %v2565 = vxor.u32 %v2487, %v2539
    %v2566 = vxor.u32 %v2488, %v2540
    %v2567 = vxor.u32 %v2489, %v2541
    %v2568 = vxor.u32 %v2490, %v2542
    %v2569 = vxor.u32 %v2491, %v2543
    %v2570 = vxor.u32 %v2492, %v2544
    %v2571 = vxor.u32 %v2493, %v2545
    %v2572 = vxor.u32 %v2494, %v2546
    %v2573 = vmul.u32 %v2547, 2146121005
    %v2574 = vmul.u32 %v2548, 2146121005
    %v2575 = vmul.u32 %v2549, 2146121005
    %v2576 = vmul.u32 %v2550, 2146121005
    %v2577 = vmul.u32 %v2551, 2146121005
    %v2578 = vmul.u32 %v2552, 2146121005
    %v2579 = vmul.u32 %v2553, 2146121005
    %v2580 = vmul.u32 %v2554, 2146121005
    %v2581 = vmul.u32 %v2555, 2146121005
    %v2582 = vmul.u32 %v2556, 2146121005
    %v2583 = vmul.u32 %v2557, 2146121005
    %v2584 = vmul.u32 %v2558, 2146121005
    %v2585 = vmul.u32 %v2559, 2146121005
    %v2586 = vmul.u32 %v2560, 2146121005
    %v2587 = vmul.u32 %v2561, 2146121005
    %v2588 = vmul.u32 %v2562, 2146121005
    %v2589 = vmul.u32 %v2563, 2146121005
    %v2590 = vmul.u32 %v2564, 2146121005
    %v2591 = vmul.u32 %v2565, 2146121005
    %v2592 = vmul.u32 %v2566, 2146121005
    %v2593 = vmul.u32 %v2567, 2146121005
    %v2594 = vmul.u32 %v2568, 2146121005
    %v2595 = vmul.u32 %v2569, 2146121005
    %v2596 = vmul.u32 %v2570, 2146121005
    %v2597 = vmul.u32 %v2571, 2146121005
    %v2598 = vmul.u32 %v2572, 2146121005
    %v2599 = vshra.s32 %v2573, 15
    %v2600 = vshra.s32 %v2574, 15
    %v2601 = vshra.s32 %v2575, 15
    %v2602 = vshra.s32 %v2576, 15
    %v2603 = vshra.s32 %v2577, 15
    %v2604 = vshra.s32 %v2578, 15
    %v2605 = vshra.s32 %v2579, 15
    %v2606 = vshra.s32 %v2580, 15
    %v2607 = vshra.s32 %v2581, 15
    %v2608 = vshra.s32 %v2582, 15
    %v2609 = vshra.s32 %v2583, 15
    %v2610 = vshra.s32 %v2584, 15
    %v2611 = vshra.s32 %v2585, 15
    %v2612 = vshra.s32 %v2586, 15
    %v2613 = vshra.s32 %v2587, 15
    %v2614 = vshra.s32 %v2588, 15
    %v2615 = vshra.s32 %v2589, 15
    %v2616 = vshra.s32 %v2590, 15
    %v2617 = vshra.s32 %v2591, 15
    %v2618 = vshra.s32 %v2592, 15
    %v2619 = vshra.s32 %v2593, 15
    %v2620 = vshra.s32 %v2594, 15
    %v2621 = vshra.s32 %v2595, 15
    %v2622 = vshra.s32 %v2596, 15
    %v2623 = vshra.s32 %v2597, 15
    %v2624 = vshra.s32 %v2598, 15
    %v2625 = vand.u32 %v2599, 131071
    %v2626 = vand.u32 %v2600, 131071
    %v2627 = vand.u32 %v2601, 131071
    %v2628 = vand.u32 %v2602, 131071
    %v2629 = vand.u32 %v2603, 131071
    %v2630 = vand.u32 %v2604, 131071
    %v2631 = vand.u32 %v2605, 131071
    %v2632 = vand.u32 %v2606, 131071
    %v2633 = vand.u32 %v2607, 131071
    %v2634 = vand.u32 %v2608, 131071
    %v2635 = vand.u32 %v2609, 131071
    %v2636 = vand.u32 %v2610, 131071
    %v2637 = vand.u32 %v2611, 131071
    %v2638 = vand.u32 %v2612, 131071
    %v2639 = vand.u32 %v2613, 131071
    %v2640 = vand.u32 %v2614, 131071
    %v2641 = vand.u32 %v2615, 131071
    %v2642 = vand.u32 %v2616, 131071
    %v2643 = vand.u32 %v2617, 131071
    %v2644 = vand.u32 %v2618, 131071
    %v2645 = vand.u32 %v2619, 131071
    %v2646 = vand.u32 %v2620, 131071
    %v2647 = vand.u32 %v2621, 131071
    %v2648 = vand.u32 %v2622, 131071
    %v2649 = vand.u32 %v2623, 131071
    %v2650 = vand.u32 %v2624, 131071
    %v2651 = vxor.u32 %v2573, %v2625
    %v2652 = vxor.u32 %v2574, %v2626
    %v2653 = vxor.u32 %v2575, %v2627
    %v2654 = vxor.u32 %v2576, %v2628
    %v2655 = vxor.u32 %v2577, %v2629
    %v2656 = vxor.u32 %v2578, %v2630
    %v2657 = vxor.u32 %v2579, %v2631
    %v2658 = vxor.u32 %v2580, %v2632
    %v2659 = vxor.u32 %v2581, %v2633
    %v2660 = vxor.u32 %v2582, %v2634
    %v2661 = vxor.u32 %v2583, %v2635
    %v2662 = vxor.u32 %v2584, %v2636
    %v2663 = vxor.u32 %v2585, %v2637
    %v2664 = vxor.u32 %v2586, %v2638
    %v2665 = vxor.u32 %v2587, %v2639
    %v2666 = vxor.u32 %v2588, %v2640
    %v2667 = vxor.u32 %v2589, %v2641
    %v2668 = vxor.u32 %v2590, %v2642
    %v2669 = vxor.u32 %v2591, %v2643
    %v2670 = vxor.u32 %v2592, %v2644
    %v2671 = vxor.u32 %v2593, %v2645
    %v2672 = vxor.u32 %v2594, %v2646
    %v2673 = vxor.u32 %v2595, %v2647
    %v2674 = vxor.u32 %v2596, %v2648
    %v2675 = vxor.u32 %v2597, %v2649
    %v2676 = vxor.u32 %v2598, %v2650
    %v2677 = vmul.u32 %v2651, 2221667979
    %v2678 = vmul.u32 %v2652, 2221667979
    %v2679 = vmul.u32 %v2653, 2221667979
    %v2680 = vmul.u32 %v2654, 2221667979
    %v2681 = vmul.u32 %v2655, 2221667979
    %v2682 = vmul.u32 %v2656, 2221667979
    %v2683 = vmul.u32 %v2657, 2221667979
    %v2684 = vmul.u32 %v2658, 2221667979
    %v2685 = vmul.u32 %v2659, 2221667979
    %v2686 = vmul.u32 %v2660, 2221667979
    %v2687 = vmul.u32 %v2661, 2221667979
    %v2688 = vmul.u32 %v2662, 2221667979
    %v2689 = vmul.u32 %v2663, 2221667979
    %v2690 = vmul.u32 %v2664, 2221667979
    %v2691 = vmul.u32 %v2665, 2221667979
    %v2692 = vmul.u32 %v2666, 2221667979
    %v2693 = vmul.u32 %v2667, 2221667979
    %v2694 = vmul.u32 %v2668, 2221667979
    %v2695 = vmul.u32 %v2669, 2221667979
    %v2696 = vmul.u32 %v2670, 2221667979
    %v2697 = vmul.u32 %v2671, 2221667979
    %v2698 = vmul.u32 %v2672, 2221667979
    %v2699 = vmul.u32 %v2673, 2221667979
    %v2700 = vmul.u32 %v2674, 2221667979
    %v2701 = vmul.u32 %v2675, 2221667979
    %v2702 = vmul.u32 %v2676, 2221667979
    %v2703 = vshra.s32 %v2677, 16
    %v2704 = vshra.s32 %v2678, 16
    %v2705 = vshra.s32 %v2679, 16
    %v2706 = vshra.s32 %v2680, 16
    %v2707 = vshra.s32 %v2681, 16
    %v2708 = vshra.s32 %v2682, 16
    %v2709 = vshra.s32 %v2683, 16
    %v2710 = vshra.s32 %v2684, 16
    %v2711 = vshra.s32 %v2685, 16
    %v2712 = vshra.s32 %v2686, 16
    %v2713 = vshra.s32 %v2687, 16
    %v2714 = vshra.s32 %v2688, 16
    %v2715 = vshra.s32 %v2689, 16
    %v2716 = vshra.s32 %v2690, 16
    %v2717 = vshra.s32 %v2691, 16
    %v2718 = vshra.s32 %v2692, 16
    %v2719 = vshra.s32 %v2693, 16
    %v2720 = vshra.s32 %v2694, 16
    %v2721 = vshra.s32 %v2695, 16
    %v2722 = vshra.s32 %v2696, 16
    %v2723 = vshra.s32 %v2697, 16
    %v2724 = vshra.s32 %v2698, 16
    %v2725 = vshra.s32 %v2699, 16
    %v2726 = vshra.s32 %v2700, 16
    %v2727 = vshra.s32 %v2701, 16
    %v2728 = vshra.s32 %v2702, 16
    %v2729 = vand.u32 %v2703, 65535
    %v2730 = vand.u32 %v2704, 65535
    %v2731 = vand.u32 %v2705, 65535
    %v2732 = vand.u32 %v2706, 65535
    %v2733 = vand.u32 %v2707, 65535
    %v2734 = vand.u32 %v2708, 65535
    %v2735 = vand.u32 %v2709, 65535
    %v2736 = vand.u32 %v2710, 65535
    %v2737 = vand.u32 %v2711, 65535
    %v2738 = vand.u32 %v2712, 65535
    %v2739 = vand.u32 %v2713, 65535
    %v2740 = vand.u32 %v2714, 65535
    %v2741 = vand.u32 %v2715, 65535
    %v2742 = vand.u32 %v2716, 65535
    %v2743 = vand.u32 %v2717, 65535
    %v2744 = vand.u32 %v2718, 65535
    %v2745 = vand.u32 %v2719, 65535
    %v2746 = vand.u32 %v2720, 65535
    %v2747 = vand.u32 %v2721, 65535
    %v2748 = vand.u32 %v2722, 65535
    %v2749 = vand.u32 %v2723, 65535
    %v2750 = vand.u32 %v2724, 65535
    %v2751 = vand.u32 %v2725, 65535
    %v2752 = vand.u32 %v2726, 65535
    %v2753 = vand.u32 %v2727, 65535
    %v2754 = vand.u32 %v2728, 65535
    %v2755 = vxor.u32 %v2677, %v2729
    %v2756 = vxor.u32 %v2678, %v2730
    %v2757 = vxor.u32 %v2679, %v2731
    %v2758 = vxor.u32 %v2680, %v2732
    %v2759 = vxor.u32 %v2681, %v2733
    %v2760 = vxor.u32 %v2682, %v2734
    %v2761 = vxor.u32 %v2683, %v2735
    %v2762 = vxor.u32 %v2684, %v2736
    %v2763 = vxor.u32 %v2685, %v2737
    %v2764 = vxor.u32 %v2686, %v2738
    %v2765 = vxor.u32 %v2687, %v2739
    %v2766 = vxor.u32 %v2688, %v2740
    %v2767 = vxor.u32 %v2689, %v2741
    %v2768 = vxor.u32 %v2690, %v2742
    %v2769 = vxor.u32 %v2691, %v2743
    %v2770 = vxor.u32 %v2692, %v2744
    %v2771 = vxor.u32 %v2693, %v2745
    %v2772 = vxor.u32 %v2694, %v2746
    %v2773 = vxor.u32 %v2695, %v2747
    %v2774 = vxor.u32 %v2696, %v2748
    %v2775 = vxor.u32 %v2697, %v2749
    %v2776 = vxor.u32 %v2698, %v2750
    %v2777 = vxor.u32 %v2699, %v2751
    %v2778 = vxor.u32 %v2700, %v2752
    %v2779 = vxor.u32 %v2701, %v2753
    %v2780 = vxor.u32 %v2702, %v2754
    %v2781 = vand.u32 %v2755, 8388607
    %v2782 = vand.u32 %v2756, 8388607
    %v2783 = vand.u32 %v2757, 8388607
    %v2784 = vand.u32 %v2758, 8388607
    %v2785 = vand.u32 %v2759, 8388607
    %v2786 = vand.u32 %v2760, 8388607
    %v2787 = vand.u32 %v2761, 8388607
    %v2788 = vand.u32 %v2762, 8388607
    %v2789 = vand.u32 %v2763, 8388607
    %v2790 = vand.u32 %v2764, 8388607
    %v2791 = vand.u32 %v2765, 8388607
    %v2792 = vand.u32 %v2766, 8388607
    %v2793 = vand.u32 %v2767, 8388607
    %v2794 = vand.u32 %v2768, 8388607
    %v2795 = vand.u32 %v2769, 8388607
    %v2796 = vand.u32 %v2770, 8388607
    %v2797 = vand.u32 %v2771, 8388607
    %v2798 = vand.u32 %v2772, 8388607
    %v2799 = vand.u32 %v2773, 8388607
    %v2800 = vand.u32 %v2774, 8388607
    %v2801 = vand.u32 %v2775, 8388607
    %v2802 = vand.u32 %v2776, 8388607
    %v2803 = vand.u32 %v2777, 8388607
    %v2804 = vand.u32 %v2778, 8388607
    %v2805 = vand.u32 %v2779, 8388607
    %v2806 = vand.u32 %v2780, 8388607
    %v2807 = vor.u32 %v2781, 1065353216
    %v2808 = vor.u32 %v2782, 1065353216
    %v2809 = vor.u32 %v2783, 1065353216
    %v2810 = vor.u32 %v2784, 1065353216
    %v2811 = vor.u32 %v2785, 1065353216
    %v2812 = vor.u32 %v2786, 1065353216
    %v2813 = vor.u32 %v2787, 1065353216
    %v2814 = vor.u32 %v2788, 1065353216
    %v2815 = vor.u32 %v2789, 1065353216
    %v2816 = vor.u32 %v2790, 1065353216
    %v2817 = vor.u32 %v2791, 1065353216
    %v2818 = vor.u32 %v2792, 1065353216
    %v2819 = vor.u32 %v2793, 1065353216
    %v2820 = vor.u32 %v2794, 1065353216
    %v2821 = vor.u32 %v2795, 1065353216
    %v2822 = vor.u32 %v2796, 1065353216
    %v2823 = vor.u32 %v2797, 1065353216
    %v2824 = vor.u32 %v2798, 1065353216
    %v2825 = vor.u32 %v2799, 1065353216
    %v2826 = vor.u32 %v2800, 1065353216
    %v2827 = vor.u32 %v2801, 1065353216
    %v2828 = vor.u32 %v2802, 1065353216
    %v2829 = vor.u32 %v2803, 1065353216
    %v2830 = vor.u32 %v2804, 1065353216
    %v2831 = vor.u32 %v2805, 1065353216
    %v2832 = vor.u32 %v2806, 1065353216
    %v2859 = vsub.f32 %v2807, 1.0
    %v2860 = vsub.f32 %v2808, 1.0
    %v2861 = vsub.f32 %v2809, 1.0
    %v2862 = vsub.f32 %v2810, 1.0
    %v2863 = vsub.f32 %v2811, 1.0
    %v2864 = vsub.f32 %v2812, 1.0
    %v2865 = vsub.f32 %v2813, 1.0
    %v2866 = vsub.f32 %v2814, 1.0
    %v2867 = vsub.f32 %v2815, 1.0
    %v2868 = vsub.f32 %v2816, 1.0
    %v2869 = vsub.f32 %v2817, 1.0
    %v2870 = vsub.f32 %v2818, 1.0
    %v2871 = vsub.f32 %v2819, 1.0
    %v2872 = vsub.f32 %v2820, 1.0
    %v2873 = vsub.f32 %v2821, 1.0
    %v2874 = vsub.f32 %v2822, 1.0
    %v2875 = vsub.f32 %v2823, 1.0
    %v2876 = vsub.f32 %v2824, 1.0
    %v2877 = vsub.f32 %v2825, 1.0
    %v2878 = vsub.f32 %v2826, 1.0
    %v2879 = vsub.f32 %v2827, 1.0
    %v2880 = vsub.f32 %v2828, 1.0
    %v2881 = vsub.f32 %v2829, 1.0
    %v2882 = vsub.f32 %v2830, 1.0
    %v2883 = vsub.f32 %v2831, 1.0
    %v2884 = vsub.f32 %v2832, 1.0
    %v2885 = vadd.f32 %v2859, 1e-20
    %v2886 = vadd.f32 %v2860, 1e-20
    %v2887 = vadd.f32 %v2861, 1e-20
    %v2888 = vadd.f32 %v2862, 1e-20
    %v2889 = vadd.f32 %v2863, 1e-20
    %v2890 = vadd.f32 %v2864, 1e-20
    %v2891 = vadd.f32 %v2865, 1e-20
    %v2892 = vadd.f32 %v2866, 1e-20
    %v2893 = vadd.f32 %v2867, 1e-20
    %v2894 = vadd.f32 %v2868, 1e-20
    %v2895 = vadd.f32 %v2869, 1e-20
    %v2896 = vadd.f32 %v2870, 1e-20
    %v2897 = vadd.f32 %v2871, 1e-20
    %v2898 = vadd.f32 %v2872, 1e-20
    %v2899 = vadd.f32 %v2873, 1e-20
    %v2900 = vadd.f32 %v2874, 1e-20
    %v2901 = vadd.f32 %v2875, 1e-20
    %v2902 = vadd.f32 %v2876, 1e-20
    %v2903 = vadd.f32 %v2877, 1e-20
    %v2904 = vadd.f32 %v2878, 1e-20
    %v2905 = vadd.f32 %v2879, 1e-20
    %v2906 = vadd.f32 %v2880, 1e-20
    %v2907 = vadd.f32 %v2881, 1e-20
    %v2908 = vadd.f32 %v2882, 1e-20
    %v2909 = vadd.f32 %v2883, 1e-20
    %v2910 = vadd.f32 %v2884, 1e-20
    %v2911 = vlog2.pop %v2885
    %v2912 = vmul.f32 %v2911, 0.6931472
    %v2913 = vlog2.pop %v2886
    %v2914 = vmul.f32 %v2913, 0.6931472
    %v2915 = vlog2.pop %v2887
    %v2916 = vmul.f32 %v2915, 0.6931472
    %v2917 = vlog2.pop %v2888
    %v2918 = vmul.f32 %v2917, 0.6931472
    %v2919 = vlog2.pop %v2889
    %v2920 = vmul.f32 %v2919, 0.6931472
    %v2921 = vlog2.pop %v2890
    %v2922 = vmul.f32 %v2921, 0.6931472
    %v2923 = vlog2.pop %v2891
    %v2924 = vmul.f32 %v2923, 0.6931472
    %v2925 = vlog2.pop %v2892
    %v2926 = vmul.f32 %v2925, 0.6931472
    %v2927 = vlog2.pop %v2893
    %v2928 = vmul.f32 %v2927, 0.6931472
    %v2929 = vlog2.pop %v2894
    %v2930 = vmul.f32 %v2929, 0.6931472
    %v2931 = vlog2.pop %v2895
    %v2932 = vmul.f32 %v2931, 0.6931472
    %v2933 = vlog2.pop %v2896
    %v2934 = vmul.f32 %v2933, 0.6931472
    %v2935 = vlog2.pop %v2897
    %v2936 = vmul.f32 %v2935, 0.6931472
    %v2937 = vlog2.pop %v2898
    %v2938 = vmul.f32 %v2937, 0.6931472
    %v2939 = vlog2.pop %v2899
    %v2940 = vmul.f32 %v2939, 0.6931472
    %v2941 = vlog2.pop %v2900
    %v2942 = vmul.f32 %v2941, 0.6931472
    %v2943 = vlog2.pop %v2901
    %v2944 = vmul.f32 %v2943, 0.6931472
    %v2945 = vlog2.pop %v2902
    %v2946 = vmul.f32 %v2945, 0.6931472
    %v2947 = vlog2.pop %v2903
    %v2948 = vmul.f32 %v2947, 0.6931472
    %v2949 = vlog2.pop %v2904
    %v2950 = vmul.f32 %v2949, 0.6931472
    %v2951 = vlog2.pop %v2905
    %v2952 = vmul.f32 %v2951, 0.6931472
    %v2953 = vlog2.pop %v2906
    %v2954 = vmul.f32 %v2953, 0.6931472
    %v2955 = vlog2.pop %v2907
    %v2956 = vmul.f32 %v2955, 0.6931472
    %v2957 = vlog2.pop %v2908
    %v2958 = vmul.f32 %v2957, 0.6931472
    %v2959 = vlog2.pop %v2909
    %v2960 = vmul.f32 %v2959, 0.6931472
    %v2961 = vlog2.pop %v2910
    %v2962 = vmul.f32 %v2961, 0.6931472
    %v2963 = vsub.f32 0.0, %v2912
    %v2964 = vsub.f32 0.0, %v2914
    %v2965 = vsub.f32 0.0, %v2916
    %v2966 = vsub.f32 0.0, %v2918
    %v2967 = vsub.f32 0.0, %v2920
    %v2968 = vsub.f32 0.0, %v2922
    %v2969 = vsub.f32 0.0, %v2924
    %v2970 = vsub.f32 0.0, %v2926
    %v2971 = vsub.f32 0.0, %v2928
    %v2972 = vsub.f32 0.0, %v2930
    %v2973 = vsub.f32 0.0, %v2932
    %v2974 = vsub.f32 0.0, %v2934
    %v2975 = vsub.f32 0.0, %v2936
    %v2976 = vsub.f32 0.0, %v2938
    %v2977 = vsub.f32 0.0, %v2940
    %v2978 = vsub.f32 0.0, %v2942
    %v2979 = vsub.f32 0.0, %v2944
    %v2980 = vsub.f32 0.0, %v2946
    %v2981 = vsub.f32 0.0, %v2948
    %v2982 = vsub.f32 0.0, %v2950
    %v2983 = vsub.f32 0.0, %v2952
    %v2984 = vsub.f32 0.0, %v2954
    %v2985 = vsub.f32 0.0, %v2956
    %v2986 = vsub.f32 0.0, %v2958
    %v2987 = vsub.f32 0.0, %v2960
    %v2988 = vsub.f32 0.0, %v2962
    %v2989 = vadd.f32 %v2963, 1e-20
    %v2990 = vadd.f32 %v2964, 1e-20
    %v2991 = vadd.f32 %v2965, 1e-20
    %v2992 = vadd.f32 %v2966, 1e-20
    %v2993 = vadd.f32 %v2967, 1e-20
    %v2994 = vadd.f32 %v2968, 1e-20
    %v2995 = vadd.f32 %v2969, 1e-20
    %v2996 = vadd.f32 %v2970, 1e-20
    %v2997 = vadd.f32 %v2971, 1e-20
    %v2998 = vadd.f32 %v2972, 1e-20
    %v2999 = vadd.f32 %v2973, 1e-20
    %v3000 = vadd.f32 %v2974, 1e-20
    %v3001 = vadd.f32 %v2975, 1e-20
    %v3002 = vadd.f32 %v2976, 1e-20
    %v3003 = vadd.f32 %v2977, 1e-20
    %v3004 = vadd.f32 %v2978, 1e-20
    %v3005 = vadd.f32 %v2979, 1e-20
    %v3006 = vadd.f32 %v2980, 1e-20
    %v3007 = vadd.f32 %v2981, 1e-20
    %v3008 = vadd.f32 %v2982, 1e-20
    %v3009 = vadd.f32 %v2983, 1e-20
    %v3010 = vadd.f32 %v2984, 1e-20
    %v3011 = vadd.f32 %v2985, 1e-20
    %v3012 = vadd.f32 %v2986, 1e-20
    %v3013 = vadd.f32 %v2987, 1e-20
    %v3014 = vadd.f32 %v2988, 1e-20
    %v3015 = vlog2.pop %v2989
    %v3016 = vmul.f32 %v3015, 0.6931472
    %v3017 = vlog2.pop %v2990
    %v3018 = vmul.f32 %v3017, 0.6931472
    %v3019 = vlog2.pop %v2991
    %v3020 = vmul.f32 %v3019, 0.6931472
    %v3021 = vlog2.pop %v2992
    %v3022 = vmul.f32 %v3021, 0.6931472
    %v3023 = vlog2.pop %v2993
    %v3024 = vmul.f32 %v3023, 0.6931472
    %v3025 = vlog2.pop %v2994
    %v3026 = vmul.f32 %v3025, 0.6931472
    %v3027 = vlog2.pop %v2995
    %v3028 = vmul.f32 %v3027, 0.6931472
    %v3029 = vlog2.pop %v2996
    %v3030 = vmul.f32 %v3029, 0.6931472
    %v3031 = vlog2.pop %v2997
    %v3032 = vmul.f32 %v3031, 0.6931472
    %v3033 = vlog2.pop %v2998
    %v3034 = vmul.f32 %v3033, 0.6931472
    %v3035 = vlog2.pop %v2999
    %v3036 = vmul.f32 %v3035, 0.6931472
    %v3037 = vlog2.pop %v3000
    %v3038 = vmul.f32 %v3037, 0.6931472
    %v3039 = vlog2.pop %v3001
    %v3040 = vmul.f32 %v3039, 0.6931472
    %v3041 = vlog2.pop %v3002
    %v3042 = vmul.f32 %v3041, 0.6931472
    %v3043 = vlog2.pop %v3003
    %v3044 = vmul.f32 %v3043, 0.6931472
    %v3045 = vlog2.pop %v3004
    %v3046 = vmul.f32 %v3045, 0.6931472
    %v3047 = vlog2.pop %v3005
    %v3048 = vmul.f32 %v3047, 0.6931472
    %v3049 = vlog2.pop %v3006
    %v3050 = vmul.f32 %v3049, 0.6931472
    %v3051 = vlog2.pop %v3007
    %v3052 = vmul.f32 %v3051, 0.6931472
    %v3053 = vlog2.pop %v3008
    %v3054 = vmul.f32 %v3053, 0.6931472
    %v3055 = vlog2.pop %v3009
    %v3056 = vmul.f32 %v3055, 0.6931472
    %v3057 = vlog2.pop %v3010
    %v3058 = vmul.f32 %v3057, 0.6931472
    %v3059 = vlog2.pop %v3011
    %v3060 = vmul.f32 %v3059, 0.6931472
    %v3061 = vlog2.pop %v3012
    %v3062 = vmul.f32 %v3061, 0.6931472
    %v3063 = vlog2.pop %v3013
    %v3064 = vmul.f32 %v3063, 0.6931472
    %v3065 = vlog2.pop %v3014
    %v3066 = vmul.f32 %v3065, 0.6931472
    %v3067 = vsub.f32 0.0, %v3016
    %v3068 = vsub.f32 0.0, %v3018
    %v3069 = vsub.f32 0.0, %v3020
    %v3070 = vsub.f32 0.0, %v3022
    %v3071 = vsub.f32 0.0, %v3024
    %v3072 = vsub.f32 0.0, %v3026
    %v3073 = vsub.f32 0.0, %v3028
    %v3074 = vsub.f32 0.0, %v3030
    %v3075 = vsub.f32 0.0, %v3032
    %v3076 = vsub.f32 0.0, %v3034
    %v3077 = vsub.f32 0.0, %v3036
    %v3078 = vsub.f32 0.0, %v3038
    %v3079 = vsub.f32 0.0, %v3040
    %v3080 = vsub.f32 0.0, %v3042
    %v3081 = vsub.f32 0.0, %v3044
    %v3082 = vsub.f32 0.0, %v3046
    %v3083 = vsub.f32 0.0, %v3048
    %v3084 = vsub.f32 0.0, %v3050
    %v3085 = vsub.f32 0.0, %v3052
    %v3086 = vsub.f32 0.0, %v3054
    %v3087 = vsub.f32 0.0, %v3056
    %v3088 = vsub.f32 0.0, %v3058
    %v3089 = vsub.f32 0.0, %v3060
    %v3090 = vsub.f32 0.0, %v3062
    %v3091 = vsub.f32 0.0, %v3064
    %v3092 = vsub.f32 0.0, %v3066
    %v3093 = vadd.f32 %v794, %v3067
    %v3094 = vadd.f32 %v795, %v3068
    %v3095 = vadd.f32 %v796, %v3069
    %v3096 = vadd.f32 %v797, %v3070
    %v3097 = vadd.f32 %v798, %v3071
    %v3098 = vadd.f32 %v799, %v3072
    %v3099 = vadd.f32 %v800, %v3073
    %v3100 = vadd.f32 %v801, %v3074
    %v3101 = vadd.f32 %v802, %v3075
    %v3102 = vadd.f32 %v803, %v3076
    %v3103 = vadd.f32 %v804, %v3077
    %v3104 = vadd.f32 %v805, %v3078
    %v3105 = vadd.f32 %v806, %v3079
    %v3106 = vadd.f32 %v807, %v3080
    %v3107 = vadd.f32 %v808, %v3081
    %v3108 = vadd.f32 %v809, %v3082
    %v3109 = vadd.f32 %v810, %v3083
    %v3110 = vadd.f32 %v811, %v3084
    %v3111 = vadd.f32 %v812, %v3085
    %v3112 = vadd.f32 %v813, %v3086
    %v3113 = vadd.f32 %v814, %v3087
    %v3114 = vadd.f32 %v815, %v3088
    %v3115 = vadd.f32 %v816, %v3089
    %v3116 = vadd.f32 %v817, %v3090
    %v3117 = vadd.f32 %v818, %v3091
    %v3118 = vadd.f32 %v819, %v3092
    %v3119 = vsel %vm820, %v3093, -inf
    %3120 = vmax.xlane.f32.xlu0 %v3119
    %v3121 = vpop.xlane.xlu0 %3120
    %v3122 = vsel %vm820, %v3094, -inf
    %3123 = vmax.xlane.f32.xlu0 %v3122
    %v3124 = vpop.xlane.xlu0 %3123
    %v3125 = vsel %vm820, %v3095, -inf
    %3126 = vmax.xlane.f32.xlu0 %v3125
    %v3127 = vpop.xlane.xlu0 %3126
    %v3128 = vsel %vm820, %v3096, -inf
    %3129 = vmax.xlane.f32.xlu0 %v3128
    %v3130 = vpop.xlane.xlu0 %3129
    %v3131 = vsel %vm820, %v3097, -inf
    %3132 = vmax.xlane.f32.xlu0 %v3131
    %v3133 = vpop.xlane.xlu0 %3132
    %v3134 = vsel %vm820, %v3098, -inf
    %3135 = vmax.xlane.f32.xlu0 %v3134
    %v3136 = vpop.xlane.xlu0 %3135
    %v3137 = vsel %vm820, %v3099, -inf
    %3138 = vmax.xlane.f32.xlu0 %v3137
    %v3139 = vpop.xlane.xlu0 %3138
    %v3140 = vsel %vm820, %v3100, -inf
    %3141 = vmax.xlane.f32.xlu0 %v3140
    %v3142 = vpop.xlane.xlu0 %3141
    %v3143 = vsel %vm820, %v3101, -inf
    %3144 = vmax.xlane.f32.xlu0 %v3143
    %v3145 = vpop.xlane.xlu0 %3144
    %v3146 = vsel %vm820, %v3102, -inf
    %3147 = vmax.xlane.f32.xlu0 %v3146
    %v3148 = vpop.xlane.xlu0 %3147
    %v3149 = vsel %vm820, %v3103, -inf
    %3150 = vmax.xlane.f32.xlu0 %v3149
    %v3151 = vpop.xlane.xlu0 %3150
    %v3152 = vsel %vm820, %v3104, -inf
    %3153 = vmax.xlane.f32.xlu0 %v3152
    %v3154 = vpop.xlane.xlu0 %3153
    %v3155 = vsel %vm820, %v3105, -inf
    %3156 = vmax.xlane.f32.xlu0 %v3155
    %v3157 = vpop.xlane.xlu0 %3156
    %v3158 = vsel %vm820, %v3106, -inf
    %3159 = vmax.xlane.f32.xlu0 %v3158
    %v3160 = vpop.xlane.xlu0 %3159
    %v3161 = vsel %vm820, %v3107, -inf
    %3162 = vmax.xlane.f32.xlu0 %v3161
    %v3163 = vpop.xlane.xlu0 %3162
    %v3164 = vsel %vm820, %v3108, -inf
    %3165 = vmax.xlane.f32.xlu0 %v3164
    %v3166 = vpop.xlane.xlu0 %3165
    %v3167 = vsel %vm820, %v3109, -inf
    %3168 = vmax.xlane.f32.xlu0 %v3167
    %v3169 = vpop.xlane.xlu0 %3168
    %v3170 = vsel %vm820, %v3110, -inf
    %3171 = vmax.xlane.f32.xlu0 %v3170
    %v3172 = vpop.xlane.xlu0 %3171
    %v3173 = vsel %vm820, %v3111, -inf
    %3174 = vmax.xlane.f32.xlu0 %v3173
    %v3175 = vpop.xlane.xlu0 %3174
    %v3176 = vsel %vm820, %v3112, -inf
    %3177 = vmax.xlane.f32.xlu0 %v3176
    %v3178 = vpop.xlane.xlu0 %3177
    %v3179 = vsel %vm820, %v3113, -inf
    %3180 = vmax.xlane.f32.xlu0 %v3179
    %v3181 = vpop.xlane.xlu0 %3180
    %v3182 = vsel %vm820, %v3114, -inf
    %3183 = vmax.xlane.f32.xlu0 %v3182
    %v3184 = vpop.xlane.xlu0 %3183
    %v3185 = vsel %vm820, %v3115, -inf
    %3186 = vmax.xlane.f32.xlu0 %v3185
    %v3187 = vpop.xlane.xlu0 %3186
    %v3188 = vsel %vm820, %v3116, -inf
    %3189 = vmax.xlane.f32.xlu0 %v3188
    %v3190 = vpop.xlane.xlu0 %3189
    %v3191 = vsel %vm820, %v3117, -inf
    %3192 = vmax.xlane.f32.xlu0 %v3191
    %v3193 = vpop.xlane.xlu0 %3192
    %v3194 = vsel %vm820, %v3118, -inf
    %3195 = vmax.xlane.f32.xlu0 %v3194
    %v3196 = vpop.xlane.xlu0 %3195
    %v3197 = vsub.f32 %v3093, %v3121
    %v3198 = vsub.f32 %v3094, %v3124
    %v3199 = vsub.f32 %v3095, %v3127
    %v3200 = vsub.f32 %v3096, %v3130
    %v3201 = vsub.f32 %v3097, %v3133
    %v3202 = vsub.f32 %v3098, %v3136
    %v3203 = vsub.f32 %v3099, %v3139
    %v3204 = vsub.f32 %v3100, %v3142
    %v3205 = vsub.f32 %v3101, %v3145
    %v3206 = vsub.f32 %v3102, %v3148
    %v3207 = vsub.f32 %v3103, %v3151
    %v3208 = vsub.f32 %v3104, %v3154
    %v3209 = vsub.f32 %v3105, %v3157
    %v3210 = vsub.f32 %v3106, %v3160
    %v3211 = vsub.f32 %v3107, %v3163
    %v3212 = vsub.f32 %v3108, %v3166
    %v3213 = vsub.f32 %v3109, %v3169
    %v3214 = vsub.f32 %v3110, %v3172
    %v3215 = vsub.f32 %v3111, %v3175
    %v3216 = vsub.f32 %v3112, %v3178
    %v3217 = vsub.f32 %v3113, %v3181
    %v3218 = vsub.f32 %v3114, %v3184
    %v3219 = vsub.f32 %v3115, %v3187
    %v3220 = vsub.f32 %v3116, %v3190
    %v3221 = vsub.f32 %v3117, %v3193
    %v3222 = vsub.f32 %v3118, %v3196
    %v3223 = vmul.f32 %v3197, 1.442695
    %v3224 = vpow.pop %v3223
    %v3225 = vmul.f32 %v3198, 1.442695
    %v3226 = vpow.pop %v3225
    %v3227 = vmul.f32 %v3199, 1.442695
    %v3228 = vpow.pop %v3227
    %v3229 = vmul.f32 %v3200, 1.442695
    %v3230 = vpow.pop %v3229
    %v3231 = vmul.f32 %v3201, 1.442695
    %v3232 = vpow.pop %v3231
    %v3233 = vmul.f32 %v3202, 1.442695
    %v3234 = vpow.pop %v3233
    %v3235 = vmul.f32 %v3203, 1.442695
    %v3236 = vpow.pop %v3235
    %v3237 = vmul.f32 %v3204, 1.442695
    %v3238 = vpow.pop %v3237
    %v3239 = vmul.f32 %v3205, 1.442695
    %v3240 = vpow.pop %v3239
    %v3241 = vmul.f32 %v3206, 1.442695
    %v3242 = vpow.pop %v3241
    %v3243 = vmul.f32 %v3207, 1.442695
    %v3244 = vpow.pop %v3243
    %v3245 = vmul.f32 %v3208, 1.442695
    %v3246 = vpow.pop %v3245
    %v3247 = vmul.f32 %v3209, 1.442695
    %v3248 = vpow.pop %v3247
    %v3249 = vmul.f32 %v3210, 1.442695
    %v3250 = vpow.pop %v3249
    %v3251 = vmul.f32 %v3211, 1.442695
    %v3252 = vpow.pop %v3251
    %v3253 = vmul.f32 %v3212, 1.442695
    %v3254 = vpow.pop %v3253
    %v3255 = vmul.f32 %v3213, 1.442695
    %v3256 = vpow.pop %v3255
    %v3257 = vmul.f32 %v3214, 1.442695
    %v3258 = vpow.pop %v3257
    %v3259 = vmul.f32 %v3215, 1.442695
    %v3260 = vpow.pop %v3259
    %v3261 = vmul.f32 %v3216, 1.442695
    %v3262 = vpow.pop %v3261
    %v3263 = vmul.f32 %v3217, 1.442695
    %v3264 = vpow.pop %v3263
    %v3265 = vmul.f32 %v3218, 1.442695
    %v3266 = vpow.pop %v3265
    %v3267 = vmul.f32 %v3219, 1.442695
    %v3268 = vpow.pop %v3267
    %v3269 = vmul.f32 %v3220, 1.442695
    %v3270 = vpow.pop %v3269
    %v3271 = vmul.f32 %v3221, 1.442695
    %v3272 = vpow.pop %v3271
    %v3273 = vmul.f32 %v3222, 1.442695
    %v3274 = vpow.pop %v3273
    %v3275 = vsel %vm820, %v3224, 0.0
    %3276 = vadd.xlane.f32.xlu0 %v3275
    %v3277 = vpop.xlane.xlu0 %3276
    %v3278 = vsel %vm820, %v3226, 0.0
    %3279 = vadd.xlane.f32.xlu0 %v3278
    %v3280 = vpop.xlane.xlu0 %3279
    %v3281 = vsel %vm820, %v3228, 0.0
    %3282 = vadd.xlane.f32.xlu0 %v3281
    %v3283 = vpop.xlane.xlu0 %3282
    %v3284 = vsel %vm820, %v3230, 0.0
    %3285 = vadd.xlane.f32.xlu0 %v3284
    %v3286 = vpop.xlane.xlu0 %3285
    %v3287 = vsel %vm820, %v3232, 0.0
    %3288 = vadd.xlane.f32.xlu0 %v3287
    %v3289 = vpop.xlane.xlu0 %3288
    %v3290 = vsel %vm820, %v3234, 0.0
    %3291 = vadd.xlane.f32.xlu0 %v3290
    %v3292 = vpop.xlane.xlu0 %3291
    %v3293 = vsel %vm820, %v3236, 0.0
    %3294 = vadd.xlane.f32.xlu0 %v3293
    %v3295 = vpop.xlane.xlu0 %3294
    %v3296 = vsel %vm820, %v3238, 0.0
    %3297 = vadd.xlane.f32.xlu0 %v3296
    %v3298 = vpop.xlane.xlu0 %3297
    %v3299 = vsel %vm820, %v3240, 0.0
    %3300 = vadd.xlane.f32.xlu0 %v3299
    %v3301 = vpop.xlane.xlu0 %3300
    %v3302 = vsel %vm820, %v3242, 0.0
    %3303 = vadd.xlane.f32.xlu0 %v3302
    %v3304 = vpop.xlane.xlu0 %3303
    %v3305 = vsel %vm820, %v3244, 0.0
    %3306 = vadd.xlane.f32.xlu0 %v3305
    %v3307 = vpop.xlane.xlu0 %3306
    %v3308 = vsel %vm820, %v3246, 0.0
    %3309 = vadd.xlane.f32.xlu0 %v3308
    %v3310 = vpop.xlane.xlu0 %3309
    %v3311 = vsel %vm820, %v3248, 0.0
    %3312 = vadd.xlane.f32.xlu0 %v3311
    %v3313 = vpop.xlane.xlu0 %3312
    %v3314 = vsel %vm820, %v3250, 0.0
    %3315 = vadd.xlane.f32.xlu0 %v3314
    %v3316 = vpop.xlane.xlu0 %3315
    %v3317 = vsel %vm820, %v3252, 0.0
    %3318 = vadd.xlane.f32.xlu0 %v3317
    %v3319 = vpop.xlane.xlu0 %3318
    %v3320 = vsel %vm820, %v3254, 0.0
    %3321 = vadd.xlane.f32.xlu0 %v3320
    %v3322 = vpop.xlane.xlu0 %3321
    %v3323 = vsel %vm820, %v3256, 0.0
    %3324 = vadd.xlane.f32.xlu0 %v3323
    %v3325 = vpop.xlane.xlu0 %3324
    %v3326 = vsel %vm820, %v3258, 0.0
    %3327 = vadd.xlane.f32.xlu0 %v3326
    %v3328 = vpop.xlane.xlu0 %3327
    %v3329 = vsel %vm820, %v3260, 0.0
    %3330 = vadd.xlane.f32.xlu0 %v3329
    %v3331 = vpop.xlane.xlu0 %3330
    %v3332 = vsel %vm820, %v3262, 0.0
    %3333 = vadd.xlane.f32.xlu0 %v3332
    %v3334 = vpop.xlane.xlu0 %3333
    %v3335 = vsel %vm820, %v3264, 0.0
    %3336 = vadd.xlane.f32.xlu0 %v3335
    %v3337 = vpop.xlane.xlu0 %3336
    %v3338 = vsel %vm820, %v3266, 0.0
    %3339 = vadd.xlane.f32.xlu0 %v3338
    %v3340 = vpop.xlane.xlu0 %3339
    %v3341 = vsel %vm820, %v3268, 0.0
    %3342 = vadd.xlane.f32.xlu0 %v3341
    %v3343 = vpop.xlane.xlu0 %3342
    %v3344 = vsel %vm820, %v3270, 0.0
    %3345 = vadd.xlane.f32.xlu0 %v3344
    %v3346 = vpop.xlane.xlu0 %3345
    %v3347 = vsel %vm820, %v3272, 0.0
    %3348 = vadd.xlane.f32.xlu0 %v3347
    %v3349 = vpop.xlane.xlu0 %3348
    %v3350 = vsel %vm820, %v3274, 0.0
    %3351 = vadd.xlane.f32.xlu0 %v3350
    %v3352 = vpop.xlane.xlu0 %3351
    %v3353 = vrcp.pop %v3277
    %v3354 = vmul.f32 %v3224, %v3353
    %v3355 = vrcp.pop %v3280
    %v3356 = vmul.f32 %v3226, %v3355
    %v3357 = vrcp.pop %v3283
    %v3358 = vmul.f32 %v3228, %v3357
    %v3359 = vrcp.pop %v3286
    %v3360 = vmul.f32 %v3230, %v3359
    %v3361 = vrcp.pop %v3289
    %v3362 = vmul.f32 %v3232, %v3361
    %v3363 = vrcp.pop %v3292
    %v3364 = vmul.f32 %v3234, %v3363
    %v3365 = vrcp.pop %v3295
    %v3366 = vmul.f32 %v3236, %v3365
    %v3367 = vrcp.pop %v3298
    %v3368 = vmul.f32 %v3238, %v3367
    %v3369 = vrcp.pop %v3301
    %v3370 = vmul.f32 %v3240, %v3369
    %v3371 = vrcp.pop %v3304
    %v3372 = vmul.f32 %v3242, %v3371
    %v3373 = vrcp.pop %v3307
    %v3374 = vmul.f32 %v3244, %v3373
    %v3375 = vrcp.pop %v3310
    %v3376 = vmul.f32 %v3246, %v3375
    %v3377 = vrcp.pop %v3313
    %v3378 = vmul.f32 %v3248, %v3377
    %v3379 = vrcp.pop %v3316
    %v3380 = vmul.f32 %v3250, %v3379
    %v3381 = vrcp.pop %v3319
    %v3382 = vmul.f32 %v3252, %v3381
    %v3383 = vrcp.pop %v3322
    %v3384 = vmul.f32 %v3254, %v3383
    %v3385 = vrcp.pop %v3325
    %v3386 = vmul.f32 %v3256, %v3385
    %v3387 = vrcp.pop %v3328
    %v3388 = vmul.f32 %v3258, %v3387
    %v3389 = vrcp.pop %v3331
    %v3390 = vmul.f32 %v3260, %v3389
    %v3391 = vrcp.pop %v3334
    %v3392 = vmul.f32 %v3262, %v3391
    %v3393 = vrcp.pop %v3337
    %v3394 = vmul.f32 %v3264, %v3393
    %v3395 = vrcp.pop %v3340
    %v3396 = vmul.f32 %v3266, %v3395
    %v3397 = vrcp.pop %v3343
    %v3398 = vmul.f32 %v3268, %v3397
    %v3399 = vrcp.pop %v3346
    %v3400 = vmul.f32 %v3270, %v3399
    %v3401 = vrcp.pop %v3349
    %v3402 = vmul.f32 %v3272, %v3401
    %v3403 = vrcp.pop %v3352
    %v3404 = vmul.f32 %v3274, %v3403
    %v3405 = vsel %vm1107, %v3093, -inf
    %3406 = vmax.xlane.f32.xlu0 %v3405
    %v3407 = vpop.xlane.xlu0 %3406
    %v3408 = vsel %vm1107, %v3094, -inf
    %3409 = vmax.xlane.f32.xlu0 %v3408
    %v3410 = vpop.xlane.xlu0 %3409
    %v3411 = vsel %vm1107, %v3095, -inf
    %3412 = vmax.xlane.f32.xlu0 %v3411
    %v3413 = vpop.xlane.xlu0 %3412
    %v3414 = vsel %vm1107, %v3096, -inf
    %3415 = vmax.xlane.f32.xlu0 %v3414
    %v3416 = vpop.xlane.xlu0 %3415
    %v3417 = vsel %vm1107, %v3097, -inf
    %3418 = vmax.xlane.f32.xlu0 %v3417
    %v3419 = vpop.xlane.xlu0 %3418
    %v3420 = vsel %vm1107, %v3098, -inf
    %3421 = vmax.xlane.f32.xlu0 %v3420
    %v3422 = vpop.xlane.xlu0 %3421
    %v3423 = vsel %vm1107, %v3099, -inf
    %3424 = vmax.xlane.f32.xlu0 %v3423
    %v3425 = vpop.xlane.xlu0 %3424
    %v3426 = vsel %vm1107, %v3100, -inf
    %3427 = vmax.xlane.f32.xlu0 %v3426
    %v3428 = vpop.xlane.xlu0 %3427
    %v3429 = vsel %vm1107, %v3101, -inf
    %3430 = vmax.xlane.f32.xlu0 %v3429
    %v3431 = vpop.xlane.xlu0 %3430
    %v3432 = vsel %vm1107, %v3102, -inf
    %3433 = vmax.xlane.f32.xlu0 %v3432
    %v3434 = vpop.xlane.xlu0 %3433
    %v3435 = vsel %vm1107, %v3103, -inf
    %3436 = vmax.xlane.f32.xlu0 %v3435
    %v3437 = vpop.xlane.xlu0 %3436
    %v3438 = vsel %vm1107, %v3104, -inf
    %3439 = vmax.xlane.f32.xlu0 %v3438
    %v3440 = vpop.xlane.xlu0 %3439
    %v3441 = vsel %vm1107, %v3105, -inf
    %3442 = vmax.xlane.f32.xlu0 %v3441
    %v3443 = vpop.xlane.xlu0 %3442
    %v3444 = vsel %vm1107, %v3106, -inf
    %3445 = vmax.xlane.f32.xlu0 %v3444
    %v3446 = vpop.xlane.xlu0 %3445
    %v3447 = vsel %vm1107, %v3107, -inf
    %3448 = vmax.xlane.f32.xlu0 %v3447
    %v3449 = vpop.xlane.xlu0 %3448
    %v3450 = vsel %vm1107, %v3108, -inf
    %3451 = vmax.xlane.f32.xlu0 %v3450
    %v3452 = vpop.xlane.xlu0 %3451
    %v3453 = vsel %vm1107, %v3109, -inf
    %3454 = vmax.xlane.f32.xlu0 %v3453
    %v3455 = vpop.xlane.xlu0 %3454
    %v3456 = vsel %vm1107, %v3110, -inf
    %3457 = vmax.xlane.f32.xlu0 %v3456
    %v3458 = vpop.xlane.xlu0 %3457
    %v3459 = vsel %vm1107, %v3111, -inf
    %3460 = vmax.xlane.f32.xlu0 %v3459
    %v3461 = vpop.xlane.xlu0 %3460
    %v3462 = vsel %vm1107, %v3112, -inf
    %3463 = vmax.xlane.f32.xlu0 %v3462
    %v3464 = vpop.xlane.xlu0 %3463
    %v3465 = vsel %vm1107, %v3113, -inf
    %3466 = vmax.xlane.f32.xlu0 %v3465
    %v3467 = vpop.xlane.xlu0 %3466
    %v3468 = vsel %vm1107, %v3114, -inf
    %3469 = vmax.xlane.f32.xlu0 %v3468
    %v3470 = vpop.xlane.xlu0 %3469
    %v3471 = vsel %vm1107, %v3115, -inf
    %3472 = vmax.xlane.f32.xlu0 %v3471
    %v3473 = vpop.xlane.xlu0 %3472
    %v3474 = vsel %vm1107, %v3116, -inf
    %3475 = vmax.xlane.f32.xlu0 %v3474
    %v3476 = vpop.xlane.xlu0 %3475
    %v3477 = vsel %vm1107, %v3117, -inf
    %3478 = vmax.xlane.f32.xlu0 %v3477
    %v3479 = vpop.xlane.xlu0 %3478
    %v3480 = vsel %vm1107, %v3118, -inf
    %3481 = vmax.xlane.f32.xlu0 %v3480
    %v3482 = vpop.xlane.xlu0 %3481
    %v3483 = vsub.f32 %v3093, %v3407
    %v3484 = vsub.f32 %v3094, %v3410
    %v3485 = vsub.f32 %v3095, %v3413
    %v3486 = vsub.f32 %v3096, %v3416
    %v3487 = vsub.f32 %v3097, %v3419
    %v3488 = vsub.f32 %v3098, %v3422
    %v3489 = vsub.f32 %v3099, %v3425
    %v3490 = vsub.f32 %v3100, %v3428
    %v3491 = vsub.f32 %v3101, %v3431
    %v3492 = vsub.f32 %v3102, %v3434
    %v3493 = vsub.f32 %v3103, %v3437
    %v3494 = vsub.f32 %v3104, %v3440
    %v3495 = vsub.f32 %v3105, %v3443
    %v3496 = vsub.f32 %v3106, %v3446
    %v3497 = vsub.f32 %v3107, %v3449
    %v3498 = vsub.f32 %v3108, %v3452
    %v3499 = vsub.f32 %v3109, %v3455
    %v3500 = vsub.f32 %v3110, %v3458
    %v3501 = vsub.f32 %v3111, %v3461
    %v3502 = vsub.f32 %v3112, %v3464
    %v3503 = vsub.f32 %v3113, %v3467
    %v3504 = vsub.f32 %v3114, %v3470
    %v3505 = vsub.f32 %v3115, %v3473
    %v3506 = vsub.f32 %v3116, %v3476
    %v3507 = vsub.f32 %v3117, %v3479
    %v3508 = vsub.f32 %v3118, %v3482
    %v3509 = vmul.f32 %v3483, 1.442695
    %v3510 = vpow.pop %v3509
    %v3511 = vmul.f32 %v3484, 1.442695
    %v3512 = vpow.pop %v3511
    %v3513 = vmul.f32 %v3485, 1.442695
    %v3514 = vpow.pop %v3513
    %v3515 = vmul.f32 %v3486, 1.442695
    %v3516 = vpow.pop %v3515
    %v3517 = vmul.f32 %v3487, 1.442695
    %v3518 = vpow.pop %v3517
    %v3519 = vmul.f32 %v3488, 1.442695
    %v3520 = vpow.pop %v3519
    %v3521 = vmul.f32 %v3489, 1.442695
    %v3522 = vpow.pop %v3521
    %v3523 = vmul.f32 %v3490, 1.442695
    %v3524 = vpow.pop %v3523
    %v3525 = vmul.f32 %v3491, 1.442695
    %v3526 = vpow.pop %v3525
    %v3527 = vmul.f32 %v3492, 1.442695
    %v3528 = vpow.pop %v3527
    %v3529 = vmul.f32 %v3493, 1.442695
    %v3530 = vpow.pop %v3529
    %v3531 = vmul.f32 %v3494, 1.442695
    %v3532 = vpow.pop %v3531
    %v3533 = vmul.f32 %v3495, 1.442695
    %v3534 = vpow.pop %v3533
    %v3535 = vmul.f32 %v3496, 1.442695
    %v3536 = vpow.pop %v3535
    %v3537 = vmul.f32 %v3497, 1.442695
    %v3538 = vpow.pop %v3537
    %v3539 = vmul.f32 %v3498, 1.442695
    %v3540 = vpow.pop %v3539
    %v3541 = vmul.f32 %v3499, 1.442695
    %v3542 = vpow.pop %v3541
    %v3543 = vmul.f32 %v3500, 1.442695
    %v3544 = vpow.pop %v3543
    %v3545 = vmul.f32 %v3501, 1.442695
    %v3546 = vpow.pop %v3545
    %v3547 = vmul.f32 %v3502, 1.442695
    %v3548 = vpow.pop %v3547
    %v3549 = vmul.f32 %v3503, 1.442695
    %v3550 = vpow.pop %v3549
    %v3551 = vmul.f32 %v3504, 1.442695
    %v3552 = vpow.pop %v3551
    %v3553 = vmul.f32 %v3505, 1.442695
    %v3554 = vpow.pop %v3553
    %v3555 = vmul.f32 %v3506, 1.442695
    %v3556 = vpow.pop %v3555
    %v3557 = vmul.f32 %v3507, 1.442695
    %v3558 = vpow.pop %v3557
    %v3559 = vmul.f32 %v3508, 1.442695
    %v3560 = vpow.pop %v3559
    %3587 = vrot.lane.b32.xlu0 %v3510, 120
    %v3588 = vpop.permute.xlu0 %3587
    %3589 = vrot.lane.b32.xlu0 %v3512, 120
    %v3590 = vpop.permute.xlu0 %3589
    %3591 = vrot.lane.b32.xlu0 %v3514, 120
    %v3592 = vpop.permute.xlu0 %3591
    %3593 = vrot.lane.b32.xlu0 %v3516, 120
    %v3594 = vpop.permute.xlu0 %3593
    %3595 = vrot.lane.b32.xlu0 %v3518, 120
    %v3596 = vpop.permute.xlu0 %3595
    %3597 = vrot.lane.b32.xlu0 %v3520, 120
    %v3598 = vpop.permute.xlu0 %3597
    %3599 = vrot.lane.b32.xlu0 %v3522, 120
    %v3600 = vpop.permute.xlu0 %3599
    %3601 = vrot.lane.b32.xlu0 %v3524, 120
    %v3602 = vpop.permute.xlu0 %3601
    %3603 = vrot.lane.b32.xlu0 %v3526, 120
    %v3604 = vpop.permute.xlu0 %3603
    %3605 = vrot.lane.b32.xlu0 %v3528, 120
    %v3606 = vpop.permute.xlu0 %3605
    %3607 = vrot.lane.b32.xlu0 %v3530, 120
    %v3608 = vpop.permute.xlu0 %3607
    %3609 = vrot.lane.b32.xlu0 %v3532, 120
    %v3610 = vpop.permute.xlu0 %3609
    %3611 = vrot.lane.b32.xlu0 %v3534, 120
    %v3612 = vpop.permute.xlu0 %3611
    %3613 = vrot.lane.b32.xlu0 %v3536, 120
    %v3614 = vpop.permute.xlu0 %3613
    %3615 = vrot.lane.b32.xlu0 %v3538, 120
    %v3616 = vpop.permute.xlu0 %3615
    %3617 = vrot.lane.b32.xlu0 %v3540, 120
    %v3618 = vpop.permute.xlu0 %3617
    %3619 = vrot.lane.b32.xlu0 %v3542, 120
    %v3620 = vpop.permute.xlu0 %3619
    %3621 = vrot.lane.b32.xlu0 %v3544, 120
    %v3622 = vpop.permute.xlu0 %3621
    %3623 = vrot.lane.b32.xlu0 %v3546, 120
    %v3624 = vpop.permute.xlu0 %3623
    %3625 = vrot.lane.b32.xlu0 %v3548, 120
    %v3626 = vpop.permute.xlu0 %3625
    %3627 = vrot.lane.b32.xlu0 %v3550, 120
    %v3628 = vpop.permute.xlu0 %3627
    %3629 = vrot.lane.b32.xlu0 %v3552, 120
    %v3630 = vpop.permute.xlu0 %3629
    %3631 = vrot.lane.b32.xlu0 %v3554, 120
    %v3632 = vpop.permute.xlu0 %3631
    %3633 = vrot.lane.b32.xlu0 %v3556, 120
    %v3634 = vpop.permute.xlu0 %3633
    %3635 = vrot.lane.b32.xlu0 %v3558, 120
    %v3636 = vpop.permute.xlu0 %3635
    %3637 = vrot.lane.b32.xlu0 %v3560, 120
    %v3638 = vpop.permute.xlu0 %3637
    %v3665 = vsel %vm820, %v3588, 0.0
    %3666 = vadd.xlane.f32.xlu0 %v3665
    %v3667 = vpop.xlane.xlu0 %3666
    %v3668 = vsel %vm820, %v3590, 0.0
    %3669 = vadd.xlane.f32.xlu0 %v3668
    %v3670 = vpop.xlane.xlu0 %3669
    %v3671 = vsel %vm820, %v3592, 0.0
    %3672 = vadd.xlane.f32.xlu0 %v3671
    %v3673 = vpop.xlane.xlu0 %3672
    %v3674 = vsel %vm820, %v3594, 0.0
    %3675 = vadd.xlane.f32.xlu0 %v3674
    %v3676 = vpop.xlane.xlu0 %3675
    %v3677 = vsel %vm820, %v3596, 0.0
    %3678 = vadd.xlane.f32.xlu0 %v3677
    %v3679 = vpop.xlane.xlu0 %3678
    %v3680 = vsel %vm820, %v3598, 0.0
    %3681 = vadd.xlane.f32.xlu0 %v3680
    %v3682 = vpop.xlane.xlu0 %3681
    %v3683 = vsel %vm820, %v3600, 0.0
    %3684 = vadd.xlane.f32.xlu0 %v3683
    %v3685 = vpop.xlane.xlu0 %3684
    %v3686 = vsel %vm820, %v3602, 0.0
    %3687 = vadd.xlane.f32.xlu0 %v3686
    %v3688 = vpop.xlane.xlu0 %3687
    %v3689 = vsel %vm820, %v3604, 0.0
    %3690 = vadd.xlane.f32.xlu0 %v3689
    %v3691 = vpop.xlane.xlu0 %3690
    %v3692 = vsel %vm820, %v3606, 0.0
    %3693 = vadd.xlane.f32.xlu0 %v3692
    %v3694 = vpop.xlane.xlu0 %3693
    %v3695 = vsel %vm820, %v3608, 0.0
    %3696 = vadd.xlane.f32.xlu0 %v3695
    %v3697 = vpop.xlane.xlu0 %3696
    %v3698 = vsel %vm820, %v3610, 0.0
    %3699 = vadd.xlane.f32.xlu0 %v3698
    %v3700 = vpop.xlane.xlu0 %3699
    %v3701 = vsel %vm820, %v3612, 0.0
    %3702 = vadd.xlane.f32.xlu0 %v3701
    %v3703 = vpop.xlane.xlu0 %3702
    %v3704 = vsel %vm820, %v3614, 0.0
    %3705 = vadd.xlane.f32.xlu0 %v3704
    %v3706 = vpop.xlane.xlu0 %3705
    %v3707 = vsel %vm820, %v3616, 0.0
    %3708 = vadd.xlane.f32.xlu0 %v3707
    %v3709 = vpop.xlane.xlu0 %3708
    %v3710 = vsel %vm820, %v3618, 0.0
    %3711 = vadd.xlane.f32.xlu0 %v3710
    %v3712 = vpop.xlane.xlu0 %3711
    %v3713 = vsel %vm820, %v3620, 0.0
    %3714 = vadd.xlane.f32.xlu0 %v3713
    %v3715 = vpop.xlane.xlu0 %3714
    %v3716 = vsel %vm820, %v3622, 0.0
    %3717 = vadd.xlane.f32.xlu0 %v3716
    %v3718 = vpop.xlane.xlu0 %3717
    %v3719 = vsel %vm820, %v3624, 0.0
    %3720 = vadd.xlane.f32.xlu0 %v3719
    %v3721 = vpop.xlane.xlu0 %3720
    %v3722 = vsel %vm820, %v3626, 0.0
    %3723 = vadd.xlane.f32.xlu0 %v3722
    %v3724 = vpop.xlane.xlu0 %3723
    %v3725 = vsel %vm820, %v3628, 0.0
    %3726 = vadd.xlane.f32.xlu0 %v3725
    %v3727 = vpop.xlane.xlu0 %3726
    %v3728 = vsel %vm820, %v3630, 0.0
    %3729 = vadd.xlane.f32.xlu0 %v3728
    %v3730 = vpop.xlane.xlu0 %3729
    %v3731 = vsel %vm820, %v3632, 0.0
    %3732 = vadd.xlane.f32.xlu0 %v3731
    %v3733 = vpop.xlane.xlu0 %3732
    %v3734 = vsel %vm820, %v3634, 0.0
    %3735 = vadd.xlane.f32.xlu0 %v3734
    %v3736 = vpop.xlane.xlu0 %3735
    %v3737 = vsel %vm820, %v3636, 0.0
    %3738 = vadd.xlane.f32.xlu0 %v3737
    %v3739 = vpop.xlane.xlu0 %3738
    %v3740 = vsel %vm820, %v3638, 0.0
    %3741 = vadd.xlane.f32.xlu0 %v3740
    %v3742 = vpop.xlane.xlu0 %3741
    %v3743 = vrcp.pop %v3667
    %v3744 = vmul.f32 %v3510, %v3743
    %v3745 = vrcp.pop %v3670
    %v3746 = vmul.f32 %v3512, %v3745
    %v3747 = vrcp.pop %v3673
    %v3748 = vmul.f32 %v3514, %v3747
    %v3749 = vrcp.pop %v3676
    %v3750 = vmul.f32 %v3516, %v3749
    %v3751 = vrcp.pop %v3679
    %v3752 = vmul.f32 %v3518, %v3751
    %v3753 = vrcp.pop %v3682
    %v3754 = vmul.f32 %v3520, %v3753
    %v3755 = vrcp.pop %v3685
    %v3756 = vmul.f32 %v3522, %v3755
    %v3757 = vrcp.pop %v3688
    %v3758 = vmul.f32 %v3524, %v3757
    %v3759 = vrcp.pop %v3691
    %v3760 = vmul.f32 %v3526, %v3759
    %v3761 = vrcp.pop %v3694
    %v3762 = vmul.f32 %v3528, %v3761
    %v3763 = vrcp.pop %v3697
    %v3764 = vmul.f32 %v3530, %v3763
    %v3765 = vrcp.pop %v3700
    %v3766 = vmul.f32 %v3532, %v3765
    %v3767 = vrcp.pop %v3703
    %v3768 = vmul.f32 %v3534, %v3767
    %v3769 = vrcp.pop %v3706
    %v3770 = vmul.f32 %v3536, %v3769
    %v3771 = vrcp.pop %v3709
    %v3772 = vmul.f32 %v3538, %v3771
    %v3773 = vrcp.pop %v3712
    %v3774 = vmul.f32 %v3540, %v3773
    %v3775 = vrcp.pop %v3715
    %v3776 = vmul.f32 %v3542, %v3775
    %v3777 = vrcp.pop %v3718
    %v3778 = vmul.f32 %v3544, %v3777
    %v3779 = vrcp.pop %v3721
    %v3780 = vmul.f32 %v3546, %v3779
    %v3781 = vrcp.pop %v3724
    %v3782 = vmul.f32 %v3548, %v3781
    %v3783 = vrcp.pop %v3727
    %v3784 = vmul.f32 %v3550, %v3783
    %v3785 = vrcp.pop %v3730
    %v3786 = vmul.f32 %v3552, %v3785
    %v3787 = vrcp.pop %v3733
    %v3788 = vmul.f32 %v3554, %v3787
    %v3789 = vrcp.pop %v3736
    %v3790 = vmul.f32 %v3556, %v3789
    %v3791 = vrcp.pop %v3739
    %v3792 = vmul.f32 %v3558, %v3791
    %v3793 = vrcp.pop %v3742
    %v3794 = vmul.f32 %v3560, %v3793
    %v3795 = vsel %vm1498, %v3093, -inf
    %3796 = vmax.xlane.f32.xlu0 %v3795
    %v3797 = vpop.xlane.xlu0 %3796
    %v3798 = vsel %vm1498, %v3094, -inf
    %3799 = vmax.xlane.f32.xlu0 %v3798
    %v3800 = vpop.xlane.xlu0 %3799
    %v3801 = vsel %vm1498, %v3095, -inf
    %3802 = vmax.xlane.f32.xlu0 %v3801
    %v3803 = vpop.xlane.xlu0 %3802
    %v3804 = vsel %vm1498, %v3096, -inf
    %3805 = vmax.xlane.f32.xlu0 %v3804
    %v3806 = vpop.xlane.xlu0 %3805
    %v3807 = vsel %vm1498, %v3097, -inf
    %3808 = vmax.xlane.f32.xlu0 %v3807
    %v3809 = vpop.xlane.xlu0 %3808
    %v3810 = vsel %vm1498, %v3098, -inf
    %3811 = vmax.xlane.f32.xlu0 %v3810
    %v3812 = vpop.xlane.xlu0 %3811
    %v3813 = vsel %vm1498, %v3099, -inf
    %3814 = vmax.xlane.f32.xlu0 %v3813
    %v3815 = vpop.xlane.xlu0 %3814
    %v3816 = vsel %vm1498, %v3100, -inf
    %3817 = vmax.xlane.f32.xlu0 %v3816
    %v3818 = vpop.xlane.xlu0 %3817
    %v3819 = vsel %vm1498, %v3101, -inf
    %3820 = vmax.xlane.f32.xlu0 %v3819
    %v3821 = vpop.xlane.xlu0 %3820
    %v3822 = vsel %vm1498, %v3102, -inf
    %3823 = vmax.xlane.f32.xlu0 %v3822
    %v3824 = vpop.xlane.xlu0 %3823
    %v3825 = vsel %vm1498, %v3103, -inf
    %3826 = vmax.xlane.f32.xlu0 %v3825
    %v3827 = vpop.xlane.xlu0 %3826
    %v3828 = vsel %vm1498, %v3104, -inf
    %3829 = vmax.xlane.f32.xlu0 %v3828
    %v3830 = vpop.xlane.xlu0 %3829
    %v3831 = vsel %vm1498, %v3105, -inf
    %3832 = vmax.xlane.f32.xlu0 %v3831
    %v3833 = vpop.xlane.xlu0 %3832
    %v3834 = vsel %vm1498, %v3106, -inf
    %3835 = vmax.xlane.f32.xlu0 %v3834
    %v3836 = vpop.xlane.xlu0 %3835
    %v3837 = vsel %vm1498, %v3107, -inf
    %3838 = vmax.xlane.f32.xlu0 %v3837
    %v3839 = vpop.xlane.xlu0 %3838
    %v3840 = vsel %vm1498, %v3108, -inf
    %3841 = vmax.xlane.f32.xlu0 %v3840
    %v3842 = vpop.xlane.xlu0 %3841
    %v3843 = vsel %vm1498, %v3109, -inf
    %3844 = vmax.xlane.f32.xlu0 %v3843
    %v3845 = vpop.xlane.xlu0 %3844
    %v3846 = vsel %vm1498, %v3110, -inf
    %3847 = vmax.xlane.f32.xlu0 %v3846
    %v3848 = vpop.xlane.xlu0 %3847
    %v3849 = vsel %vm1498, %v3111, -inf
    %3850 = vmax.xlane.f32.xlu0 %v3849
    %v3851 = vpop.xlane.xlu0 %3850
    %v3852 = vsel %vm1498, %v3112, -inf
    %3853 = vmax.xlane.f32.xlu0 %v3852
    %v3854 = vpop.xlane.xlu0 %3853
    %v3855 = vsel %vm1498, %v3113, -inf
    %3856 = vmax.xlane.f32.xlu0 %v3855
    %v3857 = vpop.xlane.xlu0 %3856
    %v3858 = vsel %vm1498, %v3114, -inf
    %3859 = vmax.xlane.f32.xlu0 %v3858
    %v3860 = vpop.xlane.xlu0 %3859
    %v3861 = vsel %vm1498, %v3115, -inf
    %3862 = vmax.xlane.f32.xlu0 %v3861
    %v3863 = vpop.xlane.xlu0 %3862
    %v3864 = vsel %vm1498, %v3116, -inf
    %3865 = vmax.xlane.f32.xlu0 %v3864
    %v3866 = vpop.xlane.xlu0 %3865
    %v3867 = vsel %vm1498, %v3117, -inf
    %3868 = vmax.xlane.f32.xlu0 %v3867
    %v3869 = vpop.xlane.xlu0 %3868
    %v3870 = vsel %vm1498, %v3118, -inf
    %3871 = vmax.xlane.f32.xlu0 %v3870
    %v3872 = vpop.xlane.xlu0 %3871
    %v3873 = vsub.f32 %v3093, %v3797
    %v3874 = vsub.f32 %v3094, %v3800
    %v3875 = vsub.f32 %v3095, %v3803
    %v3876 = vsub.f32 %v3096, %v3806
    %v3877 = vsub.f32 %v3097, %v3809
    %v3878 = vsub.f32 %v3098, %v3812
    %v3879 = vsub.f32 %v3099, %v3815
    %v3880 = vsub.f32 %v3100, %v3818
    %v3881 = vsub.f32 %v3101, %v3821
    %v3882 = vsub.f32 %v3102, %v3824
    %v3883 = vsub.f32 %v3103, %v3827
    %v3884 = vsub.f32 %v3104, %v3830
    %v3885 = vsub.f32 %v3105, %v3833
    %v3886 = vsub.f32 %v3106, %v3836
    %v3887 = vsub.f32 %v3107, %v3839
    %v3888 = vsub.f32 %v3108, %v3842
    %v3889 = vsub.f32 %v3109, %v3845
    %v3890 = vsub.f32 %v3110, %v3848
    %v3891 = vsub.f32 %v3111, %v3851
    %v3892 = vsub.f32 %v3112, %v3854
    %v3893 = vsub.f32 %v3113, %v3857
    %v3894 = vsub.f32 %v3114, %v3860
    %v3895 = vsub.f32 %v3115, %v3863
    %v3896 = vsub.f32 %v3116, %v3866
    %v3897 = vsub.f32 %v3117, %v3869
    %v3898 = vsub.f32 %v3118, %v3872
    %v3899 = vmul.f32 %v3873, 1.442695
    %v3900 = vpow.pop %v3899
    %v3901 = vmul.f32 %v3874, 1.442695
    %v3902 = vpow.pop %v3901
    %v3903 = vmul.f32 %v3875, 1.442695
    %v3904 = vpow.pop %v3903
    %v3905 = vmul.f32 %v3876, 1.442695
    %v3906 = vpow.pop %v3905
    %v3907 = vmul.f32 %v3877, 1.442695
    %v3908 = vpow.pop %v3907
    %v3909 = vmul.f32 %v3878, 1.442695
    %v3910 = vpow.pop %v3909
    %v3911 = vmul.f32 %v3879, 1.442695
    %v3912 = vpow.pop %v3911
    %v3913 = vmul.f32 %v3880, 1.442695
    %v3914 = vpow.pop %v3913
    %v3915 = vmul.f32 %v3881, 1.442695
    %v3916 = vpow.pop %v3915
    %v3917 = vmul.f32 %v3882, 1.442695
    %v3918 = vpow.pop %v3917
    %v3919 = vmul.f32 %v3883, 1.442695
    %v3920 = vpow.pop %v3919
    %v3921 = vmul.f32 %v3884, 1.442695
    %v3922 = vpow.pop %v3921
    %v3923 = vmul.f32 %v3885, 1.442695
    %v3924 = vpow.pop %v3923
    %v3925 = vmul.f32 %v3886, 1.442695
    %v3926 = vpow.pop %v3925
    %v3927 = vmul.f32 %v3887, 1.442695
    %v3928 = vpow.pop %v3927
    %v3929 = vmul.f32 %v3888, 1.442695
    %v3930 = vpow.pop %v3929
    %v3931 = vmul.f32 %v3889, 1.442695
    %v3932 = vpow.pop %v3931
    %v3933 = vmul.f32 %v3890, 1.442695
    %v3934 = vpow.pop %v3933
    %v3935 = vmul.f32 %v3891, 1.442695
    %v3936 = vpow.pop %v3935
    %v3937 = vmul.f32 %v3892, 1.442695
    %v3938 = vpow.pop %v3937
    %v3939 = vmul.f32 %v3893, 1.442695
    %v3940 = vpow.pop %v3939
    %v3941 = vmul.f32 %v3894, 1.442695
    %v3942 = vpow.pop %v3941
    %v3943 = vmul.f32 %v3895, 1.442695
    %v3944 = vpow.pop %v3943
    %v3945 = vmul.f32 %v3896, 1.442695
    %v3946 = vpow.pop %v3945
    %v3947 = vmul.f32 %v3897, 1.442695
    %v3948 = vpow.pop %v3947
    %v3949 = vmul.f32 %v3898, 1.442695
    %v3950 = vpow.pop %v3949
    %3977 = vrot.lane.b32.xlu0 %v3900, 112
    %v3978 = vpop.permute.xlu0 %3977
    %3979 = vrot.lane.b32.xlu0 %v3902, 112
    %v3980 = vpop.permute.xlu0 %3979
    %3981 = vrot.lane.b32.xlu0 %v3904, 112
    %v3982 = vpop.permute.xlu0 %3981
    %3983 = vrot.lane.b32.xlu0 %v3906, 112
    %v3984 = vpop.permute.xlu0 %3983
    %3985 = vrot.lane.b32.xlu0 %v3908, 112
    %v3986 = vpop.permute.xlu0 %3985
    %3987 = vrot.lane.b32.xlu0 %v3910, 112
    %v3988 = vpop.permute.xlu0 %3987
    %3989 = vrot.lane.b32.xlu0 %v3912, 112
    %v3990 = vpop.permute.xlu0 %3989
    %3991 = vrot.lane.b32.xlu0 %v3914, 112
    %v3992 = vpop.permute.xlu0 %3991
    %3993 = vrot.lane.b32.xlu0 %v3916, 112
    %v3994 = vpop.permute.xlu0 %3993
    %3995 = vrot.lane.b32.xlu0 %v3918, 112
    %v3996 = vpop.permute.xlu0 %3995
    %3997 = vrot.lane.b32.xlu0 %v3920, 112
    %v3998 = vpop.permute.xlu0 %3997
    %3999 = vrot.lane.b32.xlu0 %v3922, 112
    %v4000 = vpop.permute.xlu0 %3999
    %4001 = vrot.lane.b32.xlu0 %v3924, 112
    %v4002 = vpop.permute.xlu0 %4001
    %4003 = vrot.lane.b32.xlu0 %v3926, 112
    %v4004 = vpop.permute.xlu0 %4003
    %4005 = vrot.lane.b32.xlu0 %v3928, 112
    %v4006 = vpop.permute.xlu0 %4005
    %4007 = vrot.lane.b32.xlu0 %v3930, 112
    %v4008 = vpop.permute.xlu0 %4007
    %4009 = vrot.lane.b32.xlu0 %v3932, 112
    %v4010 = vpop.permute.xlu0 %4009
    %4011 = vrot.lane.b32.xlu0 %v3934, 112
    %v4012 = vpop.permute.xlu0 %4011
    %4013 = vrot.lane.b32.xlu0 %v3936, 112
    %v4014 = vpop.permute.xlu0 %4013
    %4015 = vrot.lane.b32.xlu0 %v3938, 112
    %v4016 = vpop.permute.xlu0 %4015
    %4017 = vrot.lane.b32.xlu0 %v3940, 112
    %v4018 = vpop.permute.xlu0 %4017
    %4019 = vrot.lane.b32.xlu0 %v3942, 112
    %v4020 = vpop.permute.xlu0 %4019
    %4021 = vrot.lane.b32.xlu0 %v3944, 112
    %v4022 = vpop.permute.xlu0 %4021
    %4023 = vrot.lane.b32.xlu0 %v3946, 112
    %v4024 = vpop.permute.xlu0 %4023
    %4025 = vrot.lane.b32.xlu0 %v3948, 112
    %v4026 = vpop.permute.xlu0 %4025
    %4027 = vrot.lane.b32.xlu0 %v3950, 112
    %v4028 = vpop.permute.xlu0 %4027
    %v4055 = vsel %vm820, %v3978, 0.0
    %4056 = vadd.xlane.f32.xlu0 %v4055
    %v4057 = vpop.xlane.xlu0 %4056
    %v4058 = vsel %vm820, %v3980, 0.0
    %4059 = vadd.xlane.f32.xlu0 %v4058
    %v4060 = vpop.xlane.xlu0 %4059
    %v4061 = vsel %vm820, %v3982, 0.0
    %4062 = vadd.xlane.f32.xlu0 %v4061
    %v4063 = vpop.xlane.xlu0 %4062
    %v4064 = vsel %vm820, %v3984, 0.0
    %4065 = vadd.xlane.f32.xlu0 %v4064
    %v4066 = vpop.xlane.xlu0 %4065
    %v4067 = vsel %vm820, %v3986, 0.0
    %4068 = vadd.xlane.f32.xlu0 %v4067
    %v4069 = vpop.xlane.xlu0 %4068
    %v4070 = vsel %vm820, %v3988, 0.0
    %4071 = vadd.xlane.f32.xlu0 %v4070
    %v4072 = vpop.xlane.xlu0 %4071
    %v4073 = vsel %vm820, %v3990, 0.0
    %4074 = vadd.xlane.f32.xlu0 %v4073
    %v4075 = vpop.xlane.xlu0 %4074
    %v4076 = vsel %vm820, %v3992, 0.0
    %4077 = vadd.xlane.f32.xlu0 %v4076
    %v4078 = vpop.xlane.xlu0 %4077
    %v4079 = vsel %vm820, %v3994, 0.0
    %4080 = vadd.xlane.f32.xlu0 %v4079
    %v4081 = vpop.xlane.xlu0 %4080
    %v4082 = vsel %vm820, %v3996, 0.0
    %4083 = vadd.xlane.f32.xlu0 %v4082
    %v4084 = vpop.xlane.xlu0 %4083
    %v4085 = vsel %vm820, %v3998, 0.0
    %4086 = vadd.xlane.f32.xlu0 %v4085
    %v4087 = vpop.xlane.xlu0 %4086
    %v4088 = vsel %vm820, %v4000, 0.0
    %4089 = vadd.xlane.f32.xlu0 %v4088
    %v4090 = vpop.xlane.xlu0 %4089
    %v4091 = vsel %vm820, %v4002, 0.0
    %4092 = vadd.xlane.f32.xlu0 %v4091
    %v4093 = vpop.xlane.xlu0 %4092
    %v4094 = vsel %vm820, %v4004, 0.0
    %4095 = vadd.xlane.f32.xlu0 %v4094
    %v4096 = vpop.xlane.xlu0 %4095
    %v4097 = vsel %vm820, %v4006, 0.0
    %4098 = vadd.xlane.f32.xlu0 %v4097
    %v4099 = vpop.xlane.xlu0 %4098
    %v4100 = vsel %vm820, %v4008, 0.0
    %4101 = vadd.xlane.f32.xlu0 %v4100
    %v4102 = vpop.xlane.xlu0 %4101
    %v4103 = vsel %vm820, %v4010, 0.0
    %4104 = vadd.xlane.f32.xlu0 %v4103
    %v4105 = vpop.xlane.xlu0 %4104
    %v4106 = vsel %vm820, %v4012, 0.0
    %4107 = vadd.xlane.f32.xlu0 %v4106
    %v4108 = vpop.xlane.xlu0 %4107
    %v4109 = vsel %vm820, %v4014, 0.0
    %4110 = vadd.xlane.f32.xlu0 %v4109
    %v4111 = vpop.xlane.xlu0 %4110
    %v4112 = vsel %vm820, %v4016, 0.0
    %4113 = vadd.xlane.f32.xlu0 %v4112
    %v4114 = vpop.xlane.xlu0 %4113
    %v4115 = vsel %vm820, %v4018, 0.0
    %4116 = vadd.xlane.f32.xlu0 %v4115
    %v4117 = vpop.xlane.xlu0 %4116
    %v4118 = vsel %vm820, %v4020, 0.0
    %4119 = vadd.xlane.f32.xlu0 %v4118
    %v4120 = vpop.xlane.xlu0 %4119
    %v4121 = vsel %vm820, %v4022, 0.0
    %4122 = vadd.xlane.f32.xlu0 %v4121
    %v4123 = vpop.xlane.xlu0 %4122
    %v4124 = vsel %vm820, %v4024, 0.0
    %4125 = vadd.xlane.f32.xlu0 %v4124
    %v4126 = vpop.xlane.xlu0 %4125
    %v4127 = vsel %vm820, %v4026, 0.0
    %4128 = vadd.xlane.f32.xlu0 %v4127
    %v4129 = vpop.xlane.xlu0 %4128
    %v4130 = vsel %vm820, %v4028, 0.0
    %4131 = vadd.xlane.f32.xlu0 %v4130
    %v4132 = vpop.xlane.xlu0 %4131
    %v4133 = vrcp.pop %v4057
    %v4134 = vmul.f32 %v3900, %v4133
    %v4135 = vrcp.pop %v4060
    %v4136 = vmul.f32 %v3902, %v4135
    %v4137 = vrcp.pop %v4063
    %v4138 = vmul.f32 %v3904, %v4137
    %v4139 = vrcp.pop %v4066
    %v4140 = vmul.f32 %v3906, %v4139
    %v4141 = vrcp.pop %v4069
    %v4142 = vmul.f32 %v3908, %v4141
    %v4143 = vrcp.pop %v4072
    %v4144 = vmul.f32 %v3910, %v4143
    %v4145 = vrcp.pop %v4075
    %v4146 = vmul.f32 %v3912, %v4145
    %v4147 = vrcp.pop %v4078
    %v4148 = vmul.f32 %v3914, %v4147
    %v4149 = vrcp.pop %v4081
    %v4150 = vmul.f32 %v3916, %v4149
    %v4151 = vrcp.pop %v4084
    %v4152 = vmul.f32 %v3918, %v4151
    %v4153 = vrcp.pop %v4087
    %v4154 = vmul.f32 %v3920, %v4153
    %v4155 = vrcp.pop %v4090
    %v4156 = vmul.f32 %v3922, %v4155
    %v4157 = vrcp.pop %v4093
    %v4158 = vmul.f32 %v3924, %v4157
    %v4159 = vrcp.pop %v4096
    %v4160 = vmul.f32 %v3926, %v4159
    %v4161 = vrcp.pop %v4099
    %v4162 = vmul.f32 %v3928, %v4161
    %v4163 = vrcp.pop %v4102
    %v4164 = vmul.f32 %v3930, %v4163
    %v4165 = vrcp.pop %v4105
    %v4166 = vmul.f32 %v3932, %v4165
    %v4167 = vrcp.pop %v4108
    %v4168 = vmul.f32 %v3934, %v4167
    %v4169 = vrcp.pop %v4111
    %v4170 = vmul.f32 %v3936, %v4169
    %v4171 = vrcp.pop %v4114
    %v4172 = vmul.f32 %v3938, %v4171
    %v4173 = vrcp.pop %v4117
    %v4174 = vmul.f32 %v3940, %v4173
    %v4175 = vrcp.pop %v4120
    %v4176 = vmul.f32 %v3942, %v4175
    %v4177 = vrcp.pop %v4123
    %v4178 = vmul.f32 %v3944, %v4177
    %v4179 = vrcp.pop %v4126
    %v4180 = vmul.f32 %v3946, %v4179
    %v4181 = vrcp.pop %v4129
    %v4182 = vmul.f32 %v3948, %v4181
    %v4183 = vrcp.pop %v4132
    %v4184 = vmul.f32 %v3950, %v4183
    %v4185 = vsel %vm1889, %v3093, -inf
    %4186 = vmax.xlane.f32.xlu0 %v4185
    %v4187 = vpop.xlane.xlu0 %4186
    %v4188 = vsel %vm1889, %v3094, -inf
    %4189 = vmax.xlane.f32.xlu0 %v4188
    %v4190 = vpop.xlane.xlu0 %4189
    %v4191 = vsel %vm1889, %v3095, -inf
    %4192 = vmax.xlane.f32.xlu0 %v4191
    %v4193 = vpop.xlane.xlu0 %4192
    %v4194 = vsel %vm1889, %v3096, -inf
    %4195 = vmax.xlane.f32.xlu0 %v4194
    %v4196 = vpop.xlane.xlu0 %4195
    %v4197 = vsel %vm1889, %v3097, -inf
    %4198 = vmax.xlane.f32.xlu0 %v4197
    %v4199 = vpop.xlane.xlu0 %4198
    %v4200 = vsel %vm1889, %v3098, -inf
    %4201 = vmax.xlane.f32.xlu0 %v4200
    %v4202 = vpop.xlane.xlu0 %4201
    %v4203 = vsel %vm1889, %v3099, -inf
    %4204 = vmax.xlane.f32.xlu0 %v4203
    %v4205 = vpop.xlane.xlu0 %4204
    %v4206 = vsel %vm1889, %v3100, -inf
    %4207 = vmax.xlane.f32.xlu0 %v4206
    %v4208 = vpop.xlane.xlu0 %4207
    %v4209 = vsel %vm1889, %v3101, -inf
    %4210 = vmax.xlane.f32.xlu0 %v4209
    %v4211 = vpop.xlane.xlu0 %4210
    %v4212 = vsel %vm1889, %v3102, -inf
    %4213 = vmax.xlane.f32.xlu0 %v4212
    %v4214 = vpop.xlane.xlu0 %4213
    %v4215 = vsel %vm1889, %v3103, -inf
    %4216 = vmax.xlane.f32.xlu0 %v4215
    %v4217 = vpop.xlane.xlu0 %4216
    %v4218 = vsel %vm1889, %v3104, -inf
    %4219 = vmax.xlane.f32.xlu0 %v4218
    %v4220 = vpop.xlane.xlu0 %4219
    %v4221 = vsel %vm1889, %v3105, -inf
    %4222 = vmax.xlane.f32.xlu0 %v4221
    %v4223 = vpop.xlane.xlu0 %4222
    %v4224 = vsel %vm1889, %v3106, -inf
    %4225 = vmax.xlane.f32.xlu0 %v4224
    %v4226 = vpop.xlane.xlu0 %4225
    %v4227 = vsel %vm1889, %v3107, -inf
    %4228 = vmax.xlane.f32.xlu0 %v4227
    %v4229 = vpop.xlane.xlu0 %4228
    %v4230 = vsel %vm1889, %v3108, -inf
    %4231 = vmax.xlane.f32.xlu0 %v4230
    %v4232 = vpop.xlane.xlu0 %4231
    %v4233 = vsel %vm1889, %v3109, -inf
    %4234 = vmax.xlane.f32.xlu0 %v4233
    %v4235 = vpop.xlane.xlu0 %4234
    %v4236 = vsel %vm1889, %v3110, -inf
    %4237 = vmax.xlane.f32.xlu0 %v4236
    %v4238 = vpop.xlane.xlu0 %4237
    %v4239 = vsel %vm1889, %v3111, -inf
    %4240 = vmax.xlane.f32.xlu0 %v4239
    %v4241 = vpop.xlane.xlu0 %4240
    %v4242 = vsel %vm1889, %v3112, -inf
    %4243 = vmax.xlane.f32.xlu0 %v4242
    %v4244 = vpop.xlane.xlu0 %4243
    %v4245 = vsel %vm1889, %v3113, -inf
    %4246 = vmax.xlane.f32.xlu0 %v4245
    %v4247 = vpop.xlane.xlu0 %4246
    %v4248 = vsel %vm1889, %v3114, -inf
    %4249 = vmax.xlane.f32.xlu0 %v4248
    %v4250 = vpop.xlane.xlu0 %4249
    %v4251 = vsel %vm1889, %v3115, -inf
    %4252 = vmax.xlane.f32.xlu0 %v4251
    %v4253 = vpop.xlane.xlu0 %4252
    %v4254 = vsel %vm1889, %v3116, -inf
    %4255 = vmax.xlane.f32.xlu0 %v4254
    %v4256 = vpop.xlane.xlu0 %4255
    %v4257 = vsel %vm1889, %v3117, -inf
    %4258 = vmax.xlane.f32.xlu0 %v4257
    %v4259 = vpop.xlane.xlu0 %4258
    %v4260 = vsel %vm1889, %v3118, -inf
    %4261 = vmax.xlane.f32.xlu0 %v4260
    %v4262 = vpop.xlane.xlu0 %4261
    %v4263 = vsub.f32 %v3093, %v4187
    %v4264 = vsub.f32 %v3094, %v4190
    %v4265 = vsub.f32 %v3095, %v4193
    %v4266 = vsub.f32 %v3096, %v4196
    %v4267 = vsub.f32 %v3097, %v4199
    %v4268 = vsub.f32 %v3098, %v4202
    %v4269 = vsub.f32 %v3099, %v4205
    %v4270 = vsub.f32 %v3100, %v4208
    %v4271 = vsub.f32 %v3101, %v4211
    %v4272 = vsub.f32 %v3102, %v4214
    %v4273 = vsub.f32 %v3103, %v4217
    %v4274 = vsub.f32 %v3104, %v4220
    %v4275 = vsub.f32 %v3105, %v4223
    %v4276 = vsub.f32 %v3106, %v4226
    %v4277 = vsub.f32 %v3107, %v4229
    %v4278 = vsub.f32 %v3108, %v4232
    %v4279 = vsub.f32 %v3109, %v4235
    %v4280 = vsub.f32 %v3110, %v4238
    %v4281 = vsub.f32 %v3111, %v4241
    %v4282 = vsub.f32 %v3112, %v4244
    %v4283 = vsub.f32 %v3113, %v4247
    %v4284 = vsub.f32 %v3114, %v4250
    %v4285 = vsub.f32 %v3115, %v4253
    %v4286 = vsub.f32 %v3116, %v4256
    %v4287 = vsub.f32 %v3117, %v4259
    %v4288 = vsub.f32 %v3118, %v4262
    %v4289 = vmul.f32 %v4263, 1.442695
    %v4290 = vpow.pop %v4289
    %v4291 = vmul.f32 %v4264, 1.442695
    %v4292 = vpow.pop %v4291
    %v4293 = vmul.f32 %v4265, 1.442695
    %v4294 = vpow.pop %v4293
    %v4295 = vmul.f32 %v4266, 1.442695
    %v4296 = vpow.pop %v4295
    %v4297 = vmul.f32 %v4267, 1.442695
    %v4298 = vpow.pop %v4297
    %v4299 = vmul.f32 %v4268, 1.442695
    %v4300 = vpow.pop %v4299
    %v4301 = vmul.f32 %v4269, 1.442695
    %v4302 = vpow.pop %v4301
    %v4303 = vmul.f32 %v4270, 1.442695
    %v4304 = vpow.pop %v4303
    %v4305 = vmul.f32 %v4271, 1.442695
    %v4306 = vpow.pop %v4305
    %v4307 = vmul.f32 %v4272, 1.442695
    %v4308 = vpow.pop %v4307
    %v4309 = vmul.f32 %v4273, 1.442695
    %v4310 = vpow.pop %v4309
    %v4311 = vmul.f32 %v4274, 1.442695
    %v4312 = vpow.pop %v4311
    %v4313 = vmul.f32 %v4275, 1.442695
    %v4314 = vpow.pop %v4313
    %v4315 = vmul.f32 %v4276, 1.442695
    %v4316 = vpow.pop %v4315
    %v4317 = vmul.f32 %v4277, 1.442695
    %v4318 = vpow.pop %v4317
    %v4319 = vmul.f32 %v4278, 1.442695
    %v4320 = vpow.pop %v4319
    %v4321 = vmul.f32 %v4279, 1.442695
    %v4322 = vpow.pop %v4321
    %v4323 = vmul.f32 %v4280, 1.442695
    %v4324 = vpow.pop %v4323
    %v4325 = vmul.f32 %v4281, 1.442695
    %v4326 = vpow.pop %v4325
    %v4327 = vmul.f32 %v4282, 1.442695
    %v4328 = vpow.pop %v4327
    %v4329 = vmul.f32 %v4283, 1.442695
    %v4330 = vpow.pop %v4329
    %v4331 = vmul.f32 %v4284, 1.442695
    %v4332 = vpow.pop %v4331
    %v4333 = vmul.f32 %v4285, 1.442695
    %v4334 = vpow.pop %v4333
    %v4335 = vmul.f32 %v4286, 1.442695
    %v4336 = vpow.pop %v4335
    %v4337 = vmul.f32 %v4287, 1.442695
    %v4338 = vpow.pop %v4337
    %v4339 = vmul.f32 %v4288, 1.442695
    %v4340 = vpow.pop %v4339
    %4367 = vrot.lane.b32.xlu0 %v4290, 104
    %v4368 = vpop.permute.xlu0 %4367
    %4369 = vrot.lane.b32.xlu0 %v4292, 104
    %v4370 = vpop.permute.xlu0 %4369
    %4371 = vrot.lane.b32.xlu0 %v4294, 104
    %v4372 = vpop.permute.xlu0 %4371
    %4373 = vrot.lane.b32.xlu0 %v4296, 104
    %v4374 = vpop.permute.xlu0 %4373
    %4375 = vrot.lane.b32.xlu0 %v4298, 104
    %v4376 = vpop.permute.xlu0 %4375
    %4377 = vrot.lane.b32.xlu0 %v4300, 104
    %v4378 = vpop.permute.xlu0 %4377
    %4379 = vrot.lane.b32.xlu0 %v4302, 104
    %v4380 = vpop.permute.xlu0 %4379
    %4381 = vrot.lane.b32.xlu0 %v4304, 104
    %v4382 = vpop.permute.xlu0 %4381
    %4383 = vrot.lane.b32.xlu0 %v4306, 104
    %v4384 = vpop.permute.xlu0 %4383
    %4385 = vrot.lane.b32.xlu0 %v4308, 104
    %v4386 = vpop.permute.xlu0 %4385
    %4387 = vrot.lane.b32.xlu0 %v4310, 104
    %v4388 = vpop.permute.xlu0 %4387
    %4389 = vrot.lane.b32.xlu0 %v4312, 104
    %v4390 = vpop.permute.xlu0 %4389
    %4391 = vrot.lane.b32.xlu0 %v4314, 104
    %v4392 = vpop.permute.xlu0 %4391
    %4393 = vrot.lane.b32.xlu0 %v4316, 104
    %v4394 = vpop.permute.xlu0 %4393
    %4395 = vrot.lane.b32.xlu0 %v4318, 104
    %v4396 = vpop.permute.xlu0 %4395
    %4397 = vrot.lane.b32.xlu0 %v4320, 104
    %v4398 = vpop.permute.xlu0 %4397
    %4399 = vrot.lane.b32.xlu0 %v4322, 104
    %v4400 = vpop.permute.xlu0 %4399
    %4401 = vrot.lane.b32.xlu0 %v4324, 104
    %v4402 = vpop.permute.xlu0 %4401
    %4403 = vrot.lane.b32.xlu0 %v4326, 104
    %v4404 = vpop.permute.xlu0 %4403
    %4405 = vrot.lane.b32.xlu0 %v4328, 104
    %v4406 = vpop.permute.xlu0 %4405
    %4407 = vrot.lane.b32.xlu0 %v4330, 104
    %v4408 = vpop.permute.xlu0 %4407
    %4409 = vrot.lane.b32.xlu0 %v4332, 104
    %v4410 = vpop.permute.xlu0 %4409
    %4411 = vrot.lane.b32.xlu0 %v4334, 104
    %v4412 = vpop.permute.xlu0 %4411
    %4413 = vrot.lane.b32.xlu0 %v4336, 104
    %v4414 = vpop.permute.xlu0 %4413
    %4415 = vrot.lane.b32.xlu0 %v4338, 104
    %v4416 = vpop.permute.xlu0 %4415
    %4417 = vrot.lane.b32.xlu0 %v4340, 104
    %v4418 = vpop.permute.xlu0 %4417
    %v4445 = vsel %vm820, %v4368, 0.0
    %4446 = vadd.xlane.f32.xlu0 %v4445
    %v4447 = vpop.xlane.xlu0 %4446
    %v4448 = vsel %vm820, %v4370, 0.0
    %4449 = vadd.xlane.f32.xlu0 %v4448
    %v4450 = vpop.xlane.xlu0 %4449
    %v4451 = vsel %vm820, %v4372, 0.0
    %4452 = vadd.xlane.f32.xlu0 %v4451
    %v4453 = vpop.xlane.xlu0 %4452
    %v4454 = vsel %vm820, %v4374, 0.0
    %4455 = vadd.xlane.f32.xlu0 %v4454
    %v4456 = vpop.xlane.xlu0 %4455
    %v4457 = vsel %vm820, %v4376, 0.0
    %4458 = vadd.xlane.f32.xlu0 %v4457
    %v4459 = vpop.xlane.xlu0 %4458
    %v4460 = vsel %vm820, %v4378, 0.0
    %4461 = vadd.xlane.f32.xlu0 %v4460
    %v4462 = vpop.xlane.xlu0 %4461
    %v4463 = vsel %vm820, %v4380, 0.0
    %4464 = vadd.xlane.f32.xlu0 %v4463
    %v4465 = vpop.xlane.xlu0 %4464
    %v4466 = vsel %vm820, %v4382, 0.0
    %4467 = vadd.xlane.f32.xlu0 %v4466
    %v4468 = vpop.xlane.xlu0 %4467
    %v4469 = vsel %vm820, %v4384, 0.0
    %4470 = vadd.xlane.f32.xlu0 %v4469
    %v4471 = vpop.xlane.xlu0 %4470
    %v4472 = vsel %vm820, %v4386, 0.0
    %4473 = vadd.xlane.f32.xlu0 %v4472
    %v4474 = vpop.xlane.xlu0 %4473
    %v4475 = vsel %vm820, %v4388, 0.0
    %4476 = vadd.xlane.f32.xlu0 %v4475
    %v4477 = vpop.xlane.xlu0 %4476
    %v4478 = vsel %vm820, %v4390, 0.0
    %4479 = vadd.xlane.f32.xlu0 %v4478
    %v4480 = vpop.xlane.xlu0 %4479
    %v4481 = vsel %vm820, %v4392, 0.0
    %4482 = vadd.xlane.f32.xlu0 %v4481
    %v4483 = vpop.xlane.xlu0 %4482
    %v4484 = vsel %vm820, %v4394, 0.0
    %4485 = vadd.xlane.f32.xlu0 %v4484
    %v4486 = vpop.xlane.xlu0 %4485
    %v4487 = vsel %vm820, %v4396, 0.0
    %4488 = vadd.xlane.f32.xlu0 %v4487
    %v4489 = vpop.xlane.xlu0 %4488
    %v4490 = vsel %vm820, %v4398, 0.0
    %4491 = vadd.xlane.f32.xlu0 %v4490
    %v4492 = vpop.xlane.xlu0 %4491
    %v4493 = vsel %vm820, %v4400, 0.0
    %4494 = vadd.xlane.f32.xlu0 %v4493
    %v4495 = vpop.xlane.xlu0 %4494
    %v4496 = vsel %vm820, %v4402, 0.0
    %4497 = vadd.xlane.f32.xlu0 %v4496
    %v4498 = vpop.xlane.xlu0 %4497
    %v4499 = vsel %vm820, %v4404, 0.0
    %4500 = vadd.xlane.f32.xlu0 %v4499
    %v4501 = vpop.xlane.xlu0 %4500
    %v4502 = vsel %vm820, %v4406, 0.0
    %4503 = vadd.xlane.f32.xlu0 %v4502
    %v4504 = vpop.xlane.xlu0 %4503
    %v4505 = vsel %vm820, %v4408, 0.0
    %4506 = vadd.xlane.f32.xlu0 %v4505
    %v4507 = vpop.xlane.xlu0 %4506
    %v4508 = vsel %vm820, %v4410, 0.0
    %4509 = vadd.xlane.f32.xlu0 %v4508
    %v4510 = vpop.xlane.xlu0 %4509
    %v4511 = vsel %vm820, %v4412, 0.0
    %4512 = vadd.xlane.f32.xlu0 %v4511
    %v4513 = vpop.xlane.xlu0 %4512
    %v4514 = vsel %vm820, %v4414, 0.0
    %4515 = vadd.xlane.f32.xlu0 %v4514
    %v4516 = vpop.xlane.xlu0 %4515
    %v4517 = vsel %vm820, %v4416, 0.0
    %4518 = vadd.xlane.f32.xlu0 %v4517
    %v4519 = vpop.xlane.xlu0 %4518
    %v4520 = vsel %vm820, %v4418, 0.0
    %4521 = vadd.xlane.f32.xlu0 %v4520
    %v4522 = vpop.xlane.xlu0 %4521
    %v4523 = vrcp.pop %v4447
    %v4524 = vmul.f32 %v4290, %v4523
    %v4525 = vrcp.pop %v4450
    %v4526 = vmul.f32 %v4292, %v4525
    %v4527 = vrcp.pop %v4453
    %v4528 = vmul.f32 %v4294, %v4527
    %v4529 = vrcp.pop %v4456
    %v4530 = vmul.f32 %v4296, %v4529
    %v4531 = vrcp.pop %v4459
    %v4532 = vmul.f32 %v4298, %v4531
    %v4533 = vrcp.pop %v4462
    %v4534 = vmul.f32 %v4300, %v4533
    %v4535 = vrcp.pop %v4465
    %v4536 = vmul.f32 %v4302, %v4535
    %v4537 = vrcp.pop %v4468
    %v4538 = vmul.f32 %v4304, %v4537
    %v4539 = vrcp.pop %v4471
    %v4540 = vmul.f32 %v4306, %v4539
    %v4541 = vrcp.pop %v4474
    %v4542 = vmul.f32 %v4308, %v4541
    %v4543 = vrcp.pop %v4477
    %v4544 = vmul.f32 %v4310, %v4543
    %v4545 = vrcp.pop %v4480
    %v4546 = vmul.f32 %v4312, %v4545
    %v4547 = vrcp.pop %v4483
    %v4548 = vmul.f32 %v4314, %v4547
    %v4549 = vrcp.pop %v4486
    %v4550 = vmul.f32 %v4316, %v4549
    %v4551 = vrcp.pop %v4489
    %v4552 = vmul.f32 %v4318, %v4551
    %v4553 = vrcp.pop %v4492
    %v4554 = vmul.f32 %v4320, %v4553
    %v4555 = vrcp.pop %v4495
    %v4556 = vmul.f32 %v4322, %v4555
    %v4557 = vrcp.pop %v4498
    %v4558 = vmul.f32 %v4324, %v4557
    %v4559 = vrcp.pop %v4501
    %v4560 = vmul.f32 %v4326, %v4559
    %v4561 = vrcp.pop %v4504
    %v4562 = vmul.f32 %v4328, %v4561
    %v4563 = vrcp.pop %v4507
    %v4564 = vmul.f32 %v4330, %v4563
    %v4565 = vrcp.pop %v4510
    %v4566 = vmul.f32 %v4332, %v4565
    %v4567 = vrcp.pop %v4513
    %v4568 = vmul.f32 %v4334, %v4567
    %v4569 = vrcp.pop %v4516
    %v4570 = vmul.f32 %v4336, %v4569
    %v4571 = vrcp.pop %v4519
    %v4572 = vmul.f32 %v4338, %v4571
    %v4573 = vrcp.pop %v4522
    %v4574 = vmul.f32 %v4340, %v4573
    %v4575 = vsel %vm820, %v3354, %v3744
    %v4576 = vsel %vm820, %v3356, %v3746
    %v4577 = vsel %vm820, %v3358, %v3748
    %v4578 = vsel %vm820, %v3360, %v3750
    %v4579 = vsel %vm820, %v3362, %v3752
    %v4580 = vsel %vm820, %v3364, %v3754
    %v4581 = vsel %vm820, %v3366, %v3756
    %v4582 = vsel %vm820, %v3368, %v3758
    %v4583 = vsel %vm820, %v3370, %v3760
    %v4584 = vsel %vm820, %v3372, %v3762
    %v4585 = vsel %vm820, %v3374, %v3764
    %v4586 = vsel %vm820, %v3376, %v3766
    %v4587 = vsel %vm820, %v3378, %v3768
    %v4588 = vsel %vm820, %v3380, %v3770
    %v4589 = vsel %vm820, %v3382, %v3772
    %v4590 = vsel %vm820, %v3384, %v3774
    %v4591 = vsel %vm820, %v3386, %v3776
    %v4592 = vsel %vm820, %v3388, %v3778
    %v4593 = vsel %vm820, %v3390, %v3780
    %v4594 = vsel %vm820, %v3392, %v3782
    %v4595 = vsel %vm820, %v3394, %v3784
    %v4596 = vsel %vm820, %v3396, %v3786
    %v4597 = vsel %vm820, %v3398, %v3788
    %v4598 = vsel %vm820, %v3400, %v3790
    %v4599 = vsel %vm820, %v3402, %v3792
    %v4600 = vsel %vm820, %v3404, %v3794
    %v4601 = vsel %vm2306, %v4575, %v4134
    %v4602 = vsel %vm2306, %v4576, %v4136
    %v4603 = vsel %vm2306, %v4577, %v4138
    %v4604 = vsel %vm2306, %v4578, %v4140
    %v4605 = vsel %vm2306, %v4579, %v4142
    %v4606 = vsel %vm2306, %v4580, %v4144
    %v4607 = vsel %vm2306, %v4581, %v4146
    %v4608 = vsel %vm2306, %v4582, %v4148
    %v4609 = vsel %vm2306, %v4583, %v4150
    %v4610 = vsel %vm2306, %v4584, %v4152
    %v4611 = vsel %vm2306, %v4585, %v4154
    %v4612 = vsel %vm2306, %v4586, %v4156
    %v4613 = vsel %vm2306, %v4587, %v4158
    %v4614 = vsel %vm2306, %v4588, %v4160
    %v4615 = vsel %vm2306, %v4589, %v4162
    %v4616 = vsel %vm2306, %v4590, %v4164
    %v4617 = vsel %vm2306, %v4591, %v4166
    %v4618 = vsel %vm2306, %v4592, %v4168
    %v4619 = vsel %vm2306, %v4593, %v4170
    %v4620 = vsel %vm2306, %v4594, %v4172
    %v4621 = vsel %vm2306, %v4595, %v4174
    %v4622 = vsel %vm2306, %v4596, %v4176
    %v4623 = vsel %vm2306, %v4597, %v4178
    %v4624 = vsel %vm2306, %v4598, %v4180
    %v4625 = vsel %vm2306, %v4599, %v4182
    %v4626 = vsel %vm2306, %v4600, %v4184
    %v4627 = vsel %vm2333, %v4601, %v4524
    %v4628 = vsel %vm2333, %v4602, %v4526
    %v4629 = vsel %vm2333, %v4603, %v4528
    %v4630 = vsel %vm2333, %v4604, %v4530
    %v4631 = vsel %vm2333, %v4605, %v4532
    %v4632 = vsel %vm2333, %v4606, %v4534
    %v4633 = vsel %vm2333, %v4607, %v4536
    %v4634 = vsel %vm2333, %v4608, %v4538
    %v4635 = vsel %vm2333, %v4609, %v4540
    %v4636 = vsel %vm2333, %v4610, %v4542
    %v4637 = vsel %vm2333, %v4611, %v4544
    %v4638 = vsel %vm2333, %v4612, %v4546
    %v4639 = vsel %vm2333, %v4613, %v4548
    %v4640 = vsel %vm2333, %v4614, %v4550
    %v4641 = vsel %vm2333, %v4615, %v4552
    %v4642 = vsel %vm2333, %v4616, %v4554
    %v4643 = vsel %vm2333, %v4617, %v4556
    %v4644 = vsel %vm2333, %v4618, %v4558
    %v4645 = vsel %vm2333, %v4619, %v4560
    %v4646 = vsel %vm2333, %v4620, %v4562
    %v4647 = vsel %vm2333, %v4621, %v4564
    %v4648 = vsel %vm2333, %v4622, %v4566
    %v4649 = vsel %vm2333, %v4623, %v4568
    %v4650 = vsel %vm2333, %v4624, %v4570
    %v4651 = vsel %vm2333, %v4625, %v4572
    %v4652 = vsel %vm2333, %v4626, %v4574
    %v4653 = vpack.c.bf16 %v4628, %v4627
    %v4654 = vpack.c.bf16 %v4630, %v4629
    %v4655 = vpack.c.bf16 %v4632, %v4631
    %v4656 = vpack.c.bf16 %v4634, %v4633
    %v4657 = vpack.c.bf16 %v4636, %v4635
    %v4658 = vpack.c.bf16 %v4638, %v4637
    %v4659 = vpack.c.bf16 %v4640, %v4639
    %v4660 = vpack.c.bf16 %v4642, %v4641
    %v4661 = vpack.c.bf16 %v4644, %v4643
    %v4662 = vpack.c.bf16 %v4646, %v4645
    %v4663 = vpack.c.bf16 %v4648, %v4647
    %v4664 = vpack.c.bf16 %v4650, %v4649
    %v4665 = vpack.c.bf16 %v4652, %v4651
    %v4666 = vld [vmem:[%s7] sm:$0xf]
    %v4667 = vld [vmem:[%s7 + $0x4] sm:$0xf]
    %v4668 = vld [vmem:[%s7 + $0x8] sm:$0xf]
    %v4669 = vld [vmem:[%s7 + $0xc] sm:$0xf]
    %v4670 = vld [vmem:[%s8] sm:$0x1]
    %v4672 = vlaneseq
    %v4673 = vshrl.u32 %v4672, 7
    %v4674 = vsub.s32 0, %v4673
    %v4675 = vrot.slane %v4670, %v4674
    %v4681 = vunpack.c.l.b16 %v4666
    %v4682 = vunpack.c.l.b16 %v4667
    %v4683 = vunpack.c.l.b16 %v4668
    %v4684 = vunpack.c.l.b16 %v4669
    %v4685 = vpack.c.b16 %v4682, %v4681
    %v4686 = vpack.c.b16 %v4684, %v4683
    %v4690 = vsel %vm617, %v4653, 0
    %v4693 = vsel %vm617, %v4654, 0
    %v4696 = vsel %vm617, %v4655, 0
    %v4699 = vsel %vm617, %v4656, 0
    %v4702 = vsel %vm617, %v4657, 0
    %v4705 = vsel %vm617, %v4658, 0
    %v4708 = vsel %vm617, %v4659, 0
    %v4711 = vsel %vm617, %v4660, 0
    %v4714 = vsel %vm617, %v4661, 0
    %v4717 = vsel %vm617, %v4662, 0
    %v4720 = vsel %vm617, %v4663, 0
    %v4723 = vsel %vm617, %v4664, 0
    %v4726 = vsel %vm617, %v4665, 0
    %4728 = vmatprep.subr.bf16.mxu0 0
    %4729 = vmatpush1.bf16.msra.mxu0 %v4685
    %4730 = vmatprep.subr.bf16.mxu0 0
    %4731 = vmatpush1.bf16.msra.mxu0 %v4686
    %4732 = vmatprep.subr.bf16.mxu0 0
    %4733 = vmatpush1.bf16.msra.mxu0 0
    %4734 = vmatprep.subr.bf16.mxu0 0
    %4735 = vmatpush1.bf16.msra.mxu0 0
    %4736 = vmatprep.subr.bf16.mxu0 0
    %4737 = vmatpush1.bf16.msra.mxu0 0
    %4738 = vmatprep.subr.bf16.mxu0 0
    %4739 = vmatpush1.bf16.msra.mxu0 0
    %4740 = vmatprep.subr.bf16.mxu0 0
    %4741 = vmatpush1.bf16.msra.mxu0 0
    %4742 = vmatprep.subr.bf16.mxu0 0
    %4743 = vmatpush1.bf16.msra.mxu0 0
    %4744 = vmatprep.subr.bf16.mxu0 0
    %4745 = vmatpush1.bf16.msra.mxu0 0
    %4746 = vmatprep.subr.bf16.mxu0 0
    %4747 = vmatpush1.bf16.msra.mxu0 0
    %4748 = vmatprep.subr.bf16.mxu0 0
    %4749 = vmatpush1.bf16.msra.mxu0 0
    %4750 = vmatprep.subr.bf16.mxu0 0
    %4751 = vmatpush1.bf16.msra.mxu0 0
    %4752 = vmatprep.subr.bf16.mxu0 0
    %4753 = vmatpush1.bf16.msra.mxu0 0
    %4754 = vmatprep.subr.bf16.mxu0 0
    %4755 = vmatpush1.bf16.msra.mxu0 0
    %4756 = vmatprep.subr.bf16.mxu0 0
    %4757 = vmatpush1.bf16.msra.mxu0 0
    %4758 = vmatprep.subr.bf16.mxu0 0
    %4759 = vmatpush1.bf16.msra.mxu0 0
    %4760 = vmatprep.mubr.bf16.mxu0 0
    %4761 = vmatmul.mubr.bf16.gmra.mrb[0].mxu0 %v4690
    %v4762 = vpop.f32.mrb[0].mxu0
    %v4763 = vadd.f32 %v4675, %v4762
    %v4764 = vpop.f32.mrb[0].mxu0
    %v4765 = vpop.f32.mrb[0].mxu0
    %v4766 = vadd.f32 %v4675, %v4765
    %v4767 = vpop.f32.mrb[0].mxu0
    %4768 = vmatprep.mubr.bf16.mxu0 0
    %4769 = vmatmul.mubr.bf16.gmra.mrb[0].mxu0 %v4693
    %v4770 = vpop.f32.mrb[0].mxu0
    %v4771 = vadd.f32 %v4675, %v4770
    %v4772 = vpop.f32.mrb[0].mxu0
    %v4773 = vpop.f32.mrb[0].mxu0
    %v4774 = vadd.f32 %v4675, %v4773
    %v4775 = vpop.f32.mrb[0].mxu0
    %4776 = vmatprep.mubr.bf16.mxu0 0
    %4777 = vmatmul.mubr.bf16.gmra.mrb[0].mxu0 %v4696
    %v4778 = vpop.f32.mrb[0].mxu0
    %v4779 = vadd.f32 %v4675, %v4778
    %v4780 = vpop.f32.mrb[0].mxu0
    %v4781 = vpop.f32.mrb[0].mxu0
    %v4782 = vadd.f32 %v4675, %v4781
    %v4783 = vpop.f32.mrb[0].mxu0
    %4784 = vmatprep.mubr.bf16.mxu0 0
    %4785 = vmatmul.mubr.bf16.gmra.mrb[0].mxu0 %v4699
    %v4786 = vpop.f32.mrb[0].mxu0
    %v4787 = vadd.f32 %v4675, %v4786
    %v4788 = vpop.f32.mrb[0].mxu0
    %v4789 = vpop.f32.mrb[0].mxu0
    %v4790 = vadd.f32 %v4675, %v4789
    %v4791 = vpop.f32.mrb[0].mxu0
    %4792 = vmatprep.mubr.bf16.mxu0 0
    %4793 = vmatmul.mubr.bf16.gmra.mrb[0].mxu0 %v4702
    %v4794 = vpop.f32.mrb[0].mxu0
    %v4795 = vadd.f32 %v4675, %v4794
    %v4796 = vpop.f32.mrb[0].mxu0
    %v4797 = vpop.f32.mrb[0].mxu0
    %v4798 = vadd.f32 %v4675, %v4797
    %v4799 = vpop.f32.mrb[0].mxu0
    %4800 = vmatprep.mubr.bf16.mxu0 0
    %4801 = vmatmul.mubr.bf16.gmra.mrb[0].mxu0 %v4705
    %v4802 = vpop.f32.mrb[0].mxu0
    %v4803 = vadd.f32 %v4675, %v4802
    %v4804 = vpop.f32.mrb[0].mxu0
    %v4805 = vpop.f32.mrb[0].mxu0
    %v4806 = vadd.f32 %v4675, %v4805
    %v4807 = vpop.f32.mrb[0].mxu0
    %4808 = vmatprep.mubr.bf16.mxu0 0
    %4809 = vmatmul.mubr.bf16.gmra.mrb[0].mxu0 %v4708
    %v4810 = vpop.f32.mrb[0].mxu0
    %v4811 = vadd.f32 %v4675, %v4810
    %v4812 = vpop.f32.mrb[0].mxu0
    %v4813 = vpop.f32.mrb[0].mxu0
    %v4814 = vadd.f32 %v4675, %v4813
    %v4815 = vpop.f32.mrb[0].mxu0
    %4816 = vmatprep.mubr.bf16.mxu0 0
    %4817 = vmatmul.mubr.bf16.gmra.mrb[0].mxu0 %v4711
    %v4818 = vpop.f32.mrb[0].mxu0
    %v4819 = vadd.f32 %v4675, %v4818
    %v4820 = vpop.f32.mrb[0].mxu0
    %v4821 = vpop.f32.mrb[0].mxu0
    %v4822 = vadd.f32 %v4675, %v4821
    %v4823 = vpop.f32.mrb[0].mxu0
    %4824 = vmatprep.mubr.bf16.mxu0 0
    %4825 = vmatmul.mubr.bf16.gmra.mrb[0].mxu0 %v4714
    %v4826 = vpop.f32.mrb[0].mxu0
    %v4827 = vadd.f32 %v4675, %v4826
    %v4828 = vpop.f32.mrb[0].mxu0
    %v4829 = vpop.f32.mrb[0].mxu0
    %v4830 = vadd.f32 %v4675, %v4829
    %v4831 = vpop.f32.mrb[0].mxu0
    %4832 = vmatprep.mubr.bf16.mxu0 0
    %4833 = vmatmul.mubr.bf16.gmra.mrb[0].mxu0 %v4717
    %v4834 = vpop.f32.mrb[0].mxu0
    %v4835 = vadd.f32 %v4675, %v4834
    %v4836 = vpop.f32.mrb[0].mxu0
    %v4837 = vpop.f32.mrb[0].mxu0
    %v4838 = vadd.f32 %v4675, %v4837
    %v4839 = vpop.f32.mrb[0].mxu0
    %4840 = vmatprep.mubr.bf16.mxu0 0
    %4841 = vmatmul.mubr.bf16.gmra.mrb[0].mxu0 %v4720
    %v4842 = vpop.f32.mrb[0].mxu0
    %v4843 = vadd.f32 %v4675, %v4842
    %v4844 = vpop.f32.mrb[0].mxu0
    %v4845 = vpop.f32.mrb[0].mxu0
    %v4846 = vadd.f32 %v4675, %v4845
    %v4847 = vpop.f32.mrb[0].mxu0
    %4848 = vmatprep.mubr.bf16.mxu0 0
    %4849 = vmatmul.mubr.bf16.gmra.mrb[0].mxu0 %v4723
    %v4850 = vpop.f32.mrb[0].mxu0
    %v4851 = vadd.f32 %v4675, %v4850
    %v4852 = vpop.f32.mrb[0].mxu0
    %v4853 = vpop.f32.mrb[0].mxu0
    %v4854 = vadd.f32 %v4675, %v4853
    %v4855 = vpop.f32.mrb[0].mxu0
    %4856 = vmatprep.mubr.bf16.mxu0 0
    %4857 = vmatmul.mubr.bf16.gmra.mrb[0].mxu0 %v4726
    %v4858 = vpop.f32.mrb[0].mxu0
    %v4859 = vadd.f32 %v4675, %v4858
    %v4860 = vpop.f32.mrb[0].mxu0
    %v4861 = vpop.f32.mrb[0].mxu0
    %v4862 = vadd.f32 %v4675, %v4861
    %v4863 = vpop.f32.mrb[0].mxu0
    %4864 = vdwg.mxu0
    %v4865 = vmax.f32 %v4763, 0.0
    %v4866 = vmax.f32 %v4766, 0.0
    %v4867 = vmax.f32 %v4771, 0.0
    %v4868 = vmax.f32 %v4774, 0.0
    %v4869 = vmax.f32 %v4779, 0.0
    %v4870 = vmax.f32 %v4782, 0.0
    %v4871 = vmax.f32 %v4787, 0.0
    %v4872 = vmax.f32 %v4790, 0.0
    %v4873 = vmax.f32 %v4795, 0.0
    %v4874 = vmax.f32 %v4798, 0.0
    %v4875 = vmax.f32 %v4803, 0.0
    %v4876 = vmax.f32 %v4806, 0.0
    %v4877 = vmax.f32 %v4811, 0.0
    %v4878 = vmax.f32 %v4814, 0.0
    %v4879 = vmax.f32 %v4819, 0.0
    %v4880 = vmax.f32 %v4822, 0.0
    %v4881 = vmax.f32 %v4827, 0.0
    %v4882 = vmax.f32 %v4830, 0.0
    %v4883 = vmax.f32 %v4835, 0.0
    %v4884 = vmax.f32 %v4838, 0.0
    %v4885 = vmax.f32 %v4843, 0.0
    %v4886 = vmax.f32 %v4846, 0.0
    %v4887 = vmax.f32 %v4851, 0.0
    %v4888 = vmax.f32 %v4854, 0.0
    %v4889 = vmax.f32 %v4859, 0.0
    %v4890 = vmax.f32 %v4862, 0.0
    %v4891 = vpack.c.bf16 %v4866, %v4865
    %v4892 = vpack.c.bf16 %v4868, %v4867
    %v4893 = vpack.c.bf16 %v4870, %v4869
    %v4894 = vpack.c.bf16 %v4872, %v4871
    %v4895 = vpack.c.bf16 %v4874, %v4873
    %v4896 = vpack.c.bf16 %v4876, %v4875
    %v4897 = vpack.c.bf16 %v4878, %v4877
    %v4898 = vpack.c.bf16 %v4880, %v4879
    %v4899 = vpack.c.bf16 %v4882, %v4881
    %v4900 = vpack.c.bf16 %v4884, %v4883
    %v4901 = vpack.c.bf16 %v4886, %v4885
    %v4902 = vpack.c.bf16 %v4888, %v4887
    %v4903 = vpack.c.bf16 %v4890, %v4889
    %v4904 = vld [vmem:[%s9] sm:$0xf]
    %v4905 = vld [vmem:[%s9 + $0x4] sm:$0xf]
    %v4906 = vld [vmem:[%s9 + $0x8] sm:$0xf]
    %v4907 = vld [vmem:[%s9 + $0xc] sm:$0xf]
    %v4908 = vld [vmem:[%s10] sm:$0x1]
    %v4910 = vlaneseq
    %v4911 = vshrl.u32 %v4910, 7
    %v4912 = vsub.s32 0, %v4911
    %v4913 = vrot.slane %v4908, %v4912
    %v4919 = vunpack.c.l.b16 %v4904
    %v4920 = vunpack.c.l.b16 %v4905
    %v4921 = vunpack.c.l.b16 %v4906
    %v4922 = vunpack.c.l.b16 %v4907
    %v4923 = vpack.c.b16 %v4920, %v4919
    %v4924 = vpack.c.b16 %v4922, %v4921
    %v4928 = vsel %vm617, %v4891, 0
    %v4931 = vsel %vm617, %v4892, 0
    %v4934 = vsel %vm617, %v4893, 0
    %v4937 = vsel %vm617, %v4894, 0
    %v4940 = vsel %vm617, %v4895, 0
    %v4943 = vsel %vm617, %v4896, 0
    %v4946 = vsel %vm617, %v4897, 0
    %v4949 = vsel %vm617, %v4898, 0
    %v4952 = vsel %vm617, %v4899, 0
    %v4955 = vsel %vm617, %v4900, 0
    %v4958 = vsel %vm617, %v4901, 0
    %v4961 = vsel %vm617, %v4902, 0
    %v4964 = vsel %vm617, %v4903, 0
    %4966 = vmatprep.subr.bf16.mxu0 0
    %4967 = vmatpush1.bf16.msra.mxu0 %v4923
    %4968 = vmatprep.subr.bf16.mxu0 0
    %4969 = vmatpush1.bf16.msra.mxu0 %v4924
    %4970 = vmatprep.subr.bf16.mxu0 0
    %4971 = vmatpush1.bf16.msra.mxu0 0
    %4972 = vmatprep.subr.bf16.mxu0 0
    %4973 = vmatpush1.bf16.msra.mxu0 0
    %4974 = vmatprep.subr.bf16.mxu0 0
    %4975 = vmatpush1.bf16.msra.mxu0 0
    %4976 = vmatprep.subr.bf16.mxu0 0
    %4977 = vmatpush1.bf16.msra.mxu0 0
    %4978 = vmatprep.subr.bf16.mxu0 0
    %4979 = vmatpush1.bf16.msra.mxu0 0
    %4980 = vmatprep.subr.bf16.mxu0 0
    %4981 = vmatpush1.bf16.msra.mxu0 0
    %4982 = vmatprep.subr.bf16.mxu0 0
    %4983 = vmatpush1.bf16.msra.mxu0 0
    %4984 = vmatprep.subr.bf16.mxu0 0
    %4985 = vmatpush1.bf16.msra.mxu0 0
    %4986 = vmatprep.subr.bf16.mxu0 0
    %4987 = vmatpush1.bf16.msra.mxu0 0
    %4988 = vmatprep.subr.bf16.mxu0 0
    %4989 = vmatpush1.bf16.msra.mxu0 0
    %4990 = vmatprep.subr.bf16.mxu0 0
    %4991 = vmatpush1.bf16.msra.mxu0 0
    %4992 = vmatprep.subr.bf16.mxu0 0
    %4993 = vmatpush1.bf16.msra.mxu0 0
    %4994 = vmatprep.subr.bf16.mxu0 0
    %4995 = vmatpush1.bf16.msra.mxu0 0
    %4996 = vmatprep.subr.bf16.mxu0 0
    %4997 = vmatpush1.bf16.msra.mxu0 0
    %4998 = vmatprep.mubr.bf16.mxu0 0
    %4999 = vmatmul.mubr.bf16.gmra.mrb[0].mxu0 %v4928
    %v5000 = vpop.f32.mrb[0].mxu0
    %v5001 = vadd.f32 %v4913, %v5000
    %v5002 = vpop.f32.mrb[0].mxu0
    %v5003 = vpop.f32.mrb[0].mxu0
    %v5004 = vadd.f32 %v4913, %v5003
    %v5005 = vpop.f32.mrb[0].mxu0
    %5006 = vmatprep.mubr.bf16.mxu0 0
    %5007 = vmatmul.mubr.bf16.gmra.mrb[0].mxu0 %v4931
    %v5008 = vpop.f32.mrb[0].mxu0
    %v5009 = vadd.f32 %v4913, %v5008
    %v5010 = vpop.f32.mrb[0].mxu0
    %v5011 = vpop.f32.mrb[0].mxu0
    %v5012 = vadd.f32 %v4913, %v5011
    %v5013 = vpop.f32.mrb[0].mxu0
    %5014 = vmatprep.mubr.bf16.mxu0 0
    %5015 = vmatmul.mubr.bf16.gmra.mrb[0].mxu0 %v4934
    %v5016 = vpop.f32.mrb[0].mxu0
    %v5017 = vadd.f32 %v4913, %v5016
    %v5018 = vpop.f32.mrb[0].mxu0
    %v5019 = vpop.f32.mrb[0].mxu0
    %v5020 = vadd.f32 %v4913, %v5019
    %v5021 = vpop.f32.mrb[0].mxu0
    %5022 = vmatprep.mubr.bf16.mxu0 0
    %5023 = vmatmul.mubr.bf16.gmra.mrb[0].mxu0 %v4937
    %v5024 = vpop.f32.mrb[0].mxu0
    %v5025 = vadd.f32 %v4913, %v5024
    %v5026 = vpop.f32.mrb[0].mxu0
    %v5027 = vpop.f32.mrb[0].mxu0
    %v5028 = vadd.f32 %v4913, %v5027
    %v5029 = vpop.f32.mrb[0].mxu0
    %5030 = vmatprep.mubr.bf16.mxu0 0
    %5031 = vmatmul.mubr.bf16.gmra.mrb[0].mxu0 %v4940
    %v5032 = vpop.f32.mrb[0].mxu0
    %v5033 = vadd.f32 %v4913, %v5032
    %v5034 = vpop.f32.mrb[0].mxu0
    %v5035 = vpop.f32.mrb[0].mxu0
    %v5036 = vadd.f32 %v4913, %v5035
    %v5037 = vpop.f32.mrb[0].mxu0
    %5038 = vmatprep.mubr.bf16.mxu0 0
    %5039 = vmatmul.mubr.bf16.gmra.mrb[0].mxu0 %v4943
    %v5040 = vpop.f32.mrb[0].mxu0
    %v5041 = vadd.f32 %v4913, %v5040
    %v5042 = vpop.f32.mrb[0].mxu0
    %v5043 = vpop.f32.mrb[0].mxu0
    %v5044 = vadd.f32 %v4913, %v5043
    %v5045 = vpop.f32.mrb[0].mxu0
    %5046 = vmatprep.mubr.bf16.mxu0 0
    %5047 = vmatmul.mubr.bf16.gmra.mrb[0].mxu0 %v4946
    %v5048 = vpop.f32.mrb[0].mxu0
    %v5049 = vadd.f32 %v4913, %v5048
    %v5050 = vpop.f32.mrb[0].mxu0
    %v5051 = vpop.f32.mrb[0].mxu0
    %v5052 = vadd.f32 %v4913, %v5051
    %v5053 = vpop.f32.mrb[0].mxu0
    %5054 = vmatprep.mubr.bf16.mxu0 0
    %5055 = vmatmul.mubr.bf16.gmra.mrb[0].mxu0 %v4949
    %v5056 = vpop.f32.mrb[0].mxu0
    %v5057 = vadd.f32 %v4913, %v5056
    %v5058 = vpop.f32.mrb[0].mxu0
    %v5059 = vpop.f32.mrb[0].mxu0
    %v5060 = vadd.f32 %v4913, %v5059
    %v5061 = vpop.f32.mrb[0].mxu0
    %5062 = vmatprep.mubr.bf16.mxu0 0
    %5063 = vmatmul.mubr.bf16.gmra.mrb[0].mxu0 %v4952
    %v5064 = vpop.f32.mrb[0].mxu0
    %v5065 = vadd.f32 %v4913, %v5064
    %v5066 = vpop.f32.mrb[0].mxu0
    %v5067 = vpop.f32.mrb[0].mxu0
    %v5068 = vadd.f32 %v4913, %v5067
    %v5069 = vpop.f32.mrb[0].mxu0
    %5070 = vmatprep.mubr.bf16.mxu0 0
    %5071 = vmatmul.mubr.bf16.gmra.mrb[0].mxu0 %v4955
    %v5072 = vpop.f32.mrb[0].mxu0
    %v5073 = vadd.f32 %v4913, %v5072
    %v5074 = vpop.f32.mrb[0].mxu0
    %v5075 = vpop.f32.mrb[0].mxu0
    %v5076 = vadd.f32 %v4913, %v5075
    %v5077 = vpop.f32.mrb[0].mxu0
    %5078 = vmatprep.mubr.bf16.mxu0 0
    %5079 = vmatmul.mubr.bf16.gmra.mrb[0].mxu0 %v4958
    %v5080 = vpop.f32.mrb[0].mxu0
    %v5081 = vadd.f32 %v4913, %v5080
    %v5082 = vpop.f32.mrb[0].mxu0
    %v5083 = vpop.f32.mrb[0].mxu0
    %v5084 = vadd.f32 %v4913, %v5083
    %v5085 = vpop.f32.mrb[0].mxu0
    %5086 = vmatprep.mubr.bf16.mxu0 0
    %5087 = vmatmul.mubr.bf16.gmra.mrb[0].mxu0 %v4961
    %v5088 = vpop.f32.mrb[0].mxu0
    %v5089 = vadd.f32 %v4913, %v5088
    %v5090 = vpop.f32.mrb[0].mxu0
    %v5091 = vpop.f32.mrb[0].mxu0
    %v5092 = vadd.f32 %v4913, %v5091
    %v5093 = vpop.f32.mrb[0].mxu0
    %5094 = vmatprep.mubr.bf16.mxu0 0
    %5095 = vmatmul.mubr.bf16.gmra.mrb[0].mxu0 %v4964
    %v5096 = vpop.f32.mrb[0].mxu0
    %v5097 = vadd.f32 %v4913, %v5096
    %v5098 = vpop.f32.mrb[0].mxu0
    %v5099 = vpop.f32.mrb[0].mxu0
    %v5100 = vadd.f32 %v4913, %v5099
    %v5101 = vpop.f32.mrb[0].mxu0
    %5102 = vdwg.mxu0
    %v5103 = vmax.f32 %v5001, 0.0
    %v5104 = vmax.f32 %v5004, 0.0
    %v5105 = vmax.f32 %v5009, 0.0
    %v5106 = vmax.f32 %v5012, 0.0
    %v5107 = vmax.f32 %v5017, 0.0
    %v5108 = vmax.f32 %v5020, 0.0
    %v5109 = vmax.f32 %v5025, 0.0
    %v5110 = vmax.f32 %v5028, 0.0
    %v5111 = vmax.f32 %v5033, 0.0
    %v5112 = vmax.f32 %v5036, 0.0
    %v5113 = vmax.f32 %v5041, 0.0
    %v5114 = vmax.f32 %v5044, 0.0
    %v5115 = vmax.f32 %v5049, 0.0
    %v5116 = vmax.f32 %v5052, 0.0
    %v5117 = vmax.f32 %v5057, 0.0
    %v5118 = vmax.f32 %v5060, 0.0
    %v5119 = vmax.f32 %v5065, 0.0
    %v5120 = vmax.f32 %v5068, 0.0
    %v5121 = vmax.f32 %v5073, 0.0
    %v5122 = vmax.f32 %v5076, 0.0
    %v5123 = vmax.f32 %v5081, 0.0
    %v5124 = vmax.f32 %v5084, 0.0
    %v5125 = vmax.f32 %v5089, 0.0
    %v5126 = vmax.f32 %v5092, 0.0
    %v5127 = vmax.f32 %v5097, 0.0
    %v5128 = vmax.f32 %v5100, 0.0
    %v5129 = vpack.c.bf16 %v5104, %v5103
    %v5130 = vpack.c.bf16 %v5106, %v5105
    %v5131 = vpack.c.bf16 %v5108, %v5107
    %v5132 = vpack.c.bf16 %v5110, %v5109
    %v5133 = vpack.c.bf16 %v5112, %v5111
    %v5134 = vpack.c.bf16 %v5114, %v5113
    %v5135 = vpack.c.bf16 %v5116, %v5115
    %v5136 = vpack.c.bf16 %v5118, %v5117
    %v5137 = vpack.c.bf16 %v5120, %v5119
    %v5138 = vpack.c.bf16 %v5122, %v5121
    %v5139 = vpack.c.bf16 %v5124, %v5123
    %v5140 = vpack.c.bf16 %v5126, %v5125
    %v5141 = vpack.c.bf16 %v5128, %v5127
    %v5142 = vld [vmem:[%s11] sm:$0xf]
    %v5143 = vld [vmem:[%s11 + $0x4] sm:$0xf]
    %v5144 = vld [vmem:[%s11 + $0x8] sm:$0xf]
    %v5145 = vld [vmem:[%s11 + $0xc] sm:$0xf]
    %v5146 = vld [vmem:[%s11 + $0x10] sm:$0xf]
    %v5147 = vld [vmem:[%s11 + $0x14] sm:$0xf]
    %v5148 = vld [vmem:[%s11 + $0x18] sm:$0xf]
    %v5149 = vld [vmem:[%s11 + $0x1c] sm:$0xf]
    %v5150 = vld [vmem:[%s12] sm:$0x1]
    %v5152 = vlaneseq
    %v5153 = vshrl.u32 %v5152, 7
    %v5154 = vsub.s32 0, %v5153
    %v5155 = vrot.slane %v5150, %v5154
    %v5165 = vunpack.c.l.b16 %v5142
    %v5166 = vunpack.c.l.b16 %v5143
    %v5167 = vunpack.c.l.b16 %v5144
    %v5168 = vunpack.c.l.b16 %v5145
    %v5169 = vunpack.c.l.b16 %v5146
    %v5170 = vunpack.c.l.b16 %v5147
    %v5171 = vunpack.c.l.b16 %v5148
    %v5172 = vunpack.c.l.b16 %v5149
    %v5173 = vpack.c.b16 %v5166, %v5165
    %v5174 = vpack.c.b16 %v5168, %v5167
    %v5175 = vpack.c.b16 %v5170, %v5169
    %v5176 = vpack.c.b16 %v5172, %v5171
    %v5182 = vsel %vm124, %v5129, 0
    %v5185 = vsel %vm124, %v5130, 0
    %v5188 = vsel %vm124, %v5131, 0
    %v5191 = vsel %vm124, %v5132, 0
    %v5194 = vsel %vm124, %v5133, 0
    %v5197 = vsel %vm124, %v5134, 0
    %v5200 = vsel %vm124, %v5135, 0
    %v5203 = vsel %vm124, %v5136, 0
    %v5206 = vsel %vm124, %v5137, 0
    %v5209 = vsel %vm124, %v5138, 0
    %v5212 = vsel %vm124, %v5139, 0
    %v5215 = vsel %vm124, %v5140, 0
    %v5218 = vsel %vm124, %v5141, 0
    %5220 = vmatprep.subr.bf16.mxu0 0
    %5221 = vmatpush1.bf16.msra.mxu0 %v5173
    %5222 = vmatprep.subr.bf16.mxu0 0
    %5223 = vmatpush1.bf16.msra.mxu0 %v5174
    %5224 = vmatprep.subr.bf16.mxu0 0
    %5225 = vmatpush1.bf16.msra.mxu0 %v5175
    %5226 = vmatprep.subr.bf16.mxu0 0
    %5227 = vmatpush1.bf16.msra.mxu0 %v5176
    %5228 = vmatprep.subr.bf16.mxu0 0
    %5229 = vmatpush1.bf16.msra.mxu0 0
    %5230 = vmatprep.subr.bf16.mxu0 0
    %5231 = vmatpush1.bf16.msra.mxu0 0
    %5232 = vmatprep.subr.bf16.mxu0 0
    %5233 = vmatpush1.bf16.msra.mxu0 0
    %5234 = vmatprep.subr.bf16.mxu0 0
    %5235 = vmatpush1.bf16.msra.mxu0 0
    %5236 = vmatprep.subr.bf16.mxu0 0
    %5237 = vmatpush1.bf16.msra.mxu0 0
    %5238 = vmatprep.subr.bf16.mxu0 0
    %5239 = vmatpush1.bf16.msra.mxu0 0
    %5240 = vmatprep.subr.bf16.mxu0 0
    %5241 = vmatpush1.bf16.msra.mxu0 0
    %5242 = vmatprep.subr.bf16.mxu0 0
    %5243 = vmatpush1.bf16.msra.mxu0 0
    %5244 = vmatprep.subr.bf16.mxu0 0
    %5245 = vmatpush1.bf16.msra.mxu0 0
    %5246 = vmatprep.subr.bf16.mxu0 0
    %5247 = vmatpush1.bf16.msra.mxu0 0
    %5248 = vmatprep.subr.bf16.mxu0 0
    %5249 = vmatpush1.bf16.msra.mxu0 0
    %5250 = vmatprep.subr.bf16.mxu0 0
    %5251 = vmatpush1.bf16.msra.mxu0 0
    %5252 = vmatprep.mubr.bf16.mxu0 0
    %5253 = vmatmul.mubr.bf16.gmra.mrb[0].mxu0 %v5182
    %v5254 = vpop.f32.mrb[0].mxu0
    %v5255 = vadd.f32 %v5155, %v5254
    %v5256 = vpop.f32.mrb[0].mxu0
    %v5257 = vpop.f32.mrb[0].mxu0
    %v5258 = vadd.f32 %v5155, %v5257
    %v5259 = vpop.f32.mrb[0].mxu0
    %5260 = vmatprep.mubr.bf16.mxu0 0
    %5261 = vmatmul.mubr.bf16.gmra.mrb[0].mxu0 %v5185
    %v5262 = vpop.f32.mrb[0].mxu0
    %v5263 = vadd.f32 %v5155, %v5262
    %v5264 = vpop.f32.mrb[0].mxu0
    %v5265 = vpop.f32.mrb[0].mxu0
    %v5266 = vadd.f32 %v5155, %v5265
    %v5267 = vpop.f32.mrb[0].mxu0
    %5268 = vmatprep.mubr.bf16.mxu0 0
    %5269 = vmatmul.mubr.bf16.gmra.mrb[0].mxu0 %v5188
    %v5270 = vpop.f32.mrb[0].mxu0
    %v5271 = vadd.f32 %v5155, %v5270
    %v5272 = vpop.f32.mrb[0].mxu0
    %v5273 = vpop.f32.mrb[0].mxu0
    %v5274 = vadd.f32 %v5155, %v5273
    %v5275 = vpop.f32.mrb[0].mxu0
    %5276 = vmatprep.mubr.bf16.mxu0 0
    %5277 = vmatmul.mubr.bf16.gmra.mrb[0].mxu0 %v5191
    %v5278 = vpop.f32.mrb[0].mxu0
    %v5279 = vadd.f32 %v5155, %v5278
    %v5280 = vpop.f32.mrb[0].mxu0
    %v5281 = vpop.f32.mrb[0].mxu0
    %v5282 = vadd.f32 %v5155, %v5281
    %v5283 = vpop.f32.mrb[0].mxu0
    %5284 = vmatprep.mubr.bf16.mxu0 0
    %5285 = vmatmul.mubr.bf16.gmra.mrb[0].mxu0 %v5194
    %v5286 = vpop.f32.mrb[0].mxu0
    %v5287 = vadd.f32 %v5155, %v5286
    %v5288 = vpop.f32.mrb[0].mxu0
    %v5289 = vpop.f32.mrb[0].mxu0
    %v5290 = vadd.f32 %v5155, %v5289
    %v5291 = vpop.f32.mrb[0].mxu0
    %5292 = vmatprep.mubr.bf16.mxu0 0
    %5293 = vmatmul.mubr.bf16.gmra.mrb[0].mxu0 %v5197
    %v5294 = vpop.f32.mrb[0].mxu0
    %v5295 = vadd.f32 %v5155, %v5294
    %v5296 = vpop.f32.mrb[0].mxu0
    %v5297 = vpop.f32.mrb[0].mxu0
    %v5298 = vadd.f32 %v5155, %v5297
    %v5299 = vpop.f32.mrb[0].mxu0
    %5300 = vmatprep.mubr.bf16.mxu0 0
    %5301 = vmatmul.mubr.bf16.gmra.mrb[0].mxu0 %v5200
    %v5302 = vpop.f32.mrb[0].mxu0
    %v5303 = vadd.f32 %v5155, %v5302
    %v5304 = vpop.f32.mrb[0].mxu0
    %v5305 = vpop.f32.mrb[0].mxu0
    %v5306 = vadd.f32 %v5155, %v5305
    %v5307 = vpop.f32.mrb[0].mxu0
    %5308 = vmatprep.mubr.bf16.mxu0 0
    %5309 = vmatmul.mubr.bf16.gmra.mrb[0].mxu0 %v5203
    %v5310 = vpop.f32.mrb[0].mxu0
    %v5311 = vadd.f32 %v5155, %v5310
    %v5312 = vpop.f32.mrb[0].mxu0
    %v5313 = vpop.f32.mrb[0].mxu0
    %v5314 = vadd.f32 %v5155, %v5313
    %v5315 = vpop.f32.mrb[0].mxu0
    %5316 = vmatprep.mubr.bf16.mxu0 0
    %5317 = vmatmul.mubr.bf16.gmra.mrb[0].mxu0 %v5206
    %v5318 = vpop.f32.mrb[0].mxu0
    %v5319 = vadd.f32 %v5155, %v5318
    %v5320 = vpop.f32.mrb[0].mxu0
    %v5321 = vpop.f32.mrb[0].mxu0
    %v5322 = vadd.f32 %v5155, %v5321
    %v5323 = vpop.f32.mrb[0].mxu0
    %5324 = vmatprep.mubr.bf16.mxu0 0
    %5325 = vmatmul.mubr.bf16.gmra.mrb[0].mxu0 %v5209
    %v5326 = vpop.f32.mrb[0].mxu0
    %v5327 = vadd.f32 %v5155, %v5326
    %v5328 = vpop.f32.mrb[0].mxu0
    %v5329 = vpop.f32.mrb[0].mxu0
    %v5330 = vadd.f32 %v5155, %v5329
    %v5331 = vpop.f32.mrb[0].mxu0
    %5332 = vmatprep.mubr.bf16.mxu0 0
    %5333 = vmatmul.mubr.bf16.gmra.mrb[0].mxu0 %v5212
    %v5334 = vpop.f32.mrb[0].mxu0
    %v5335 = vadd.f32 %v5155, %v5334
    %v5336 = vpop.f32.mrb[0].mxu0
    %v5337 = vpop.f32.mrb[0].mxu0
    %v5338 = vadd.f32 %v5155, %v5337
    %v5339 = vpop.f32.mrb[0].mxu0
    %5340 = vmatprep.mubr.bf16.mxu0 0
    %5341 = vmatmul.mubr.bf16.gmra.mrb[0].mxu0 %v5215
    %v5342 = vpop.f32.mrb[0].mxu0
    %v5343 = vadd.f32 %v5155, %v5342
    %v5344 = vpop.f32.mrb[0].mxu0
    %v5345 = vpop.f32.mrb[0].mxu0
    %v5346 = vadd.f32 %v5155, %v5345
    %v5347 = vpop.f32.mrb[0].mxu0
    %5348 = vmatprep.mubr.bf16.mxu0 0
    %5349 = vmatmul.mubr.bf16.gmra.mrb[0].mxu0 %v5218
    %v5350 = vpop.f32.mrb[0].mxu0
    %v5351 = vadd.f32 %v5155, %v5350
    %v5352 = vpop.f32.mrb[0].mxu0
    %v5353 = vpop.f32.mrb[0].mxu0
    %v5354 = vadd.f32 %v5155, %v5353
    %v5355 = vpop.f32.mrb[0].mxu0
    %5356 = vdwg.mxu0
    %v5357 = vmul.f32 %v5255, 0.5
    %v5358 = vmul.f32 %v5258, 0.5
    %v5359 = vmul.f32 %v5263, 0.5
    %v5360 = vmul.f32 %v5266, 0.5
    %v5361 = vmul.f32 %v5271, 0.5
    %v5362 = vmul.f32 %v5274, 0.5
    %v5363 = vmul.f32 %v5279, 0.5
    %v5364 = vmul.f32 %v5282, 0.5
    %v5365 = vmul.f32 %v5287, 0.5
    %v5366 = vmul.f32 %v5290, 0.5
    %v5367 = vmul.f32 %v5295, 0.5
    %v5368 = vmul.f32 %v5298, 0.5
    %v5369 = vmul.f32 %v5303, 0.5
    %v5370 = vmul.f32 %v5306, 0.5
    %v5371 = vmul.f32 %v5311, 0.5
    %v5372 = vmul.f32 %v5314, 0.5
    %v5373 = vmul.f32 %v5319, 0.5
    %v5374 = vmul.f32 %v5322, 0.5
    %v5375 = vmul.f32 %v5327, 0.5
    %v5376 = vmul.f32 %v5330, 0.5
    %v5377 = vmul.f32 %v5335, 0.5
    %v5378 = vmul.f32 %v5338, 0.5
    %v5379 = vmul.f32 %v5343, 0.5
    %v5380 = vmul.f32 %v5346, 0.5
    %v5381 = vmul.f32 %v5351, 0.5
    %v5382 = vmul.f32 %v5354, 0.5
    %v5383 = vtanh.pop %v5357
    %v5384 = vtanh.pop %v5358
    %v5385 = vtanh.pop %v5359
    %v5386 = vtanh.pop %v5360
    %v5387 = vtanh.pop %v5361
    %v5388 = vtanh.pop %v5362
    %v5389 = vtanh.pop %v5363
    %v5390 = vtanh.pop %v5364
    %v5391 = vtanh.pop %v5365
    %v5392 = vtanh.pop %v5366
    %v5393 = vtanh.pop %v5367
    %v5394 = vtanh.pop %v5368
    %v5395 = vtanh.pop %v5369
    %v5396 = vtanh.pop %v5370
    %v5397 = vtanh.pop %v5371
    %v5398 = vtanh.pop %v5372
    %v5399 = vtanh.pop %v5373
    %v5400 = vtanh.pop %v5374
    %v5401 = vtanh.pop %v5375
    %v5402 = vtanh.pop %v5376
    %v5403 = vtanh.pop %v5377
    %v5404 = vtanh.pop %v5378
    %v5405 = vtanh.pop %v5379
    %v5406 = vtanh.pop %v5380
    %v5407 = vtanh.pop %v5381
    %v5408 = vtanh.pop %v5382
    %v5409 = vadd.f32 %v5383, 1.0
    %v5410 = vadd.f32 %v5384, 1.0
    %v5411 = vadd.f32 %v5385, 1.0
    %v5412 = vadd.f32 %v5386, 1.0
    %v5413 = vadd.f32 %v5387, 1.0
    %v5414 = vadd.f32 %v5388, 1.0
    %v5415 = vadd.f32 %v5389, 1.0
    %v5416 = vadd.f32 %v5390, 1.0
    %v5417 = vadd.f32 %v5391, 1.0
    %v5418 = vadd.f32 %v5392, 1.0
    %v5419 = vadd.f32 %v5393, 1.0
    %v5420 = vadd.f32 %v5394, 1.0
    %v5421 = vadd.f32 %v5395, 1.0
    %v5422 = vadd.f32 %v5396, 1.0
    %v5423 = vadd.f32 %v5397, 1.0
    %v5424 = vadd.f32 %v5398, 1.0
    %v5425 = vadd.f32 %v5399, 1.0
    %v5426 = vadd.f32 %v5400, 1.0
    %v5427 = vadd.f32 %v5401, 1.0
    %v5428 = vadd.f32 %v5402, 1.0
    %v5429 = vadd.f32 %v5403, 1.0
    %v5430 = vadd.f32 %v5404, 1.0
    %v5431 = vadd.f32 %v5405, 1.0
    %v5432 = vadd.f32 %v5406, 1.0
    %v5433 = vadd.f32 %v5407, 1.0
    %v5434 = vadd.f32 %v5408, 1.0
    %v5435 = vmul.f32 %v5409, 0.5
    %v5436 = vmul.f32 %v5410, 0.5
    %v5437 = vmul.f32 %v5411, 0.5
    %v5438 = vmul.f32 %v5412, 0.5
    %v5439 = vmul.f32 %v5413, 0.5
    %v5440 = vmul.f32 %v5414, 0.5
    %v5441 = vmul.f32 %v5415, 0.5
    %v5442 = vmul.f32 %v5416, 0.5
    %v5443 = vmul.f32 %v5417, 0.5
    %v5444 = vmul.f32 %v5418, 0.5
    %v5445 = vmul.f32 %v5419, 0.5
    %v5446 = vmul.f32 %v5420, 0.5
    %v5447 = vmul.f32 %v5421, 0.5
    %v5448 = vmul.f32 %v5422, 0.5
    %v5449 = vmul.f32 %v5423, 0.5
    %v5450 = vmul.f32 %v5424, 0.5
    %v5451 = vmul.f32 %v5425, 0.5
    %v5452 = vmul.f32 %v5426, 0.5
    %v5453 = vmul.f32 %v5427, 0.5
    %v5454 = vmul.f32 %v5428, 0.5
    %v5455 = vmul.f32 %v5429, 0.5
    %v5456 = vmul.f32 %v5430, 0.5
    %v5457 = vmul.f32 %v5431, 0.5
    %v5458 = vmul.f32 %v5432, 0.5
    %v5459 = vmul.f32 %v5433, 0.5
    %v5460 = vmul.f32 %v5434, 0.5
    %5487 = vrot.lane.b32.xlu0 %v2334, 64
    %v5488 = vpop.permute.xlu0 %5487
    %5489 = vrot.lane.b32.xlu0 %v2335, 64
    %v5490 = vpop.permute.xlu0 %5489
    %5491 = vrot.lane.b32.xlu0 %v2336, 64
    %v5492 = vpop.permute.xlu0 %5491
    %5493 = vrot.lane.b32.xlu0 %v2337, 64
    %v5494 = vpop.permute.xlu0 %5493
    %5495 = vrot.lane.b32.xlu0 %v2338, 64
    %v5496 = vpop.permute.xlu0 %5495
    %5497 = vrot.lane.b32.xlu0 %v2339, 64
    %v5498 = vpop.permute.xlu0 %5497
    %5499 = vrot.lane.b32.xlu0 %v2340, 64
    %v5500 = vpop.permute.xlu0 %5499
    %5501 = vrot.lane.b32.xlu0 %v2341, 64
    %v5502 = vpop.permute.xlu0 %5501
    %5503 = vrot.lane.b32.xlu0 %v2342, 64
    %v5504 = vpop.permute.xlu0 %5503
    %5505 = vrot.lane.b32.xlu0 %v2343, 64
    %v5506 = vpop.permute.xlu0 %5505
    %5507 = vrot.lane.b32.xlu0 %v2344, 64
    %v5508 = vpop.permute.xlu0 %5507
    %5509 = vrot.lane.b32.xlu0 %v2345, 64
    %v5510 = vpop.permute.xlu0 %5509
    %5511 = vrot.lane.b32.xlu0 %v2346, 64
    %v5512 = vpop.permute.xlu0 %5511
    %5513 = vrot.lane.b32.xlu0 %v2347, 64
    %v5514 = vpop.permute.xlu0 %5513
    %5515 = vrot.lane.b32.xlu0 %v2348, 64
    %v5516 = vpop.permute.xlu0 %5515
    %5517 = vrot.lane.b32.xlu0 %v2349, 64
    %v5518 = vpop.permute.xlu0 %5517
    %5519 = vrot.lane.b32.xlu0 %v2350, 64
    %v5520 = vpop.permute.xlu0 %5519
    %5521 = vrot.lane.b32.xlu0 %v2351, 64
    %v5522 = vpop.permute.xlu0 %5521
    %5523 = vrot.lane.b32.xlu0 %v2352, 64
    %v5524 = vpop.permute.xlu0 %5523
    %5525 = vrot.lane.b32.xlu0 %v2353, 64
    %v5526 = vpop.permute.xlu0 %5525
    %5527 = vrot.lane.b32.xlu0 %v2354, 64
    %v5528 = vpop.permute.xlu0 %5527
    %5529 = vrot.lane.b32.xlu0 %v2355, 64
    %v5530 = vpop.permute.xlu0 %5529
    %5531 = vrot.lane.b32.xlu0 %v2356, 64
    %v5532 = vpop.permute.xlu0 %5531
    %5533 = vrot.lane.b32.xlu0 %v2357, 64
    %v5534 = vpop.permute.xlu0 %5533
    %5535 = vrot.lane.b32.xlu0 %v2358, 64
    %v5536 = vpop.permute.xlu0 %5535
    %5537 = vrot.lane.b32.xlu0 %v2359, 64
    %v5538 = vpop.permute.xlu0 %5537
    %5591 = vrot.lane.b32.xlu0 %v4627, 96
    %v5592 = vpop.permute.xlu0 %5591
    %5593 = vrot.lane.b32.xlu0 %v4628, 96
    %v5594 = vpop.permute.xlu0 %5593
    %5595 = vrot.lane.b32.xlu0 %v4629, 96
    %v5596 = vpop.permute.xlu0 %5595
    %5597 = vrot.lane.b32.xlu0 %v4630, 96
    %v5598 = vpop.permute.xlu0 %5597
    %5599 = vrot.lane.b32.xlu0 %v4631, 96
    %v5600 = vpop.permute.xlu0 %5599
    %5601 = vrot.lane.b32.xlu0 %v4632, 96
    %v5602 = vpop.permute.xlu0 %5601
    %5603 = vrot.lane.b32.xlu0 %v4633, 96
    %v5604 = vpop.permute.xlu0 %5603
    %5605 = vrot.lane.b32.xlu0 %v4634, 96
    %v5606 = vpop.permute.xlu0 %5605
    %5607 = vrot.lane.b32.xlu0 %v4635, 96
    %v5608 = vpop.permute.xlu0 %5607
    %5609 = vrot.lane.b32.xlu0 %v4636, 96
    %v5610 = vpop.permute.xlu0 %5609
    %5611 = vrot.lane.b32.xlu0 %v4637, 96
    %v5612 = vpop.permute.xlu0 %5611
    %5613 = vrot.lane.b32.xlu0 %v4638, 96
    %v5614 = vpop.permute.xlu0 %5613
    %5615 = vrot.lane.b32.xlu0 %v4639, 96
    %v5616 = vpop.permute.xlu0 %5615
    %5617 = vrot.lane.b32.xlu0 %v4640, 96
    %v5618 = vpop.permute.xlu0 %5617
    %5619 = vrot.lane.b32.xlu0 %v4641, 96
    %v5620 = vpop.permute.xlu0 %5619
    %5621 = vrot.lane.b32.xlu0 %v4642, 96
    %v5622 = vpop.permute.xlu0 %5621
    %5623 = vrot.lane.b32.xlu0 %v4643, 96
    %v5624 = vpop.permute.xlu0 %5623
    %5625 = vrot.lane.b32.xlu0 %v4644, 96
    %v5626 = vpop.permute.xlu0 %5625
    %5627 = vrot.lane.b32.xlu0 %v4645, 96
    %v5628 = vpop.permute.xlu0 %5627
    %5629 = vrot.lane.b32.xlu0 %v4646, 96
    %v5630 = vpop.permute.xlu0 %5629
    %5631 = vrot.lane.b32.xlu0 %v4647, 96
    %v5632 = vpop.permute.xlu0 %5631
    %5633 = vrot.lane.b32.xlu0 %v4648, 96
    %v5634 = vpop.permute.xlu0 %5633
    %5635 = vrot.lane.b32.xlu0 %v4649, 96
    %v5636 = vpop.permute.xlu0 %5635
    %5637 = vrot.lane.b32.xlu0 %v4650, 96
    %v5638 = vpop.permute.xlu0 %5637
    %5639 = vrot.lane.b32.xlu0 %v4651, 96
    %v5640 = vpop.permute.xlu0 %5639
    %5641 = vrot.lane.b32.xlu0 %v4652, 96
    %v5642 = vpop.permute.xlu0 %5641
    %v5669 = vsel %vm124, %v5435, %v5488
    %v5670 = vsel %vm124, %v5436, %v5490
    %v5671 = vsel %vm124, %v5437, %v5492
    %v5672 = vsel %vm124, %v5438, %v5494
    %v5673 = vsel %vm124, %v5439, %v5496
    %v5674 = vsel %vm124, %v5440, %v5498
    %v5675 = vsel %vm124, %v5441, %v5500
    %v5676 = vsel %vm124, %v5442, %v5502
    %v5677 = vsel %vm124, %v5443, %v5504
    %v5678 = vsel %vm124, %v5444, %v5506
    %v5679 = vsel %vm124, %v5445, %v5508
    %v5680 = vsel %vm124, %v5446, %v5510
    %v5681 = vsel %vm124, %v5447, %v5512
    %v5682 = vsel %vm124, %v5448, %v5514
    %v5683 = vsel %vm124, %v5449, %v5516
    %v5684 = vsel %vm124, %v5450, %v5518
    %v5685 = vsel %vm124, %v5451, %v5520
    %v5686 = vsel %vm124, %v5452, %v5522
    %v5687 = vsel %vm124, %v5453, %v5524
    %v5688 = vsel %vm124, %v5454, %v5526
    %v5689 = vsel %vm124, %v5455, %v5528
    %v5690 = vsel %vm124, %v5456, %v5530
    %v5691 = vsel %vm124, %v5457, %v5532
    %v5692 = vsel %vm124, %v5458, %v5534
    %v5693 = vsel %vm124, %v5459, %v5536
    %v5694 = vsel %vm124, %v5460, %v5538
    %vm5695 = vcmask 785408
    %v5696 = vsel %vm5695, %v5669, %v5592
    %v5697 = vsel %vm5695, %v5670, %v5594
    %v5698 = vsel %vm5695, %v5671, %v5596
    %v5699 = vsel %vm5695, %v5672, %v5598
    %v5700 = vsel %vm5695, %v5673, %v5600
    %v5701 = vsel %vm5695, %v5674, %v5602
    %v5702 = vsel %vm5695, %v5675, %v5604
    %v5703 = vsel %vm5695, %v5676, %v5606
    %v5704 = vsel %vm5695, %v5677, %v5608
    %v5705 = vsel %vm5695, %v5678, %v5610
    %v5706 = vsel %vm5695, %v5679, %v5612
    %v5707 = vsel %vm5695, %v5680, %v5614
    %v5708 = vsel %vm5695, %v5681, %v5616
    %v5709 = vsel %vm5695, %v5682, %v5618
    %v5710 = vsel %vm5695, %v5683, %v5620
    %v5711 = vsel %vm5695, %v5684, %v5622
    %v5712 = vsel %vm5695, %v5685, %v5624
    %v5713 = vsel %vm5695, %v5686, %v5626
    %v5714 = vsel %vm5695, %v5687, %v5628
    %v5715 = vsel %vm5695, %v5688, %v5630
    %v5716 = vsel %vm5695, %v5689, %v5632
    %v5717 = vsel %vm5695, %v5690, %v5634
    %v5718 = vsel %vm5695, %v5691, %v5636
    %v5719 = vsel %vm5695, %v5692, %v5638
    %v5720 = vsel %vm5695, %v5693, %v5640
    %v5721 = vsel %vm5695, %v5694, %v5642
    %v5722 = vpack.c.bf16 %v5697, %v5696
    %v5723 = vpack.c.bf16 %v5699, %v5698
    %v5724 = vpack.c.bf16 %v5701, %v5700
    %v5725 = vpack.c.bf16 %v5703, %v5702
    %v5726 = vpack.c.bf16 %v5705, %v5704
    %v5727 = vpack.c.bf16 %v5707, %v5706
    %v5728 = vpack.c.bf16 %v5709, %v5708
    %v5729 = vpack.c.bf16 %v5711, %v5710
    %v5730 = vpack.c.bf16 %v5713, %v5712
    %v5731 = vpack.c.bf16 %v5715, %v5714
    %v5732 = vpack.c.bf16 %v5717, %v5716
    %v5733 = vpack.c.bf16 %v5719, %v5718
    %v5734 = vpack.c.bf16 %v5721, %v5720
    %v5748 = vunpack.c.l.b16 %v5722
    %v5749 = vunpack.c.h.b16 %v5722
    %v5750 = vunpack.c.l.b16 %v5723
    %v5751 = vunpack.c.h.b16 %v5723
    %v5752 = vunpack.c.l.b16 %v5724
    %v5753 = vunpack.c.h.b16 %v5724
    %v5754 = vunpack.c.l.b16 %v5725
    %v5755 = vunpack.c.h.b16 %v5725
    %v5756 = vunpack.c.l.b16 %v5726
    %v5757 = vunpack.c.h.b16 %v5726
    %v5758 = vunpack.c.l.b16 %v5727
    %v5759 = vunpack.c.h.b16 %v5727
    %v5760 = vunpack.c.l.b16 %v5728
    %v5761 = vunpack.c.h.b16 %v5728
    %v5762 = vunpack.c.l.b16 %v5729
    %v5763 = vunpack.c.h.b16 %v5729
    %v5764 = vunpack.c.l.b16 %v5730
    %v5765 = vunpack.c.h.b16 %v5730
    %v5766 = vunpack.c.l.b16 %v5731
    %v5767 = vunpack.c.h.b16 %v5731
    %v5768 = vunpack.c.l.b16 %v5732
    %v5769 = vunpack.c.h.b16 %v5732
    %v5770 = vunpack.c.l.b16 %v5733
    %v5771 = vunpack.c.h.b16 %v5733
    %v5772 = vunpack.c.l.b16 %v5734
    %v5773 = vunpack.c.h.b16 %v5734
    %v5774 = vpack.c.b16 %v5748, %v5748
    %v5775 = vpack.c.b16 %v5749, %v5749
    %v5776 = vpack.c.b16 %v5750, %v5750
    %v5777 = vpack.c.b16 %v5751, %v5751
    %v5778 = vpack.c.b16 %v5752, %v5752
    %v5779 = vpack.c.b16 %v5753, %v5753
    %v5780 = vpack.c.b16 %v5754, %v5754
    %v5781 = vpack.c.b16 %v5755, %v5755
    %v5782 = vpack.c.b16 %v5756, %v5756
    %v5783 = vpack.c.b16 %v5757, %v5757
    %v5784 = vpack.c.b16 %v5758, %v5758
    %v5785 = vpack.c.b16 %v5759, %v5759
    %v5786 = vpack.c.b16 %v5760, %v5760
    %v5787 = vpack.c.b16 %v5761, %v5761
    %v5788 = vpack.c.b16 %v5762, %v5762
    %v5789 = vpack.c.b16 %v5763, %v5763
    %v5790 = vpack.c.b16 %v5764, %v5764
    %v5791 = vpack.c.b16 %v5765, %v5765
    %v5792 = vpack.c.b16 %v5766, %v5766
    %v5793 = vpack.c.b16 %v5767, %v5767
    %v5794 = vpack.c.b16 %v5768, %v5768
    %v5795 = vpack.c.b16 %v5769, %v5769
    %v5796 = vpack.c.b16 %v5770, %v5770
    %v5797 = vpack.c.b16 %v5771, %v5771
    %v5798 = vpack.c.b16 %v5772, %v5772
    %v5799 = vpack.c.b16 %v5773, %v5773
    %5826 = vst [vmem:[#allocation2] sm:$0xf] %v5774
    %5827 = vst [vmem:[#allocation2 + $0x4] sm:$0xf] %v5775
    %5828 = vst [vmem:[#allocation2 + $0x8] sm:$0xf] %v5776
    %5829 = vst [vmem:[#allocation2 + $0xc] sm:$0xf] %v5777
    %5830 = vst [vmem:[#allocation2 + $0x10] sm:$0xf] %v5778
    %5831 = vst [vmem:[#allocation2 + $0x14] sm:$0xf] %v5779
    %5832 = vst [vmem:[#allocation2 + $0x18] sm:$0xf] %v5780
    %5833 = vst [vmem:[#allocation2 + $0x1c] sm:$0xf] %v5781
    %5834 = vst [vmem:[#allocation2 + $0x20] sm:$0xf] %v5782
    %5835 = vst [vmem:[#allocation2 + $0x24] sm:$0xf] %v5783
    %5836 = vst [vmem:[#allocation2 + $0x28] sm:$0xf] %v5784
    %5837 = vst [vmem:[#allocation2 + $0x2c] sm:$0xf] %v5785
    %5838 = vst [vmem:[#allocation2 + $0x30] sm:$0xf] %v5786
    %5839 = vst [vmem:[#allocation2 + $0x34] sm:$0xf] %v5787
    %5840 = vst [vmem:[#allocation2 + $0x38] sm:$0xf] %v5788
    %5841 = vst [vmem:[#allocation2 + $0x3c] sm:$0xf] %v5789
    %5842 = vst [vmem:[#allocation2 + $0x40] sm:$0xf] %v5790
    %5843 = vst [vmem:[#allocation2 + $0x44] sm:$0xf] %v5791
    %5844 = vst [vmem:[#allocation2 + $0x48] sm:$0xf] %v5792
    %5845 = vst [vmem:[#allocation2 + $0x4c] sm:$0xf] %v5793
    %5846 = vst [vmem:[#allocation2 + $0x50] sm:$0xf] %v5794
    %5847 = vst [vmem:[#allocation2 + $0x54] sm:$0xf] %v5795
    %5848 = vst [vmem:[#allocation2 + $0x58] sm:$0xf] %v5796
    %5849 = vst [vmem:[#allocation2 + $0x5c] sm:$0xf] %v5797
    %5850 = vst [vmem:[#allocation2 + $0x60] sm:$0xf] %v5798
    %5851 = vst [vmem:[#allocation2 + $0x64] sm:$0xf] %v5799
    // Predicated region
    $region54: #{tpu_custom_call.1} parent=1 // pred_check
      _
    $region55: #{tpu_custom_call.1} parent=1 // pred_check_branch
      %5853 = sbr.rel (0) target = $region57
    $region56: #{tpu_custom_call.1} parent=1 // pred_region
      %s5855 = ssub.s32 1664, 1600
      %5856 = vsyncadd [#allocation3], %s5855
      %s5857 = sshll.u32 [#allocation2], 4
      %s5858 = int_to_ptr.vmem [resolvable:$true] %s5857
      %5863 = dma.vmem_to_hbm [thread:$0]  %s5858, 1600, %s13, [#allocation3], 64, 64, 4
    $region57: #{tpu_custom_call.1} parent=1 // pred_fallthru
      _
    // Predicated region
    $region58: #{tpu_custom_call.1} parent=1 // pred_check
      _
    $region59: #{tpu_custom_call.1} parent=1 // pred_check_branch
      %5865 = sbr.rel (0) target = $region61
    $region60: #{tpu_custom_call.1} parent=1 // pred_region
      %5866 = dma.done [#allocation3], 1664
    $region61: #{tpu_custom_call.1} parent=1 // pred_fallthru
      _
    %5867 = vsyncpa [#allocation3], 1

</llo_original>
